<compile_context>
chip_gen: v7x
topology: tpu7x:2x2x1
jax: 0.10.0
libtpu: 0.0.40
codegen_flags: <defaults>
</compile_context>

<pallas_src>
import functools

import jax
import jax.numpy as jnp
from jax import lax
from jax.experimental import pallas as pl
from jax.experimental.pallas import tpu as pltpu

# ---------------- model config (small, synthetic BERT) ----------------
VOCAB = 100
HIDDEN = 32
NUM_HEADS = 2
HEAD_DIM = HIDDEN // NUM_HEADS
INTERMEDIATE = 64
NUM_LAYERS = 2
MAX_POS = 64
NUM_CLASSES = 2
LN_EPS = 1e-12

LANE = 128                          # TPU lane width
QKV_PAD = NUM_HEADS * 3 * LANE      # each (head, q/k/v) chunk starts on a 128-lane boundary
CTX_PAD = NUM_HEADS * LANE          # per-head context chunk, 128-lane aligned
FF_PAD = 2 * LANE                   # [w1 | w2] lane slab
HEAD_PAD = 2 * LANE                 # [pooler_w | classifier_w] lane slab
LOGIT_PAD = LANE                    # lane-dense logits slab (real logits in first 2 lanes)

# ---- f32 vector-slab row layout (ONE (NUM_VEC_ROWS, QKV_PAD) operand) ----
#   rows [0, L)               : lane-padded qkv bias per layer (Q bias pre-scaled)
#   rows L, L+1               : embedding LayerNorm gamma / beta
#   rows L+2 + 7*l + [0..6]   : bo, ln1_g, ln1_b, b1, b2, ln2_g, ln2_b for layer l
#   last two rows             : pooler bias, classifier bias (padded to 128 lanes)
ROW_EMB_G = NUM_LAYERS
ROW_EMB_B = NUM_LAYERS + 1
ROW_LAYER0 = NUM_LAYERS + 2
VECS_PER_LAYER = 7
ROW_POOLB = ROW_LAYER0 + NUM_LAYERS * VECS_PER_LAYER
ROW_CLSB = ROW_POOLB + 1
NUM_VEC_ROWS = ROW_CLSB + 1


# ---------------- fused whole-forward Pallas kernel ----------------
def _bert_forward_kernel(
    x_ref, mask_ref, wqkv_ref, wo_ref, ffw_ref, headw_ref, vecs_ref,
    logits_ref, ctx_ref, *, batch, seq, num_layers,
):
    f32 = jnp.float32
    bf16 = jnp.bfloat16

    vecs = vecs_ref[...]                                  # (R, QKV_PAD) f32, loaded once

    def vec(row, width):                                  # (1, width) f32 bias/gain row
        return vecs[row:row + 1, :width]

    def layer_norm(x, grow, brow):
        # f32 LayerNorm over the hidden (lane) axis
        mu = jnp.mean(x, axis=-1, keepdims=True)
        var = jnp.mean(jnp.square(x - mu), axis=-1, keepdims=True)
        return (x - mu) * lax.rsqrt(var + LN_EPS) * vec(grow, HIDDEN) + vec(brow, HIDDEN)

    def mm(x_f32, w_bf16):
        # bf16 operands on the MXU, f32 accumulation
        return jnp.dot(x_f32.astype(bf16), w_bf16, preferred_element_type=f32)

    # --- embedding LayerNorm; hidden state stays resident in vregs for the whole pass ---
    h = layer_norm(x_ref[...].astype(f32), ROW_EMB_G, ROW_EMB_B)
    amask = mask_ref[...].astype(f32)                     # (B, S) additive mask (0 / -1e4)

    # zero the padded ctx scratch once (padding lanes must be 0; scratch VMEM is uninit)
    ctx_ref[...] = jnp.zeros_like(ctx_ref)

    # --- encoder layers, fully unrolled inside this one kernel ---
    for l in range(num_layers):
        vrow = ROW_LAYER0 + l * VECS_PER_LAYER

        # fused, lane-padded QKV projection (softmax scale already folded into Q weights/bias)
        qkv = mm(h, wqkv_ref[l]) + vecs[l:l + 1, :]       # (B*S, QKV_PAD) f32

        for b in range(batch):
            r0 = b * seq
            # sublane-aligned row block, cast once to bf16 for the attention MXU ops
            qkv_b = qkv[r0:r0 + seq, :].astype(bf16)      # (S, QKV_PAD) bf16
            mb = amask[b:b + 1, :]                        # (1, S) mask over key positions
            for hd in range(NUM_HEADS):
                base = hd * 3 * LANE                      # 128-lane-aligned chunk starts
                qb = qkv_b[:, base:base + HEAD_DIM]
                kb = qkv_b[:, base + LANE:base + LANE + HEAD_DIM]
                vb = qkv_b[:, base + 2 * LANE:base + 2 * LANE + HEAD_DIM]

                # scores = q @ k^T (bf16 operands, f32 accumulation); scale pre-folded
                s = lax.dot_general(qb, kb, (((1,), (1,)), ((), ())),
                                    preferred_element_type=f32) + mb
                m = jnp.max(s, axis=-1, keepdims=True)
                e = jnp.exp(s - m)
                inv = pl.reciprocal(jnp.sum(e, axis=-1, keepdims=True), approx=True)
                p = (e * inv).astype(bf16)

                # context written to the 128-lane-aligned VMEM scratch at static offsets
                ctx_ref[r0:r0 + seq, hd * LANE:hd * LANE + HEAD_DIM] = jnp.dot(
                    p, vb, preferred_element_type=f32)

        # attention output projection (row-padded weight) + residual + LayerNorm
        attn = mm(ctx_ref[...], wo_ref[l]) + vec(vrow + 0, HIDDEN)
        h = layer_norm(attn + h, vrow + 1, vrow + 2)

        # FFN (GELU) + residual + LayerNorm; w1 | w2 share one lane slab
        ffw_l = ffw_ref[l]                                # (INTERMEDIATE, FF_PAD) bf16
        ff = mm(h, ffw_l[:HIDDEN, :INTERMEDIATE]) + vec(vrow + 3, INTERMEDIATE)
        # TODO(synk): HF BertIntermediate default is exact erf GELU; tanh approximation used here.
        ff = 0.5 * ff * (1.0 + jnp.tanh(0.7978845608028654 * (ff + 0.044715 * ff * ff * ff)))
        ff = mm(ff, ffw_l[:, LANE:LANE + HIDDEN]) + vec(vrow + 4, HIDDEN)
        h = layer_norm(ff + h, vrow + 5, vrow + 6)

    # --- pooler + classifier (CLS rows via reshape-and-slice, no concat tree) ---
    headw = headw_ref[...]                                # (HIDDEN, HEAD_PAD) bf16
    cls_h = jnp.reshape(h, (batch, seq, HIDDEN))[:, 0, :]  # (B, H)
    pooled = jnp.tanh(mm(cls_h, headw[:, :HIDDEN]) + vec(ROW_POOLB, HIDDEN))
    logits = mm(pooled, headw[:, LANE:]) + vec(ROW_CLSB, LOGIT_PAD)   # (B, 128) lane-dense
    logits_ref[...] = logits.astype(logits_ref.dtype)


# ---------------- deterministic parameter init (f32 master params) ----------------
def init_params(key):
    keys = iter(jax.random.split(key, 64))

    def nrm(shape, scale=0.02):
        return (scale * jax.random.normal(next(keys), shape)).astype(jnp.float32)

    def zeros(shape):
        return jnp.zeros(shape, jnp.float32)

    def ones(shape):
        return jnp.ones(shape, jnp.float32)

    params = {
        "word_emb": nrm((VOCAB, HIDDEN)),
        "pos_emb": nrm((MAX_POS, HIDDEN)),
        "type_emb": nrm((2, HIDDEN)),
        "emb_ln_g": ones((HIDDEN,)),
        "emb_ln_b": zeros((HIDDEN,)),
        "pooler_w": nrm((HIDDEN, HIDDEN)),
        "pooler_b": zeros((HIDDEN,)),
        "cls_w": nrm((HIDDEN, NUM_CLASSES)),
        "cls_b": zeros((NUM_CLASSES,)),
        "layers": [],
    }
    for _ in range(NUM_LAYERS):
        params["layers"].append({
            "wq": nrm((HIDDEN, HIDDEN)), "bq": zeros((HIDDEN,)),
            "wk": nrm((HIDDEN, HIDDEN)), "bk": zeros((HIDDEN,)),
            "wv": nrm((HIDDEN, HIDDEN)), "bv": zeros((HIDDEN,)),
            "wo": nrm((HIDDEN, HIDDEN)), "bo": zeros((HIDDEN,)),
            "ln1_g": ones((HIDDEN,)), "ln1_b": zeros((HIDDEN,)),
            "w1": nrm((HIDDEN, INTERMEDIATE)), "b1": zeros((INTERMEDIATE,)),
            "w2": nrm((INTERMEDIATE, HIDDEN)), "b2": zeros((HIDDEN,)),
            "ln2_g": ones((HIDDEN,)), "ln2_b": zeros((HIDDEN,)),
        })
    return params


# ---------------- pack params for the fused kernel ----------------
def pack_params(params):
    layers = params["layers"]
    scale = 1.0 / float(HEAD_DIM) ** 0.5

    wqkv = jnp.zeros((NUM_LAYERS, HIDDEN, QKV_PAD), jnp.float32)
    wo = jnp.zeros((NUM_LAYERS, CTX_PAD, HIDDEN), jnp.float32)
    ffw = jnp.zeros((NUM_LAYERS, INTERMEDIATE, FF_PAD), jnp.float32)
    vecs = jnp.zeros((NUM_VEC_ROWS, QKV_PAD), jnp.float32)

    for l, lp in enumerate(layers):
        for hd in range(NUM_HEADS):
            c0 = hd * HEAD_DIM
            base = hd * 3 * LANE
            # softmax scale folded into the Q columns and Q bias
            wqkv = wqkv.at[l, :, base:base + HEAD_DIM].set(lp["wq"][:, c0:c0 + HEAD_DIM] * scale)
            wqkv = wqkv.at[l, :, base + LANE:base + LANE + HEAD_DIM].set(lp["wk"][:, c0:c0 + HEAD_DIM])
            wqkv = wqkv.at[l, :, base + 2 * LANE:base + 2 * LANE + HEAD_DIM].set(lp["wv"][:, c0:c0 + HEAD_DIM])
            vecs = vecs.at[l, base:base + HEAD_DIM].set(lp["bq"][c0:c0 + HEAD_DIM] * scale)
            vecs = vecs.at[l, base + LANE:base + LANE + HEAD_DIM].set(lp["bk"][c0:c0 + HEAD_DIM])
            vecs = vecs.at[l, base + 2 * LANE:base + 2 * LANE + HEAD_DIM].set(lp["bv"][c0:c0 + HEAD_DIM])
            # output-projection rows padded to match the 128-lane-aligned ctx chunks
            wo = wo.at[l, hd * LANE:hd * LANE + HEAD_DIM, :].set(lp["wo"][c0:c0 + HEAD_DIM, :])
        ffw = ffw.at[l, :HIDDEN, :INTERMEDIATE].set(lp["w1"])
        ffw = ffw.at[l, :, LANE:LANE + HIDDEN].set(lp["w2"])
        vrow = ROW_LAYER0 + l * VECS_PER_LAYER
        vecs = vecs.at[vrow + 0, :HIDDEN].set(lp["bo"])
        vecs = vecs.at[vrow + 1, :HIDDEN].set(lp["ln1_g"])
        vecs = vecs.at[vrow + 2, :HIDDEN].set(lp["ln1_b"])
        vecs = vecs.at[vrow + 3, :INTERMEDIATE].set(lp["b1"])
        vecs = vecs.at[vrow + 4, :HIDDEN].set(lp["b2"])
        vecs = vecs.at[vrow + 5, :HIDDEN].set(lp["ln2_g"])
        vecs = vecs.at[vrow + 6, :HIDDEN].set(lp["ln2_b"])

    vecs = vecs.at[ROW_EMB_G, :HIDDEN].set(params["emb_ln_g"])
    vecs = vecs.at[ROW_EMB_B, :HIDDEN].set(params["emb_ln_b"])
    vecs = vecs.at[ROW_POOLB, :HIDDEN].set(params["pooler_b"])
    vecs = vecs.at[ROW_CLSB, :NUM_CLASSES].set(params["cls_b"])

    headw = jnp.zeros((HIDDEN, HEAD_PAD), jnp.float32)
    headw = headw.at[:, :HIDDEN].set(params["pooler_w"])
    headw = headw.at[:, LANE:LANE + NUM_CLASSES].set(params["cls_w"])

    return {
        "word_emb": params["word_emb"],
        "pos_emb": params["pos_emb"],
        "type_emb": params["type_emb"],
        "wqkv": wqkv.astype(jnp.bfloat16),
        "wo": wo.astype(jnp.bfloat16),
        "ffw": ffw.astype(jnp.bfloat16),
        "headw": headw.astype(jnp.bfloat16),
        "vecs": vecs,                       # single f32 vector slab (biases, LN params)
    }


# ---------------- forward pass (BertClassifier.forward) ----------------
def bert_classifier_forward(packed, input_ids, attention_mask):
    B, S = input_ids.shape

    # TODO(synk): embedding table row-gather is data-dependent; kept in XLA glue
    # (a one-hot matmul in-kernel would be wasteful at these sizes).
    # token_type_ids are all-zero (HF default when only input_ids/attention_mask are passed).
    x = (jnp.take(packed["word_emb"], input_ids, axis=0)
         + packed["pos_emb"][None, :S, :]
         + packed["type_emb"][0][None, None, :])
    x2d = x.reshape(B * S, HIDDEN).astype(jnp.float32)

    # HF-BERT style additive mask: (1 - mask) * -10000, shape (B, S)
    add_mask = (1.0 - attention_mask.astype(jnp.float32)) * -10000.0

    vspec = pl.BlockSpec(memory_space=pltpu.MemorySpace.VMEM)
    operands = (x2d, add_mask, packed["wqkv"], packed["wo"], packed["ffw"],
                packed["headw"], packed["vecs"])

    logits_pad = pl.pallas_call(
        functools.partial(_bert_forward_kernel, batch=B, seq=S, num_layers=NUM_LAYERS),
        out_shape=jax.ShapeDtypeStruct((B, LOGIT_PAD), jnp.float32),
        in_specs=[vspec] * len(operands),
        out_specs=vspec,
        scratch_shapes=[pltpu.VMEM((B * S, CTX_PAD), jnp.float32)],
    )(*operands)

    # slice the lane-padded slab down to the real logits
    return logits_pad[:, :NUM_CLASSES]


if __name__ == "__main__":
    key = jax.random.PRNGKey(0)
    pkey, ikey = jax.random.split(key)

    params = init_params(pkey)
    packed = pack_params(params)

    B, S = 2, 8
    input_ids = jax.random.randint(ikey, (B, S), 0, VOCAB, dtype=jnp.int32)
    attention_mask = jnp.array(
        [[1, 1, 1, 1, 1, 1, 1, 1],
         [1, 1, 1, 1, 1, 1, 0, 0]], dtype=jnp.int32)

    fwd = jax.jit(functools.partial(bert_classifier_forward, packed))
    logits = fwd(input_ids, attention_mask)
    jax.block_until_ready(logits)

    assert logits.shape == (B, NUM_CLASSES)
    assert bool(jnp.all(jnp.isfinite(logits)))
    print("KERNEL_OK")
</pallas_src>

<mosaic_0001>
module attributes {stable_mosaic.version = 11 : i64} {
  func.func @_bert_forward_kernel(%arg0: memref<16x32xf32, #tpu.memory_space<vmem>>, %arg1: memref<2x8xf32, #tpu.memory_space<vmem>>, %arg2: memref<2x32x768xbf16, #tpu.memory_space<vmem>>, %arg3: memref<2x256x32xbf16, #tpu.memory_space<vmem>>, %arg4: memref<2x64x256xbf16, #tpu.memory_space<vmem>>, %arg5: memref<32x256xbf16, #tpu.memory_space<vmem>>, %arg6: memref<20x768xf32, #tpu.memory_space<vmem>>, %arg7: memref<2x128xf32, #tpu.memory_space<vmem>>, %arg8: memref<16x256xf32, #tpu.memory_space<vmem>>) attributes {dimension_semantics = [], scalar_prefetch = 0 : i64, scratch_operands = 1 : i64, tpu.core_type = #tpu.core_type<tc>} {
    %c0 = arith.constant 0 : index
    %c0_0 = arith.constant 0 : index
    %0 = vector.load %arg6[%c0, %c0_0] : memref<20x768xf32, #tpu.memory_space<vmem>>, vector<20x768xf32>
    %c0_1 = arith.constant 0 : index
    %c0_2 = arith.constant 0 : index
    %1 = vector.load %arg0[%c0_1, %c0_2] : memref<16x32xf32, #tpu.memory_space<vmem>>, vector<16x32xf32>
    %cst = arith.constant dense<0.000000e+00> : vector<16xf32>
    %2 = vector.multi_reduction <add>, %1, %cst [1] : vector<16x32xf32> to vector<16xf32>
    %3 = vector.shape_cast %2 : vector<16xf32> to vector<16x1xf32>
    %cst_3 = arith.constant 3.200000e+01 : f32
    %4 = vector.broadcast %cst_3 : f32 to vector<16x1xf32>
    %5 = arith.divf %3, %4 : vector<16x1xf32>
    %6 = vector.broadcast %5 : vector<16x1xf32> to vector<16x32xf32>
    %7 = arith.subf %1, %6 : vector<16x32xf32>
    %8 = arith.mulf %7, %7 : vector<16x32xf32>
    %cst_4 = arith.constant dense<0.000000e+00> : vector<16xf32>
    %9 = vector.multi_reduction <add>, %8, %cst_4 [1] : vector<16x32xf32> to vector<16xf32>
    %10 = vector.shape_cast %9 : vector<16xf32> to vector<16x1xf32>
    %cst_5 = arith.constant 3.200000e+01 : f32
    %11 = vector.broadcast %cst_5 : f32 to vector<16x1xf32>
    %12 = arith.divf %10, %11 : vector<16x1xf32>
    %13 = vector.broadcast %5 : vector<16x1xf32> to vector<16x32xf32>
    %14 = arith.subf %1, %13 : vector<16x32xf32>
    %cst_6 = arith.constant 9.99999996E-13 : f32
    %15 = vector.broadcast %cst_6 : f32 to vector<16x1xf32>
    %16 = arith.addf %12, %15 : vector<16x1xf32>
    %17 = math.rsqrt %16 : vector<16x1xf32>
    %18 = vector.broadcast %17 : vector<16x1xf32> to vector<16x32xf32>
    %19 = arith.mulf %14, %18 : vector<16x32xf32>
    %20 = vector.extract_strided_slice %0 {offsets = [2, 0], sizes = [1, 32], strides = [1, 1]} : vector<20x768xf32> to vector<1x32xf32>
    %21 = vector.broadcast %20 : vector<1x32xf32> to vector<16x32xf32>
    %22 = arith.mulf %19, %21 : vector<16x32xf32>
    %23 = vector.extract_strided_slice %0 {offsets = [3, 0], sizes = [1, 32], strides = [1, 1]} : vector<20x768xf32> to vector<1x32xf32>
    %24 = vector.broadcast %23 : vector<1x32xf32> to vector<16x32xf32>
    %25 = arith.addf %22, %24 : vector<16x32xf32>
    %c0_7 = arith.constant 0 : index
    %c0_8 = arith.constant 0 : index
    %26 = vector.load %arg1[%c0_7, %c0_8] : memref<2x8xf32, #tpu.memory_space<vmem>>, vector<2x8xf32>
    %cst_9 = arith.constant 0.000000e+00 : f32
    %27 = vector.broadcast %cst_9 : f32 to vector<16x256xf32>
    %c0_10 = arith.constant 0 : index
    %c0_11 = arith.constant 0 : index
    %28 = vector.load %arg8[%c0_10, %c0_11] : memref<16x256xf32, #tpu.memory_space<vmem>>, vector<16x256xf32>
    tpu.vector_store %arg8[%c0_10, %c0_11], %27 {strides = array<i32>} : memref<16x256xf32, #tpu.memory_space<vmem>>, vector<16x256xf32>,
    %c0_12 = arith.constant 0 : index
    %c0_13 = arith.constant 0 : index
    %c0_14 = arith.constant 0 : index
    %29 = vector.load %arg2[%c0_12, %c0_13, %c0_14] : memref<2x32x768xbf16, #tpu.memory_space<vmem>>, vector<1x32x768xbf16>
    %30 = vector.shape_cast %29 : vector<1x32x768xbf16> to vector<32x768xbf16>
    %31 = arith.truncf %25 : vector<16x32xf32> to vector<16x32xbf16>
    %cst_15 = arith.constant dense<0.000000e+00> : vector<16x768xf32>
    %32 = tpu.matmul %31, %30, %cst_15 {dimension_numbers = #tpu.dot_dimension_numbers<[1], [0], [0], [1], [0, 0, 1, 1], [], []>} : vector<16x32xbf16>, vector<32x768xbf16>, vector<16x768xf32> -> vector<16x768xf32>
    %33 = vector.extract_strided_slice %0 {offsets = [0, 0], sizes = [1, 768], strides = [1, 1]} : vector<20x768xf32> to vector<1x768xf32>
    %34 = vector.broadcast %33 : vector<1x768xf32> to vector<16x768xf32>
    %35 = arith.addf %32, %34 : vector<16x768xf32>
    %36 = vector.extract_strided_slice %35 {offsets = [0, 0], sizes = [8, 768], strides = [1, 1]} : vector<16x768xf32> to vector<8x768xf32>
    %37 = arith.truncf %36 : vector<8x768xf32> to vector<8x768xbf16>
    %38 = vector.extract_strided_slice %26 {offsets = [0, 0], sizes = [1, 8], strides = [1, 1]} : vector<2x8xf32> to vector<1x8xf32>
    %39 = vector.extract_strided_slice %37 {offsets = [0, 0], sizes = [8, 16], strides = [1, 1]} : vector<8x768xbf16> to vector<8x16xbf16>
    %40 = vector.extract_strided_slice %37 {offsets = [0, 128], sizes = [8, 16], strides = [1, 1]} : vector<8x768xbf16> to vector<8x16xbf16>
    %41 = vector.extract_strided_slice %37 {offsets = [0, 256], sizes = [8, 16], strides = [1, 1]} : vector<8x768xbf16> to vector<8x16xbf16>
    %cst_16 = arith.constant dense<0.000000e+00> : vector<8x8xf32>
    %42 = tpu.matmul %39, %40, %cst_16 {dimension_numbers = #tpu.dot_dimension_numbers<[1], [1], [0], [0], [0, 0, 1, 0], [], []>} : vector<8x16xbf16>, vector<8x16xbf16>, vector<8x8xf32> -> vector<8x8xf32>
    %43 = vector.broadcast %38 : vector<1x8xf32> to vector<8x8xf32>
    %44 = arith.addf %42, %43 : vector<8x8xf32>
    %cst_17 = arith.constant dense<0xFF800000> : vector<8xf32>
    %45 = vector.multi_reduction <maximumf>, %44, %cst_17 [1] : vector<8x8xf32> to vector<8xf32>
    %46 = vector.shape_cast %45 : vector<8xf32> to vector<8x1xf32>
    %47 = vector.broadcast %46 : vector<8x1xf32> to vector<8x8xf32>
    %48 = arith.subf %44, %47 : vector<8x8xf32>
    %49 = math.exp %48 : vector<8x8xf32>
    %cst_18 = arith.constant dense<0.000000e+00> : vector<8xf32>
    %50 = vector.multi_reduction <add>, %49, %cst_18 [1] : vector<8x8xf32> to vector<8xf32>
    %51 = vector.shape_cast %50 : vector<8xf32> to vector<8x1xf32>
    %52 = tpu.reciprocal %51 {approx = true} : vector<8x1xf32> -> vector<8x1xf32>
    %53 = vector.broadcast %52 : vector<8x1xf32> to vector<8x8xf32>
    %54 = arith.mulf %49, %53 : vector<8x8xf32>
    %55 = arith.truncf %54 : vector<8x8xf32> to vector<8x8xbf16>
    %cst_19 = arith.constant dense<0.000000e+00> : vector<8x16xf32>
    %56 = tpu.matmul %55, %41, %cst_19 {dimension_numbers = #tpu.dot_dimension_numbers<[1], [0], [0], [1], [0, 0, 1, 1], [], []>} : vector<8x8xbf16>, vector<8x16xbf16>, vector<8x16xf32> -> vector<8x16xf32>
    %c0_20 = arith.constant 0 : index
    %c0_21 = arith.constant 0 : index
    %57 = vector.load %arg8[%c0_20, %c0_21] : memref<16x256xf32, #tpu.memory_space<vmem>>, vector<8x16xf32>
    tpu.vector_store %arg8[%c0_20, %c0_21], %56 {strides = array<i32>} : memref<16x256xf32, #tpu.memory_space<vmem>>, vector<8x16xf32>,
    %58 = vector.extract_strided_slice %37 {offsets = [0, 384], sizes = [8, 16], strides = [1, 1]} : vector<8x768xbf16> to vector<8x16xbf16>
    %59 = vector.extract_strided_slice %37 {offsets = [0, 512], sizes = [8, 16], strides = [1, 1]} : vector<8x768xbf16> to vector<8x16xbf16>
    %60 = vector.extract_strided_slice %37 {offsets = [0, 640], sizes = [8, 16], strides = [1, 1]} : vector<8x768xbf16> to vector<8x16xbf16>
    %cst_22 = arith.constant dense<0.000000e+00> : vector<8x8xf32>
    %61 = tpu.matmul %58, %59, %cst_22 {dimension_numbers = #tpu.dot_dimension_numbers<[1], [1], [0], [0], [0, 0, 1, 0], [], []>} : vector<8x16xbf16>, vector<8x16xbf16>, vector<8x8xf32> -> vector<8x8xf32>
    %62 = vector.broadcast %38 : vector<1x8xf32> to vector<8x8xf32>
    %63 = arith.addf %61, %62 : vector<8x8xf32>
    %cst_23 = arith.constant dense<0xFF800000> : vector<8xf32>
    %64 = vector.multi_reduction <maximumf>, %63, %cst_23 [1] : vector<8x8xf32> to vector<8xf32>
    %65 = vector.shape_cast %64 : vector<8xf32> to vector<8x1xf32>
    %66 = vector.broadcast %65 : vector<8x1xf32> to vector<8x8xf32>
    %67 = arith.subf %63, %66 : vector<8x8xf32>
    %68 = math.exp %67 : vector<8x8xf32>
    %cst_24 = arith.constant dense<0.000000e+00> : vector<8xf32>
    %69 = vector.multi_reduction <add>, %68, %cst_24 [1] : vector<8x8xf32> to vector<8xf32>
    %70 = vector.shape_cast %69 : vector<8xf32> to vector<8x1xf32>
    %71 = tpu.reciprocal %70 {approx = true} : vector<8x1xf32> -> vector<8x1xf32>
    %72 = vector.broadcast %71 : vector<8x1xf32> to vector<8x8xf32>
    %73 = arith.mulf %68, %72 : vector<8x8xf32>
    %74 = arith.truncf %73 : vector<8x8xf32> to vector<8x8xbf16>
    %cst_25 = arith.constant dense<0.000000e+00> : vector<8x16xf32>
    %75 = tpu.matmul %74, %60, %cst_25 {dimension_numbers = #tpu.dot_dimension_numbers<[1], [0], [0], [1], [0, 0, 1, 1], [], []>} : vector<8x8xbf16>, vector<8x16xbf16>, vector<8x16xf32> -> vector<8x16xf32>
    %c0_26 = arith.constant 0 : index
    %c128 = arith.constant 128 : index
    %76 = vector.load %arg8[%c0_26, %c128] : memref<16x256xf32, #tpu.memory_space<vmem>>, vector<8x16xf32>
    tpu.vector_store %arg8[%c0_26, %c128], %75 {strides = array<i32>} : memref<16x256xf32, #tpu.memory_space<vmem>>, vector<8x16xf32>,
    %77 = vector.extract_strided_slice %35 {offsets = [8, 0], sizes = [8, 768], strides = [1, 1]} : vector<16x768xf32> to vector<8x768xf32>
    %78 = arith.truncf %77 : vector<8x768xf32> to vector<8x768xbf16>
    %79 = vector.extract_strided_slice %26 {offsets = [1, 0], sizes = [1, 8], strides = [1, 1]} : vector<2x8xf32> to vector<1x8xf32>
    %80 = vector.extract_strided_slice %78 {offsets = [0, 0], sizes = [8, 16], strides = [1, 1]} : vector<8x768xbf16> to vector<8x16xbf16>
    %81 = vector.extract_strided_slice %78 {offsets = [0, 128], sizes = [8, 16], strides = [1, 1]} : vector<8x768xbf16> to vector<8x16xbf16>
    %82 = vector.extract_strided_slice %78 {offsets = [0, 256], sizes = [8, 16], strides = [1, 1]} : vector<8x768xbf16> to vector<8x16xbf16>
    %cst_27 = arith.constant dense<0.000000e+00> : vector<8x8xf32>
    %83 = tpu.matmul %80, %81, %cst_27 {dimension_numbers = #tpu.dot_dimension_numbers<[1], [1], [0], [0], [0, 0, 1, 0], [], []>} : vector<8x16xbf16>, vector<8x16xbf16>, vector<8x8xf32> -> vector<8x8xf32>
    %84 = vector.broadcast %79 : vector<1x8xf32> to vector<8x8xf32>
    %85 = arith.addf %83, %84 : vector<8x8xf32>
    %cst_28 = arith.constant dense<0xFF800000> : vector<8xf32>
    %86 = vector.multi_reduction <maximumf>, %85, %cst_28 [1] : vector<8x8xf32> to vector<8xf32>
    %87 = vector.shape_cast %86 : vector<8xf32> to vector<8x1xf32>
    %88 = vector.broadcast %87 : vector<8x1xf32> to vector<8x8xf32>
    %89 = arith.subf %85, %88 : vector<8x8xf32>
    %90 = math.exp %89 : vector<8x8xf32>
    %cst_29 = arith.constant dense<0.000000e+00> : vector<8xf32>
    %91 = vector.multi_reduction <add>, %90, %cst_29 [1] : vector<8x8xf32> to vector<8xf32>
    %92 = vector.shape_cast %91 : vector<8xf32> to vector<8x1xf32>
    %93 = tpu.reciprocal %92 {approx = true} : vector<8x1xf32> -> vector<8x1xf32>
    %94 = vector.broadcast %93 : vector<8x1xf32> to vector<8x8xf32>
    %95 = arith.mulf %90, %94 : vector<8x8xf32>
    %96 = arith.truncf %95 : vector<8x8xf32> to vector<8x8xbf16>
    %cst_30 = arith.constant dense<0.000000e+00> : vector<8x16xf32>
    %97 = tpu.matmul %96, %82, %cst_30 {dimension_numbers = #tpu.dot_dimension_numbers<[1], [0], [0], [1], [0, 0, 1, 1], [], []>} : vector<8x8xbf16>, vector<8x16xbf16>, vector<8x16xf32> -> vector<8x16xf32>
    %c8 = arith.constant 8 : index
    %c0_31 = arith.constant 0 : index
    %98 = vector.load %arg8[%c8, %c0_31] : memref<16x256xf32, #tpu.memory_space<vmem>>, vector<8x16xf32>
    tpu.vector_store %arg8[%c8, %c0_31], %97 {strides = array<i32>} : memref<16x256xf32, #tpu.memory_space<vmem>>, vector<8x16xf32>,
    %99 = vector.extract_strided_slice %78 {offsets = [0, 384], sizes = [8, 16], strides = [1, 1]} : vector<8x768xbf16> to vector<8x16xbf16>
    %100 = vector.extract_strided_slice %78 {offsets = [0, 512], sizes = [8, 16], strides = [1, 1]} : vector<8x768xbf16> to vector<8x16xbf16>
    %101 = vector.extract_strided_slice %78 {offsets = [0, 640], sizes = [8, 16], strides = [1, 1]} : vector<8x768xbf16> to vector<8x16xbf16>
    %cst_32 = arith.constant dense<0.000000e+00> : vector<8x8xf32>
    %102 = tpu.matmul %99, %100, %cst_32 {dimension_numbers = #tpu.dot_dimension_numbers<[1], [1], [0], [0], [0, 0, 1, 0], [], []>} : vector<8x16xbf16>, vector<8x16xbf16>, vector<8x8xf32> -> vector<8x8xf32>
    %103 = vector.broadcast %79 : vector<1x8xf32> to vector<8x8xf32>
    %104 = arith.addf %102, %103 : vector<8x8xf32>
    %cst_33 = arith.constant dense<0xFF800000> : vector<8xf32>
    %105 = vector.multi_reduction <maximumf>, %104, %cst_33 [1] : vector<8x8xf32> to vector<8xf32>
    %106 = vector.shape_cast %105 : vector<8xf32> to vector<8x1xf32>
    %107 = vector.broadcast %106 : vector<8x1xf32> to vector<8x8xf32>
    %108 = arith.subf %104, %107 : vector<8x8xf32>
    %109 = math.exp %108 : vector<8x8xf32>
    %cst_34 = arith.constant dense<0.000000e+00> : vector<8xf32>
    %110 = vector.multi_reduction <add>, %109, %cst_34 [1] : vector<8x8xf32> to vector<8xf32>
    %111 = vector.shape_cast %110 : vector<8xf32> to vector<8x1xf32>
    %112 = tpu.reciprocal %111 {approx = true} : vector<8x1xf32> -> vector<8x1xf32>
    %113 = vector.broadcast %112 : vector<8x1xf32> to vector<8x8xf32>
    %114 = arith.mulf %109, %113 : vector<8x8xf32>
    %115 = arith.truncf %114 : vector<8x8xf32> to vector<8x8xbf16>
    %cst_35 = arith.constant dense<0.000000e+00> : vector<8x16xf32>
    %116 = tpu.matmul %115, %101, %cst_35 {dimension_numbers = #tpu.dot_dimension_numbers<[1], [0], [0], [1], [0, 0, 1, 1], [], []>} : vector<8x8xbf16>, vector<8x16xbf16>, vector<8x16xf32> -> vector<8x16xf32>
    %c8_36 = arith.constant 8 : index
    %c128_37 = arith.constant 128 : index
    %117 = vector.load %arg8[%c8_36, %c128_37] : memref<16x256xf32, #tpu.memory_space<vmem>>, vector<8x16xf32>
    tpu.vector_store %arg8[%c8_36, %c128_37], %116 {strides = array<i32>} : memref<16x256xf32, #tpu.memory_space<vmem>>, vector<8x16xf32>,
    %c0_38 = arith.constant 0 : index
    %c0_39 = arith.constant 0 : index
    %118 = vector.load %arg8[%c0_38, %c0_39] : memref<16x256xf32, #tpu.memory_space<vmem>>, vector<16x256xf32>
    %c0_40 = arith.constant 0 : index
    %c0_41 = arith.constant 0 : index
    %c0_42 = arith.constant 0 : index
    %119 = vector.load %arg3[%c0_40, %c0_41, %c0_42] : memref<2x256x32xbf16, #tpu.memory_space<vmem>>, vector<1x256x32xbf16>
    %120 = vector.shape_cast %119 : vector<1x256x32xbf16> to vector<256x32xbf16>
    %121 = arith.truncf %118 : vector<16x256xf32> to vector<16x256xbf16>
    %cst_43 = arith.constant dense<0.000000e+00> : vector<16x32xf32>
    %122 = tpu.matmul %121, %120, %cst_43 {dimension_numbers = #tpu.dot_dimension_numbers<[1], [0], [0], [1], [0, 0, 1, 1], [], []>} : vector<16x256xbf16>, vector<256x32xbf16>, vector<16x32xf32> -> vector<16x32xf32>
    %123 = vector.extract_strided_slice %0 {offsets = [4, 0], sizes = [1, 32], strides = [1, 1]} : vector<20x768xf32> to vector<1x32xf32>
    %124 = vector.broadcast %123 : vector<1x32xf32> to vector<16x32xf32>
    %125 = arith.addf %122, %124 : vector<16x32xf32>
    %126 = arith.addf %125, %25 : vector<16x32xf32>
    %cst_44 = arith.constant dense<0.000000e+00> : vector<16xf32>
    %127 = vector.multi_reduction <add>, %126, %cst_44 [1] : vector<16x32xf32> to vector<16xf32>
    %128 = vector.shape_cast %127 : vector<16xf32> to vector<16x1xf32>
    %cst_45 = arith.constant 3.200000e+01 : f32
    %129 = vector.broadcast %cst_45 : f32 to vector<16x1xf32>
    %130 = arith.divf %128, %129 : vector<16x1xf32>
    %131 = vector.broadcast %130 : vector<16x1xf32> to vector<16x32xf32>
    %132 = arith.subf %126, %131 : vector<16x32xf32>
    %133 = arith.mulf %132, %132 : vector<16x32xf32>
    %cst_46 = arith.constant dense<0.000000e+00> : vector<16xf32>
    %134 = vector.multi_reduction <add>, %133, %cst_46 [1] : vector<16x32xf32> to vector<16xf32>
    %135 = vector.shape_cast %134 : vector<16xf32> to vector<16x1xf32>
    %cst_47 = arith.constant 3.200000e+01 : f32
    %136 = vector.broadcast %cst_47 : f32 to vector<16x1xf32>
    %137 = arith.divf %135, %136 : vector<16x1xf32>
    %138 = vector.broadcast %130 : vector<16x1xf32> to vector<16x32xf32>
    %139 = arith.subf %126, %138 : vector<16x32xf32>
    %cst_48 = arith.constant 9.99999996E-13 : f32
    %140 = vector.broadcast %cst_48 : f32 to vector<16x1xf32>
    %141 = arith.addf %137, %140 : vector<16x1xf32>
    %142 = math.rsqrt %141 : vector<16x1xf32>
    %143 = vector.broadcast %142 : vector<16x1xf32> to vector<16x32xf32>
    %144 = arith.mulf %139, %143 : vector<16x32xf32>
    %145 = vector.extract_strided_slice %0 {offsets = [5, 0], sizes = [1, 32], strides = [1, 1]} : vector<20x768xf32> to vector<1x32xf32>
    %146 = vector.broadcast %145 : vector<1x32xf32> to vector<16x32xf32>
    %147 = arith.mulf %144, %146 : vector<16x32xf32>
    %148 = vector.extract_strided_slice %0 {offsets = [6, 0], sizes = [1, 32], strides = [1, 1]} : vector<20x768xf32> to vector<1x32xf32>
    %149 = vector.broadcast %148 : vector<1x32xf32> to vector<16x32xf32>
    %150 = arith.addf %147, %149 : vector<16x32xf32>
    %c0_49 = arith.constant 0 : index
    %c0_50 = arith.constant 0 : index
    %c0_51 = arith.constant 0 : index
    %151 = vector.load %arg4[%c0_49, %c0_50, %c0_51] : memref<2x64x256xbf16, #tpu.memory_space<vmem>>, vector<1x64x256xbf16>
    %152 = vector.shape_cast %151 : vector<1x64x256xbf16> to vector<64x256xbf16>
    %153 = vector.extract_strided_slice %152 {offsets = [0, 0], sizes = [32, 64], strides = [1, 1]} : vector<64x256xbf16> to vector<32x64xbf16>
    %154 = arith.truncf %150 : vector<16x32xf32> to vector<16x32xbf16>
    %cst_52 = arith.constant dense<0.000000e+00> : vector<16x64xf32>
    %155 = tpu.matmul %154, %153, %cst_52 {dimension_numbers = #tpu.dot_dimension_numbers<[1], [0], [0], [1], [0, 0, 1, 1], [], []>} : vector<16x32xbf16>, vector<32x64xbf16>, vector<16x64xf32> -> vector<16x64xf32>
    %156 = vector.extract_strided_slice %0 {offsets = [7, 0], sizes = [1, 64], strides = [1, 1]} : vector<20x768xf32> to vector<1x64xf32>
    %157 = vector.broadcast %156 : vector<1x64xf32> to vector<16x64xf32>
    %158 = arith.addf %155, %157 : vector<16x64xf32>
    %cst_53 = arith.constant 5.000000e-01 : f32
    %159 = vector.broadcast %cst_53 : f32 to vector<16x64xf32>
    %160 = arith.mulf %159, %158 : vector<16x64xf32>
    %cst_54 = arith.constant 4.471500e-02 : f32
    %161 = vector.broadcast %cst_54 : f32 to vector<16x64xf32>
    %162 = arith.mulf %161, %158 : vector<16x64xf32>
    %163 = arith.mulf %162, %158 : vector<16x64xf32>
    %164 = arith.mulf %163, %158 : vector<16x64xf32>
    %165 = arith.addf %158, %164 : vector<16x64xf32>
    %cst_55 = arith.constant 0.797884583 : f32
    %166 = vector.broadcast %cst_55 : f32 to vector<16x64xf32>
    %167 = arith.mulf %166, %165 : vector<16x64xf32>
    %168 = math.tanh %167 : vector<16x64xf32>
    %cst_56 = arith.constant 1.000000e+00 : f32
    %169 = vector.broadcast %cst_56 : f32 to vector<16x64xf32>
    %170 = arith.addf %169, %168 : vector<16x64xf32>
    %171 = arith.mulf %160, %170 : vector<16x64xf32>
    %172 = vector.extract_strided_slice %152 {offsets = [0, 128], sizes = [64, 32], strides = [1, 1]} : vector<64x256xbf16> to vector<64x32xbf16>
    %173 = arith.truncf %171 : vector<16x64xf32> to vector<16x64xbf16>
    %cst_57 = arith.constant dense<0.000000e+00> : vector<16x32xf32>
    %174 = tpu.matmul %173, %172, %cst_57 {dimension_numbers = #tpu.dot_dimension_numbers<[1], [0], [0], [1], [0, 0, 1, 1], [], []>} : vector<16x64xbf16>, vector<64x32xbf16>, vector<16x32xf32> -> vector<16x32xf32>
    %175 = vector.extract_strided_slice %0 {offsets = [8, 0], sizes = [1, 32], strides = [1, 1]} : vector<20x768xf32> to vector<1x32xf32>
    %176 = vector.broadcast %175 : vector<1x32xf32> to vector<16x32xf32>
    %177 = arith.addf %174, %176 : vector<16x32xf32>
    %178 = arith.addf %177, %150 : vector<16x32xf32>
    %cst_58 = arith.constant dense<0.000000e+00> : vector<16xf32>
    %179 = vector.multi_reduction <add>, %178, %cst_58 [1] : vector<16x32xf32> to vector<16xf32>
    %180 = vector.shape_cast %179 : vector<16xf32> to vector<16x1xf32>
    %cst_59 = arith.constant 3.200000e+01 : f32
    %181 = vector.broadcast %cst_59 : f32 to vector<16x1xf32>
    %182 = arith.divf %180, %181 : vector<16x1xf32>
    %183 = vector.broadcast %182 : vector<16x1xf32> to vector<16x32xf32>
    %184 = arith.subf %178, %183 : vector<16x32xf32>
    %185 = arith.mulf %184, %184 : vector<16x32xf32>
    %cst_60 = arith.constant dense<0.000000e+00> : vector<16xf32>
    %186 = vector.multi_reduction <add>, %185, %cst_60 [1] : vector<16x32xf32> to vector<16xf32>
    %187 = vector.shape_cast %186 : vector<16xf32> to vector<16x1xf32>
    %cst_61 = arith.constant 3.200000e+01 : f32
    %188 = vector.broadcast %cst_61 : f32 to vector<16x1xf32>
    %189 = arith.divf %187, %188 : vector<16x1xf32>
    %190 = vector.broadcast %182 : vector<16x1xf32> to vector<16x32xf32>
    %191 = arith.subf %178, %190 : vector<16x32xf32>
    %cst_62 = arith.constant 9.99999996E-13 : f32
    %192 = vector.broadcast %cst_62 : f32 to vector<16x1xf32>
    %193 = arith.addf %189, %192 : vector<16x1xf32>
    %194 = math.rsqrt %193 : vector<16x1xf32>
    %195 = vector.broadcast %194 : vector<16x1xf32> to vector<16x32xf32>
    %196 = arith.mulf %191, %195 : vector<16x32xf32>
    %197 = vector.extract_strided_slice %0 {offsets = [9, 0], sizes = [1, 32], strides = [1, 1]} : vector<20x768xf32> to vector<1x32xf32>
    %198 = vector.broadcast %197 : vector<1x32xf32> to vector<16x32xf32>
    %199 = arith.mulf %196, %198 : vector<16x32xf32>
    %200 = vector.extract_strided_slice %0 {offsets = [10, 0], sizes = [1, 32], strides = [1, 1]} : vector<20x768xf32> to vector<1x32xf32>
    %201 = vector.broadcast %200 : vector<1x32xf32> to vector<16x32xf32>
    %202 = arith.addf %199, %201 : vector<16x32xf32>
    %c1 = arith.constant 1 : index
    %c0_63 = arith.constant 0 : index
    %c0_64 = arith.constant 0 : index
    %203 = vector.load %arg2[%c1, %c0_63, %c0_64] : memref<2x32x768xbf16, #tpu.memory_space<vmem>>, vector<1x32x768xbf16>
    %204 = vector.shape_cast %203 : vector<1x32x768xbf16> to vector<32x768xbf16>
    %205 = arith.truncf %202 : vector<16x32xf32> to vector<16x32xbf16>
    %cst_65 = arith.constant dense<0.000000e+00> : vector<16x768xf32>
    %206 = tpu.matmul %205, %204, %cst_65 {dimension_numbers = #tpu.dot_dimension_numbers<[1], [0], [0], [1], [0, 0, 1, 1], [], []>} : vector<16x32xbf16>, vector<32x768xbf16>, vector<16x768xf32> -> vector<16x768xf32>
    %207 = vector.extract_strided_slice %0 {offsets = [1, 0], sizes = [1, 768], strides = [1, 1]} : vector<20x768xf32> to vector<1x768xf32>
    %208 = vector.broadcast %207 : vector<1x768xf32> to vector<16x768xf32>
    %209 = arith.addf %206, %208 : vector<16x768xf32>
    %210 = vector.extract_strided_slice %209 {offsets = [0, 0], sizes = [8, 768], strides = [1, 1]} : vector<16x768xf32> to vector<8x768xf32>
    %211 = arith.truncf %210 : vector<8x768xf32> to vector<8x768xbf16>
    %212 = vector.extract_strided_slice %26 {offsets = [0, 0], sizes = [1, 8], strides = [1, 1]} : vector<2x8xf32> to vector<1x8xf32>
    %213 = vector.extract_strided_slice %211 {offsets = [0, 0], sizes = [8, 16], strides = [1, 1]} : vector<8x768xbf16> to vector<8x16xbf16>
    %214 = vector.extract_strided_slice %211 {offsets = [0, 128], sizes = [8, 16], strides = [1, 1]} : vector<8x768xbf16> to vector<8x16xbf16>
    %215 = vector.extract_strided_slice %211 {offsets = [0, 256], sizes = [8, 16], strides = [1, 1]} : vector<8x768xbf16> to vector<8x16xbf16>
    %cst_66 = arith.constant dense<0.000000e+00> : vector<8x8xf32>
    %216 = tpu.matmul %213, %214, %cst_66 {dimension_numbers = #tpu.dot_dimension_numbers<[1], [1], [0], [0], [0, 0, 1, 0], [], []>} : vector<8x16xbf16>, vector<8x16xbf16>, vector<8x8xf32> -> vector<8x8xf32>
    %217 = vector.broadcast %212 : vector<1x8xf32> to vector<8x8xf32>
    %218 = arith.addf %216, %217 : vector<8x8xf32>
    %cst_67 = arith.constant dense<0xFF800000> : vector<8xf32>
    %219 = vector.multi_reduction <maximumf>, %218, %cst_67 [1] : vector<8x8xf32> to vector<8xf32>
    %220 = vector.shape_cast %219 : vector<8xf32> to vector<8x1xf32>
    %221 = vector.broadcast %220 : vector<8x1xf32> to vector<8x8xf32>
    %222 = arith.subf %218, %221 : vector<8x8xf32>
    %223 = math.exp %222 : vector<8x8xf32>
    %cst_68 = arith.constant dense<0.000000e+00> : vector<8xf32>
    %224 = vector.multi_reduction <add>, %223, %cst_68 [1] : vector<8x8xf32> to vector<8xf32>
    %225 = vector.shape_cast %224 : vector<8xf32> to vector<8x1xf32>
    %226 = tpu.reciprocal %225 {approx = true} : vector<8x1xf32> -> vector<8x1xf32>
    %227 = vector.broadcast %226 : vector<8x1xf32> to vector<8x8xf32>
    %228 = arith.mulf %223, %227 : vector<8x8xf32>
    %229 = arith.truncf %228 : vector<8x8xf32> to vector<8x8xbf16>
    %cst_69 = arith.constant dense<0.000000e+00> : vector<8x16xf32>
    %230 = tpu.matmul %229, %215, %cst_69 {dimension_numbers = #tpu.dot_dimension_numbers<[1], [0], [0], [1], [0, 0, 1, 1], [], []>} : vector<8x8xbf16>, vector<8x16xbf16>, vector<8x16xf32> -> vector<8x16xf32>
    %c0_70 = arith.constant 0 : index
    %c0_71 = arith.constant 0 : index
    %231 = vector.load %arg8[%c0_70, %c0_71] : memref<16x256xf32, #tpu.memory_space<vmem>>, vector<8x16xf32>
    tpu.vector_store %arg8[%c0_70, %c0_71], %230 {strides = array<i32>} : memref<16x256xf32, #tpu.memory_space<vmem>>, vector<8x16xf32>,
    %232 = vector.extract_strided_slice %211 {offsets = [0, 384], sizes = [8, 16], strides = [1, 1]} : vector<8x768xbf16> to vector<8x16xbf16>
    %233 = vector.extract_strided_slice %211 {offsets = [0, 512], sizes = [8, 16], strides = [1, 1]} : vector<8x768xbf16> to vector<8x16xbf16>
    %234 = vector.extract_strided_slice %211 {offsets = [0, 640], sizes = [8, 16], strides = [1, 1]} : vector<8x768xbf16> to vector<8x16xbf16>
    %cst_72 = arith.constant dense<0.000000e+00> : vector<8x8xf32>
    %235 = tpu.matmul %232, %233, %cst_72 {dimension_numbers = #tpu.dot_dimension_numbers<[1], [1], [0], [0], [0, 0, 1, 0], [], []>} : vector<8x16xbf16>, vector<8x16xbf16>, vector<8x8xf32> -> vector<8x8xf32>
    %236 = vector.broadcast %212 : vector<1x8xf32> to vector<8x8xf32>
    %237 = arith.addf %235, %236 : vector<8x8xf32>
    %cst_73 = arith.constant dense<0xFF800000> : vector<8xf32>
    %238 = vector.multi_reduction <maximumf>, %237, %cst_73 [1] : vector<8x8xf32> to vector<8xf32>
    %239 = vector.shape_cast %238 : vector<8xf32> to vector<8x1xf32>
    %240 = vector.broadcast %239 : vector<8x1xf32> to vector<8x8xf32>
    %241 = arith.subf %237, %240 : vector<8x8xf32>
    %242 = math.exp %241 : vector<8x8xf32>
    %cst_74 = arith.constant dense<0.000000e+00> : vector<8xf32>
    %243 = vector.multi_reduction <add>, %242, %cst_74 [1] : vector<8x8xf32> to vector<8xf32>
    %244 = vector.shape_cast %243 : vector<8xf32> to vector<8x1xf32>
    %245 = tpu.reciprocal %244 {approx = true} : vector<8x1xf32> -> vector<8x1xf32>
    %246 = vector.broadcast %245 : vector<8x1xf32> to vector<8x8xf32>
    %247 = arith.mulf %242, %246 : vector<8x8xf32>
    %248 = arith.truncf %247 : vector<8x8xf32> to vector<8x8xbf16>
    %cst_75 = arith.constant dense<0.000000e+00> : vector<8x16xf32>
    %249 = tpu.matmul %248, %234, %cst_75 {dimension_numbers = #tpu.dot_dimension_numbers<[1], [0], [0], [1], [0, 0, 1, 1], [], []>} : vector<8x8xbf16>, vector<8x16xbf16>, vector<8x16xf32> -> vector<8x16xf32>
    %c0_76 = arith.constant 0 : index
    %c128_77 = arith.constant 128 : index
    %250 = vector.load %arg8[%c0_76, %c128_77] : memref<16x256xf32, #tpu.memory_space<vmem>>, vector<8x16xf32>
    tpu.vector_store %arg8[%c0_76, %c128_77], %249 {strides = array<i32>} : memref<16x256xf32, #tpu.memory_space<vmem>>, vector<8x16xf32>,
    %251 = vector.extract_strided_slice %209 {offsets = [8, 0], sizes = [8, 768], strides = [1, 1]} : vector<16x768xf32> to vector<8x768xf32>
    %252 = arith.truncf %251 : vector<8x768xf32> to vector<8x768xbf16>
    %253 = vector.extract_strided_slice %26 {offsets = [1, 0], sizes = [1, 8], strides = [1, 1]} : vector<2x8xf32> to vector<1x8xf32>
    %254 = vector.extract_strided_slice %252 {offsets = [0, 0], sizes = [8, 16], strides = [1, 1]} : vector<8x768xbf16> to vector<8x16xbf16>
    %255 = vector.extract_strided_slice %252 {offsets = [0, 128], sizes = [8, 16], strides = [1, 1]} : vector<8x768xbf16> to vector<8x16xbf16>
    %256 = vector.extract_strided_slice %252 {offsets = [0, 256], sizes = [8, 16], strides = [1, 1]} : vector<8x768xbf16> to vector<8x16xbf16>
    %cst_78 = arith.constant dense<0.000000e+00> : vector<8x8xf32>
    %257 = tpu.matmul %254, %255, %cst_78 {dimension_numbers = #tpu.dot_dimension_numbers<[1], [1], [0], [0], [0, 0, 1, 0], [], []>} : vector<8x16xbf16>, vector<8x16xbf16>, vector<8x8xf32> -> vector<8x8xf32>
    %258 = vector.broadcast %253 : vector<1x8xf32> to vector<8x8xf32>
    %259 = arith.addf %257, %258 : vector<8x8xf32>
    %cst_79 = arith.constant dense<0xFF800000> : vector<8xf32>
    %260 = vector.multi_reduction <maximumf>, %259, %cst_79 [1] : vector<8x8xf32> to vector<8xf32>
    %261 = vector.shape_cast %260 : vector<8xf32> to vector<8x1xf32>
    %262 = vector.broadcast %261 : vector<8x1xf32> to vector<8x8xf32>
    %263 = arith.subf %259, %262 : vector<8x8xf32>
    %264 = math.exp %263 : vector<8x8xf32>
    %cst_80 = arith.constant dense<0.000000e+00> : vector<8xf32>
    %265 = vector.multi_reduction <add>, %264, %cst_80 [1] : vector<8x8xf32> to vector<8xf32>
    %266 = vector.shape_cast %265 : vector<8xf32> to vector<8x1xf32>
    %267 = tpu.reciprocal %266 {approx = true} : vector<8x1xf32> -> vector<8x1xf32>
    %268 = vector.broadcast %267 : vector<8x1xf32> to vector<8x8xf32>
    %269 = arith.mulf %264, %268 : vector<8x8xf32>
    %270 = arith.truncf %269 : vector<8x8xf32> to vector<8x8xbf16>
    %cst_81 = arith.constant dense<0.000000e+00> : vector<8x16xf32>
    %271 = tpu.matmul %270, %256, %cst_81 {dimension_numbers = #tpu.dot_dimension_numbers<[1], [0], [0], [1], [0, 0, 1, 1], [], []>} : vector<8x8xbf16>, vector<8x16xbf16>, vector<8x16xf32> -> vector<8x16xf32>
    %c8_82 = arith.constant 8 : index
    %c0_83 = arith.constant 0 : index
    %272 = vector.load %arg8[%c8_82, %c0_83] : memref<16x256xf32, #tpu.memory_space<vmem>>, vector<8x16xf32>
    tpu.vector_store %arg8[%c8_82, %c0_83], %271 {strides = array<i32>} : memref<16x256xf32, #tpu.memory_space<vmem>>, vector<8x16xf32>,
    %273 = vector.extract_strided_slice %252 {offsets = [0, 384], sizes = [8, 16], strides = [1, 1]} : vector<8x768xbf16> to vector<8x16xbf16>
    %274 = vector.extract_strided_slice %252 {offsets = [0, 512], sizes = [8, 16], strides = [1, 1]} : vector<8x768xbf16> to vector<8x16xbf16>
    %275 = vector.extract_strided_slice %252 {offsets = [0, 640], sizes = [8, 16], strides = [1, 1]} : vector<8x768xbf16> to vector<8x16xbf16>
    %cst_84 = arith.constant dense<0.000000e+00> : vector<8x8xf32>
    %276 = tpu.matmul %273, %274, %cst_84 {dimension_numbers = #tpu.dot_dimension_numbers<[1], [1], [0], [0], [0, 0, 1, 0], [], []>} : vector<8x16xbf16>, vector<8x16xbf16>, vector<8x8xf32> -> vector<8x8xf32>
    %277 = vector.broadcast %253 : vector<1x8xf32> to vector<8x8xf32>
    %278 = arith.addf %276, %277 : vector<8x8xf32>
    %cst_85 = arith.constant dense<0xFF800000> : vector<8xf32>
    %279 = vector.multi_reduction <maximumf>, %278, %cst_85 [1] : vector<8x8xf32> to vector<8xf32>
    %280 = vector.shape_cast %279 : vector<8xf32> to vector<8x1xf32>
    %281 = vector.broadcast %280 : vector<8x1xf32> to vector<8x8xf32>
    %282 = arith.subf %278, %281 : vector<8x8xf32>
    %283 = math.exp %282 : vector<8x8xf32>
    %cst_86 = arith.constant dense<0.000000e+00> : vector<8xf32>
    %284 = vector.multi_reduction <add>, %283, %cst_86 [1] : vector<8x8xf32> to vector<8xf32>
    %285 = vector.shape_cast %284 : vector<8xf32> to vector<8x1xf32>
    %286 = tpu.reciprocal %285 {approx = true} : vector<8x1xf32> -> vector<8x1xf32>
    %287 = vector.broadcast %286 : vector<8x1xf32> to vector<8x8xf32>
    %288 = arith.mulf %283, %287 : vector<8x8xf32>
    %289 = arith.truncf %288 : vector<8x8xf32> to vector<8x8xbf16>
    %cst_87 = arith.constant dense<0.000000e+00> : vector<8x16xf32>
    %290 = tpu.matmul %289, %275, %cst_87 {dimension_numbers = #tpu.dot_dimension_numbers<[1], [0], [0], [1], [0, 0, 1, 1], [], []>} : vector<8x8xbf16>, vector<8x16xbf16>, vector<8x16xf32> -> vector<8x16xf32>
    %c8_88 = arith.constant 8 : index
    %c128_89 = arith.constant 128 : index
    %291 = vector.load %arg8[%c8_88, %c128_89] : memref<16x256xf32, #tpu.memory_space<vmem>>, vector<8x16xf32>
    tpu.vector_store %arg8[%c8_88, %c128_89], %290 {strides = array<i32>} : memref<16x256xf32, #tpu.memory_space<vmem>>, vector<8x16xf32>,
    %c0_90 = arith.constant 0 : index
    %c0_91 = arith.constant 0 : index
    %292 = vector.load %arg8[%c0_90, %c0_91] : memref<16x256xf32, #tpu.memory_space<vmem>>, vector<16x256xf32>
    %c1_92 = arith.constant 1 : index
    %c0_93 = arith.constant 0 : index
    %c0_94 = arith.constant 0 : index
    %293 = vector.load %arg3[%c1_92, %c0_93, %c0_94] : memref<2x256x32xbf16, #tpu.memory_space<vmem>>, vector<1x256x32xbf16>
    %294 = vector.shape_cast %293 : vector<1x256x32xbf16> to vector<256x32xbf16>
    %295 = arith.truncf %292 : vector<16x256xf32> to vector<16x256xbf16>
    %cst_95 = arith.constant dense<0.000000e+00> : vector<16x32xf32>
    %296 = tpu.matmul %295, %294, %cst_95 {dimension_numbers = #tpu.dot_dimension_numbers<[1], [0], [0], [1], [0, 0, 1, 1], [], []>} : vector<16x256xbf16>, vector<256x32xbf16>, vector<16x32xf32> -> vector<16x32xf32>
    %297 = vector.extract_strided_slice %0 {offsets = [11, 0], sizes = [1, 32], strides = [1, 1]} : vector<20x768xf32> to vector<1x32xf32>
    %298 = vector.broadcast %297 : vector<1x32xf32> to vector<16x32xf32>
    %299 = arith.addf %296, %298 : vector<16x32xf32>
    %300 = arith.addf %299, %202 : vector<16x32xf32>
    %cst_96 = arith.constant dense<0.000000e+00> : vector<16xf32>
    %301 = vector.multi_reduction <add>, %300, %cst_96 [1] : vector<16x32xf32> to vector<16xf32>
    %302 = vector.shape_cast %301 : vector<16xf32> to vector<16x1xf32>
    %cst_97 = arith.constant 3.200000e+01 : f32
    %303 = vector.broadcast %cst_97 : f32 to vector<16x1xf32>
    %304 = arith.divf %302, %303 : vector<16x1xf32>
    %305 = vector.broadcast %304 : vector<16x1xf32> to vector<16x32xf32>
    %306 = arith.subf %300, %305 : vector<16x32xf32>
    %307 = arith.mulf %306, %306 : vector<16x32xf32>
    %cst_98 = arith.constant dense<0.000000e+00> : vector<16xf32>
    %308 = vector.multi_reduction <add>, %307, %cst_98 [1] : vector<16x32xf32> to vector<16xf32>
    %309 = vector.shape_cast %308 : vector<16xf32> to vector<16x1xf32>
    %cst_99 = arith.constant 3.200000e+01 : f32
    %310 = vector.broadcast %cst_99 : f32 to vector<16x1xf32>
    %311 = arith.divf %309, %310 : vector<16x1xf32>
    %312 = vector.broadcast %304 : vector<16x1xf32> to vector<16x32xf32>
    %313 = arith.subf %300, %312 : vector<16x32xf32>
    %cst_100 = arith.constant 9.99999996E-13 : f32
    %314 = vector.broadcast %cst_100 : f32 to vector<16x1xf32>
    %315 = arith.addf %311, %314 : vector<16x1xf32>
    %316 = math.rsqrt %315 : vector<16x1xf32>
    %317 = vector.broadcast %316 : vector<16x1xf32> to vector<16x32xf32>
    %318 = arith.mulf %313, %317 : vector<16x32xf32>
    %319 = vector.extract_strided_slice %0 {offsets = [12, 0], sizes = [1, 32], strides = [1, 1]} : vector<20x768xf32> to vector<1x32xf32>
    %320 = vector.broadcast %319 : vector<1x32xf32> to vector<16x32xf32>
    %321 = arith.mulf %318, %320 : vector<16x32xf32>
    %322 = vector.extract_strided_slice %0 {offsets = [13, 0], sizes = [1, 32], strides = [1, 1]} : vector<20x768xf32> to vector<1x32xf32>
    %323 = vector.broadcast %322 : vector<1x32xf32> to vector<16x32xf32>
    %324 = arith.addf %321, %323 : vector<16x32xf32>
    %c1_101 = arith.constant 1 : index
    %c0_102 = arith.constant 0 : index
    %c0_103 = arith.constant 0 : index
    %325 = vector.load %arg4[%c1_101, %c0_102, %c0_103] : memref<2x64x256xbf16, #tpu.memory_space<vmem>>, vector<1x64x256xbf16>
    %326 = vector.shape_cast %325 : vector<1x64x256xbf16> to vector<64x256xbf16>
    %327 = vector.extract_strided_slice %326 {offsets = [0, 0], sizes = [32, 64], strides = [1, 1]} : vector<64x256xbf16> to vector<32x64xbf16>
    %328 = arith.truncf %324 : vector<16x32xf32> to vector<16x32xbf16>
    %cst_104 = arith.constant dense<0.000000e+00> : vector<16x64xf32>
    %329 = tpu.matmul %328, %327, %cst_104 {dimension_numbers = #tpu.dot_dimension_numbers<[1], [0], [0], [1], [0, 0, 1, 1], [], []>} : vector<16x32xbf16>, vector<32x64xbf16>, vector<16x64xf32> -> vector<16x64xf32>
    %330 = vector.extract_strided_slice %0 {offsets = [14, 0], sizes = [1, 64], strides = [1, 1]} : vector<20x768xf32> to vector<1x64xf32>
    %331 = vector.broadcast %330 : vector<1x64xf32> to vector<16x64xf32>
    %332 = arith.addf %329, %331 : vector<16x64xf32>
    %cst_105 = arith.constant 5.000000e-01 : f32
    %333 = vector.broadcast %cst_105 : f32 to vector<16x64xf32>
    %334 = arith.mulf %333, %332 : vector<16x64xf32>
    %cst_106 = arith.constant 4.471500e-02 : f32
    %335 = vector.broadcast %cst_106 : f32 to vector<16x64xf32>
    %336 = arith.mulf %335, %332 : vector<16x64xf32>
    %337 = arith.mulf %336, %332 : vector<16x64xf32>
    %338 = arith.mulf %337, %332 : vector<16x64xf32>
    %339 = arith.addf %332, %338 : vector<16x64xf32>
    %cst_107 = arith.constant 0.797884583 : f32
    %340 = vector.broadcast %cst_107 : f32 to vector<16x64xf32>
    %341 = arith.mulf %340, %339 : vector<16x64xf32>
    %342 = math.tanh %341 : vector<16x64xf32>
    %cst_108 = arith.constant 1.000000e+00 : f32
    %343 = vector.broadcast %cst_108 : f32 to vector<16x64xf32>
    %344 = arith.addf %343, %342 : vector<16x64xf32>
    %345 = arith.mulf %334, %344 : vector<16x64xf32>
    %346 = vector.extract_strided_slice %326 {offsets = [0, 128], sizes = [64, 32], strides = [1, 1]} : vector<64x256xbf16> to vector<64x32xbf16>
    %347 = arith.truncf %345 : vector<16x64xf32> to vector<16x64xbf16>
    %cst_109 = arith.constant dense<0.000000e+00> : vector<16x32xf32>
    %348 = tpu.matmul %347, %346, %cst_109 {dimension_numbers = #tpu.dot_dimension_numbers<[1], [0], [0], [1], [0, 0, 1, 1], [], []>} : vector<16x64xbf16>, vector<64x32xbf16>, vector<16x32xf32> -> vector<16x32xf32>
    %349 = vector.extract_strided_slice %0 {offsets = [15, 0], sizes = [1, 32], strides = [1, 1]} : vector<20x768xf32> to vector<1x32xf32>
    %350 = vector.broadcast %349 : vector<1x32xf32> to vector<16x32xf32>
    %351 = arith.addf %348, %350 : vector<16x32xf32>
    %352 = arith.addf %351, %324 : vector<16x32xf32>
    %cst_110 = arith.constant dense<0.000000e+00> : vector<16xf32>
    %353 = vector.multi_reduction <add>, %352, %cst_110 [1] : vector<16x32xf32> to vector<16xf32>
    %354 = vector.shape_cast %353 : vector<16xf32> to vector<16x1xf32>
    %cst_111 = arith.constant 3.200000e+01 : f32
    %355 = vector.broadcast %cst_111 : f32 to vector<16x1xf32>
    %356 = arith.divf %354, %355 : vector<16x1xf32>
    %357 = vector.broadcast %356 : vector<16x1xf32> to vector<16x32xf32>
    %358 = arith.subf %352, %357 : vector<16x32xf32>
    %359 = arith.mulf %358, %358 : vector<16x32xf32>
    %cst_112 = arith.constant dense<0.000000e+00> : vector<16xf32>
    %360 = vector.multi_reduction <add>, %359, %cst_112 [1] : vector<16x32xf32> to vector<16xf32>
    %361 = vector.shape_cast %360 : vector<16xf32> to vector<16x1xf32>
    %cst_113 = arith.constant 3.200000e+01 : f32
    %362 = vector.broadcast %cst_113 : f32 to vector<16x1xf32>
    %363 = arith.divf %361, %362 : vector<16x1xf32>
    %364 = vector.broadcast %356 : vector<16x1xf32> to vector<16x32xf32>
    %365 = arith.subf %352, %364 : vector<16x32xf32>
    %cst_114 = arith.constant 9.99999996E-13 : f32
    %366 = vector.broadcast %cst_114 : f32 to vector<16x1xf32>
    %367 = arith.addf %363, %366 : vector<16x1xf32>
    %368 = math.rsqrt %367 : vector<16x1xf32>
    %369 = vector.broadcast %368 : vector<16x1xf32> to vector<16x32xf32>
    %370 = arith.mulf %365, %369 : vector<16x32xf32>
    %371 = vector.extract_strided_slice %0 {offsets = [16, 0], sizes = [1, 32], strides = [1, 1]} : vector<20x768xf32> to vector<1x32xf32>
    %372 = vector.broadcast %371 : vector<1x32xf32> to vector<16x32xf32>
    %373 = arith.mulf %370, %372 : vector<16x32xf32>
    %374 = vector.extract_strided_slice %0 {offsets = [17, 0], sizes = [1, 32], strides = [1, 1]} : vector<20x768xf32> to vector<1x32xf32>
    %375 = vector.broadcast %374 : vector<1x32xf32> to vector<16x32xf32>
    %376 = arith.addf %373, %375 : vector<16x32xf32>
    %c0_115 = arith.constant 0 : index
    %c0_116 = arith.constant 0 : index
    %377 = vector.load %arg5[%c0_115, %c0_116] : memref<32x256xbf16, #tpu.memory_space<vmem>>, vector<32x256xbf16>
    %378 = vector.shape_cast %376 : vector<16x32xf32> to vector<2x8x32xf32>
    %379 = vector.extract_strided_slice %378 {offsets = [0, 0, 0], sizes = [2, 1, 32], strides = [1, 1, 1]} : vector<2x8x32xf32> to vector<2x1x32xf32>
    %380 = vector.shape_cast %379 : vector<2x1x32xf32> to vector<2x32xf32>
    %381 = vector.extract_strided_slice %377 {offsets = [0, 0], sizes = [32, 32], strides = [1, 1]} : vector<32x256xbf16> to vector<32x32xbf16>
    %382 = arith.truncf %380 : vector<2x32xf32> to vector<2x32xbf16>
    %cst_117 = arith.constant dense<0.000000e+00> : vector<2x32xf32>
    %383 = tpu.matmul %382, %381, %cst_117 {dimension_numbers = #tpu.dot_dimension_numbers<[1], [0], [0], [1], [0, 0, 1, 1], [], []>} : vector<2x32xbf16>, vector<32x32xbf16>, vector<2x32xf32> -> vector<2x32xf32>
    %384 = vector.extract_strided_slice %0 {offsets = [18, 0], sizes = [1, 32], strides = [1, 1]} : vector<20x768xf32> to vector<1x32xf32>
    %385 = vector.broadcast %384 : vector<1x32xf32> to vector<2x32xf32>
    %386 = arith.addf %383, %385 : vector<2x32xf32>
    %387 = math.tanh %386 : vector<2x32xf32>
    %388 = vector.extract_strided_slice %377 {offsets = [0, 128], sizes = [32, 128], strides = [1, 1]} : vector<32x256xbf16> to vector<32x128xbf16>
    %389 = arith.truncf %387 : vector<2x32xf32> to vector<2x32xbf16>
    %cst_118 = arith.constant dense<0.000000e+00> : vector<2x128xf32>
    %390 = tpu.matmul %389, %388, %cst_118 {dimension_numbers = #tpu.dot_dimension_numbers<[1], [0], [0], [1], [0, 0, 1, 1], [], []>} : vector<2x32xbf16>, vector<32x128xbf16>, vector<2x128xf32> -> vector<2x128xf32>
    %391 = vector.extract_strided_slice %0 {offsets = [19, 0], sizes = [1, 128], strides = [1, 1]} : vector<20x768xf32> to vector<1x128xf32>
    %392 = vector.broadcast %391 : vector<1x128xf32> to vector<2x128xf32>
    %393 = arith.addf %390, %392 : vector<2x128xf32>
    %c0_119 = arith.constant 0 : index
    %c0_120 = arith.constant 0 : index
    %394 = vector.load %arg7[%c0_119, %c0_120] : memref<2x128xf32, #tpu.memory_space<vmem>>, vector<2x128xf32>
    tpu.vector_store %arg7[%c0_119, %c0_120], %393 {strides = array<i32>} : memref<2x128xf32, #tpu.memory_space<vmem>>, vector<2x128xf32>,
    return
  }
}

</mosaic_0001>

<llo_original>
// kernel: bert_classifier_forward.1
$region0: #{bert_classifier_forward.1}
  #allocation0 [shape = 'u32[]', space=smem, size = 0x4, offset = 0x4, fixed_abs, tag = 'smem constant byte address 0x4 - core index']
  #allocation1 [shape = 'u32[144,128]{1,0:T(1,128)}', space=vmem, size = 0x12000, scoped, tag = 'internal scratch']
  #allocation2 [shape = 'f32[16,256]{1,0:T(8,128)}', space=vmem, size = 0x4000, scoped, tag = 'scratch operand']
  %s0 = inlined_call_operand.vmem [shape: f32[16,32], index: 0, kind: input, shape index: {}]
  %s1 = inlined_call_operand.vmem [shape: f32[2,8], index: 1, kind: input, shape index: {}]
  %s2 = inlined_call_operand.vmem [shape: bf16[2,32,768], index: 2, kind: input, shape index: {}]
  %s3 = inlined_call_operand.vmem [shape: bf16[2,256,32], index: 3, kind: input, shape index: {}]
  %s4 = inlined_call_operand.vmem [shape: bf16[2,64,256], index: 4, kind: input, shape index: {}]
  %s5 = inlined_call_operand.vmem [shape: bf16[32,256], index: 5, kind: input, shape index: {}]
  %s6 = inlined_call_operand.vmem [shape: f32[20,768], index: 6, kind: input, shape index: {}]
  %s7 = inlined_call_operand.hbm [shape: f32[2,128], index: 7, kind: output, shape index: {}]
  %s8 = sld [smem:[#allocation0]]
  $region38: #{bert_classifier_forward.1} parent=0
    _
  %s10 = ssub.s32 1, %s8
  %s11 = scalar_select 0, %s10, %s8
  $region1: #{bert_classifier_forward.1} parent=0
    #allocation3 [shape = 'u8[1024]{0}', space=vmem, size = 0x400, scoped, tag = 'output window, operand 0, single buffered']
    #allocation4 [shape = 's32[1]{0}', space=sflag, size = 0x4, scoped, tag = 'scoped memory for bert_classifier_forward.1']
    %12 = vsyncpa [#allocation4], 0
    // Predicated region
    $region2: #{bert_classifier_forward.1} parent=1 // pred_check
      _
    $region3: #{bert_classifier_forward.1} parent=1 // pred_check_branch
      %14 = sbr.rel (0) target = $region5
    $region4: #{bert_classifier_forward.1} parent=1 // pred_region
      _
    $region5: #{bert_classifier_forward.1} parent=1 // pred_fallthru
      _
    // Predicated region
    $region6: #{bert_classifier_forward.1} parent=1 // pred_check
      _
    $region7: #{bert_classifier_forward.1} parent=1 // pred_check_branch
      %16 = sbr.rel (0) target = $region9
    $region8: #{bert_classifier_forward.1} parent=1 // pred_region
      _
    $region9: #{bert_classifier_forward.1} parent=1 // pred_fallthru
      _
    // Predicated region
    $region10: #{bert_classifier_forward.1} parent=1 // pred_check
      _
    $region11: #{bert_classifier_forward.1} parent=1 // pred_check_branch
      %18 = sbr.rel (0) target = $region13
    $region12: #{bert_classifier_forward.1} parent=1 // pred_region
      _
    $region13: #{bert_classifier_forward.1} parent=1 // pred_fallthru
      _
    // Predicated region
    $region14: #{bert_classifier_forward.1} parent=1 // pred_check
      _
    $region15: #{bert_classifier_forward.1} parent=1 // pred_check_branch
      %20 = sbr.rel (0) target = $region17
    $region16: #{bert_classifier_forward.1} parent=1 // pred_region
      _
    $region17: #{bert_classifier_forward.1} parent=1 // pred_fallthru
      _
    // Predicated region
    $region18: #{bert_classifier_forward.1} parent=1 // pred_check
      _
    $region19: #{bert_classifier_forward.1} parent=1 // pred_check_branch
      %22 = sbr.rel (0) target = $region21
    $region20: #{bert_classifier_forward.1} parent=1 // pred_region
      _
    $region21: #{bert_classifier_forward.1} parent=1 // pred_fallthru
      _
    // Predicated region
    $region22: #{bert_classifier_forward.1} parent=1 // pred_check
      _
    $region23: #{bert_classifier_forward.1} parent=1 // pred_check_branch
      %24 = sbr.rel (0) target = $region25
    $region24: #{bert_classifier_forward.1} parent=1 // pred_region
      _
    $region25: #{bert_classifier_forward.1} parent=1 // pred_fallthru
      _
    // Predicated region
    $region26: #{bert_classifier_forward.1} parent=1 // pred_check
      _
    $region27: #{bert_classifier_forward.1} parent=1 // pred_check_branch
      %26 = sbr.rel (0) target = $region29
    $region28: #{bert_classifier_forward.1} parent=1 // pred_region
      _
    $region29: #{bert_classifier_forward.1} parent=1 // pred_fallthru
      _
    %v28 = vld [vmem:[%s6] sm:$0xff]
    %v29 = vld [vmem:[%s6 + $0x8] sm:$0xff]
    %v30 = vld [vmem:[%s6 + $0x10] sm:$0xff]
    %v31 = vld [vmem:[%s6 + $0x18] sm:$0xff]
    %v32 = vld [vmem:[%s6 + $0x20] sm:$0xff]
    %v33 = vld [vmem:[%s6 + $0x28] sm:$0xff]
    %v34 = vld [vmem:[%s6 + $0x30] sm:$0xff]
    %v35 = vld [vmem:[%s6 + $0x60] sm:$0xf]
    %v36 = vld [vmem:[%s0] sm:$0xff]
    %v37 = vld [vmem:[%s0 + $0x8] sm:$0xff]
    %vm38 = vcmask 261120
    %v39 = vsel %vm38, %v36, 0.0
    %40 = vadd.xlane.f32.xlu0 %v39
    %v41 = vpop.xlane.xlu0 %40
    %v42 = vsel %vm38, %v37, 0.0
    %43 = vadd.xlane.f32.xlu0 %v42
    %v44 = vpop.xlane.xlu0 %43
    %v45 = vrcp.pop 32.0
    %v46 = vmul.f32 %v41, %v45
    %v47 = vmul.f32 %v44, %v45
    %v48 = vsub.f32 %v36, %v46
    %v49 = vsub.f32 %v37, %v47
    %v50 = vmul.f32 %v48, %v48
    %v51 = vmul.f32 %v49, %v49
    %v52 = vsel %vm38, %v50, 0.0
    %53 = vadd.xlane.f32.xlu0 %v52
    %v54 = vpop.xlane.xlu0 %53
    %v55 = vsel %vm38, %v51, 0.0
    %56 = vadd.xlane.f32.xlu0 %v55
    %v57 = vpop.xlane.xlu0 %56
    %v58 = vmul.f32 %v54, %v45
    %v59 = vmul.f32 %v57, %v45
    %v60 = vadd.f32 %v58, 1e-12
    %v61 = vadd.f32 %v59, 1e-12
    %v62 = vrsqrt.pop %v60
    %v63 = vrsqrt.pop %v61
    %v64 = vmul.f32 %v48, %v62
    %v65 = vmul.f32 %v49, %v63
    %v66 = vlaneseq
    %v67 = vshrl.u32 %v66, 7
    %v68 = vsub.s32 2, %v67
    %v69 = vrot.slane %v28, %v68
    %v70 = vmul.f32 %v64, %v69
    %v71 = vmul.f32 %v65, %v69
    %v72 = vlaneseq
    %v73 = vshrl.u32 %v72, 7
    %v74 = vsub.s32 3, %v73
    %v75 = vrot.slane %v28, %v74
    %v76 = vadd.f32 %v70, %v75
    %v77 = vadd.f32 %v71, %v75
    %v78 = vld [vmem:[%s1] sm:$0x3]
    %79 = vst [vmem:[#allocation2] sm:$0xff] 0.0
    %80 = vst [vmem:[#allocation2 + $0x8] sm:$0xff] 0.0
    %81 = vst [vmem:[#allocation2 + $0x10] sm:$0xff] 0.0
    %82 = vst [vmem:[#allocation2 + $0x18] sm:$0xff] 0.0
    %v83 = vld [vmem:[%s2] sm:$0xff]
    %v84 = vld [vmem:[%s2 + $0x8] sm:$0xff]
    %v85 = vld [vmem:[%s2 + $0x10] sm:$0xff]
    %v86 = vld [vmem:[%s2 + $0x18] sm:$0xff]
    %v87 = vld [vmem:[%s2 + $0x20] sm:$0xff]
    %v88 = vld [vmem:[%s2 + $0x28] sm:$0xff]
    %v89 = vld [vmem:[%s2 + $0x30] sm:$0xff]
    %v90 = vld [vmem:[%s2 + $0x38] sm:$0xff]
    %v91 = vld [vmem:[%s2 + $0x40] sm:$0xff]
    %v92 = vld [vmem:[%s2 + $0x48] sm:$0xff]
    %v93 = vld [vmem:[%s2 + $0x50] sm:$0xff]
    %v94 = vld [vmem:[%s2 + $0x58] sm:$0xff]
    %v95 = vpack.c.bf16 %v77, %v76
    %v96 = vlaneseq
    %v97 = vshrl.u32 %v96, 7
    %v98 = vsub.s32 0, %v97
    %v99 = vrot.slane %v28, %v98
    %v100 = vlaneseq
    %v101 = vshrl.u32 %v100, 7
    %v102 = vsub.s32 0, %v101
    %v103 = vrot.slane %v29, %v102
    %v104 = vlaneseq
    %v105 = vshrl.u32 %v104, 7
    %v106 = vsub.s32 0, %v105
    %v107 = vrot.slane %v30, %v106
    %v108 = vlaneseq
    %v109 = vshrl.u32 %v108, 7
    %v110 = vsub.s32 0, %v109
    %v111 = vrot.slane %v31, %v110
    %v112 = vlaneseq
    %v113 = vshrl.u32 %v112, 7
    %v114 = vsub.s32 0, %v113
    %v115 = vrot.slane %v32, %v114
    %v116 = vlaneseq
    %v117 = vshrl.u32 %v116, 7
    %v118 = vsub.s32 0, %v117
    %v119 = vrot.slane %v33, %v118
    %v132 = vunpack.c.l.b16 %v83
    %v133 = vunpack.c.h.b16 %v83
    %v134 = vunpack.c.l.b16 %v84
    %v135 = vunpack.c.h.b16 %v84
    %v136 = vunpack.c.l.b16 %v85
    %v137 = vunpack.c.h.b16 %v85
    %v138 = vunpack.c.l.b16 %v86
    %v139 = vunpack.c.h.b16 %v86
    %v140 = vunpack.c.l.b16 %v87
    %v141 = vunpack.c.h.b16 %v87
    %v142 = vunpack.c.l.b16 %v88
    %v143 = vunpack.c.h.b16 %v88
    %v144 = vunpack.c.l.b16 %v89
    %v145 = vunpack.c.h.b16 %v89
    %v146 = vunpack.c.l.b16 %v90
    %v147 = vunpack.c.h.b16 %v90
    %v148 = vunpack.c.l.b16 %v91
    %v149 = vunpack.c.h.b16 %v91
    %v150 = vunpack.c.l.b16 %v92
    %v151 = vunpack.c.h.b16 %v92
    %v152 = vunpack.c.l.b16 %v93
    %v153 = vunpack.c.h.b16 %v93
    %v154 = vunpack.c.l.b16 %v94
    %v155 = vunpack.c.h.b16 %v94
    %v156 = vpack.c.b16 %v138, %v132
    %v157 = vpack.c.b16 %v139, %v133
    %v158 = vpack.c.b16 %v140, %v134
    %v159 = vpack.c.b16 %v141, %v135
    %v160 = vpack.c.b16 %v142, %v136
    %v161 = vpack.c.b16 %v143, %v137
    %v162 = vpack.c.b16 %v150, %v144
    %v163 = vpack.c.b16 %v151, %v145
    %v164 = vpack.c.b16 %v152, %v146
    %v165 = vpack.c.b16 %v153, %v147
    %v166 = vpack.c.b16 %v154, %v148
    %v167 = vpack.c.b16 %v155, %v149
    %v181 = vsel %vm38, %v95, 0
    %183 = vmatprep.subr.bf16.mxu0 %v157
    %184 = vmatpush1.bf16.msra.mxu0 %v156
    %185 = vmatprep.subr.bf16.mxu0 %v163
    %186 = vmatpush1.bf16.msra.mxu0 %v162
    %187 = vmatprep.subr.bf16.mxu0 0
    %188 = vmatpush1.bf16.msra.mxu0 0
    %189 = vmatprep.subr.bf16.mxu0 0
    %190 = vmatpush1.bf16.msra.mxu0 0
    %191 = vmatprep.subr.bf16.mxu0 0
    %192 = vmatpush1.bf16.msra.mxu0 0
    %193 = vmatprep.subr.bf16.mxu0 0
    %194 = vmatpush1.bf16.msra.mxu0 0
    %195 = vmatprep.subr.bf16.mxu0 0
    %196 = vmatpush1.bf16.msra.mxu0 0
    %197 = vmatprep.subr.bf16.mxu0 0
    %198 = vmatpush1.bf16.msra.mxu0 0
    %199 = vmatprep.subr.bf16.mxu0 0
    %200 = vmatpush1.bf16.msra.mxu0 0
    %201 = vmatprep.subr.bf16.mxu0 0
    %202 = vmatpush1.bf16.msra.mxu0 0
    %203 = vmatprep.subr.bf16.mxu0 0
    %204 = vmatpush1.bf16.msra.mxu0 0
    %205 = vmatprep.subr.bf16.mxu0 0
    %206 = vmatpush1.bf16.msra.mxu0 0
    %207 = vmatprep.subr.bf16.mxu0 0
    %208 = vmatpush1.bf16.msra.mxu0 0
    %209 = vmatprep.subr.bf16.mxu0 0
    %210 = vmatpush1.bf16.msra.mxu0 0
    %211 = vmatprep.subr.bf16.mxu0 0
    %212 = vmatpush1.bf16.msra.mxu0 0
    %213 = vmatprep.subr.bf16.mxu0 0
    %214 = vmatpush1.bf16.msra.mxu0 0
    %215 = vmatprep.mubr.bf16.mxu0 0
    %216 = vmatmul.mubr.bf16.gmra.mrb[0].mxu0 %v181
    %v217 = vpop.f32.mrb[0].mxu0
    %v218 = vadd.f32 %v99, %v217
    %v219 = vpop.f32.mrb[0].mxu0
    %v220 = vadd.f32 %v103, %v219
    %v221 = vpop.f32.mrb[0].mxu0
    %v222 = vadd.f32 %v99, %v221
    %v223 = vpop.f32.mrb[0].mxu0
    %v224 = vadd.f32 %v103, %v223
    %225 = vdwg.mxu0
    %226 = vmatprep.subr.bf16.mxu0 %v159
    %227 = vmatpush1.bf16.msra.mxu0 %v158
    %228 = vmatprep.subr.bf16.mxu0 %v165
    %229 = vmatpush1.bf16.msra.mxu0 %v164
    %230 = vmatprep.subr.bf16.mxu0 0
    %231 = vmatpush1.bf16.msra.mxu0 0
    %232 = vmatprep.subr.bf16.mxu0 0
    %233 = vmatpush1.bf16.msra.mxu0 0
    %234 = vmatprep.subr.bf16.mxu0 0
    %235 = vmatpush1.bf16.msra.mxu0 0
    %236 = vmatprep.subr.bf16.mxu0 0
    %237 = vmatpush1.bf16.msra.mxu0 0
    %238 = vmatprep.subr.bf16.mxu0 0
    %239 = vmatpush1.bf16.msra.mxu0 0
    %240 = vmatprep.subr.bf16.mxu0 0
    %241 = vmatpush1.bf16.msra.mxu0 0
    %242 = vmatprep.subr.bf16.mxu0 0
    %243 = vmatpush1.bf16.msra.mxu0 0
    %244 = vmatprep.subr.bf16.mxu0 0
    %245 = vmatpush1.bf16.msra.mxu0 0
    %246 = vmatprep.subr.bf16.mxu0 0
    %247 = vmatpush1.bf16.msra.mxu0 0
    %248 = vmatprep.subr.bf16.mxu0 0
    %249 = vmatpush1.bf16.msra.mxu0 0
    %250 = vmatprep.subr.bf16.mxu0 0
    %251 = vmatpush1.bf16.msra.mxu0 0
    %252 = vmatprep.subr.bf16.mxu0 0
    %253 = vmatpush1.bf16.msra.mxu0 0
    %254 = vmatprep.subr.bf16.mxu0 0
    %255 = vmatpush1.bf16.msra.mxu0 0
    %256 = vmatprep.subr.bf16.mxu0 0
    %257 = vmatpush1.bf16.msra.mxu0 0
    %258 = vmatprep.mubr.bf16.mxu0 0
    %259 = vmatmul.mubr.bf16.gmra.mrb[0].mxu0 %v181
    %v260 = vpop.f32.mrb[0].mxu0
    %v261 = vadd.f32 %v107, %v260
    %v262 = vpop.f32.mrb[0].mxu0
    %v263 = vadd.f32 %v111, %v262
    %v264 = vpop.f32.mrb[0].mxu0
    %v265 = vadd.f32 %v107, %v264
    %v266 = vpop.f32.mrb[0].mxu0
    %v267 = vadd.f32 %v111, %v266
    %268 = vdwg.mxu0
    %269 = vmatprep.subr.bf16.mxu0 %v161
    %270 = vmatpush1.bf16.msra.mxu0 %v160
    %271 = vmatprep.subr.bf16.mxu0 %v167
    %272 = vmatpush1.bf16.msra.mxu0 %v166
    %273 = vmatprep.subr.bf16.mxu0 0
    %274 = vmatpush1.bf16.msra.mxu0 0
    %275 = vmatprep.subr.bf16.mxu0 0
    %276 = vmatpush1.bf16.msra.mxu0 0
    %277 = vmatprep.subr.bf16.mxu0 0
    %278 = vmatpush1.bf16.msra.mxu0 0
    %279 = vmatprep.subr.bf16.mxu0 0
    %280 = vmatpush1.bf16.msra.mxu0 0
    %281 = vmatprep.subr.bf16.mxu0 0
    %282 = vmatpush1.bf16.msra.mxu0 0
    %283 = vmatprep.subr.bf16.mxu0 0
    %284 = vmatpush1.bf16.msra.mxu0 0
    %285 = vmatprep.subr.bf16.mxu0 0
    %286 = vmatpush1.bf16.msra.mxu0 0
    %287 = vmatprep.subr.bf16.mxu0 0
    %288 = vmatpush1.bf16.msra.mxu0 0
    %289 = vmatprep.subr.bf16.mxu0 0
    %290 = vmatpush1.bf16.msra.mxu0 0
    %291 = vmatprep.subr.bf16.mxu0 0
    %292 = vmatpush1.bf16.msra.mxu0 0
    %293 = vmatprep.subr.bf16.mxu0 0
    %294 = vmatpush1.bf16.msra.mxu0 0
    %295 = vmatprep.subr.bf16.mxu0 0
    %296 = vmatpush1.bf16.msra.mxu0 0
    %297 = vmatprep.subr.bf16.mxu0 0
    %298 = vmatpush1.bf16.msra.mxu0 0
    %299 = vmatprep.subr.bf16.mxu0 0
    %300 = vmatpush1.bf16.msra.mxu0 0
    %301 = vmatprep.mubr.bf16.mxu0 0
    %302 = vmatmul.mubr.bf16.gmra.mrb[0].mxu0 %v181
    %v303 = vpop.f32.mrb[0].mxu0
    %v304 = vadd.f32 %v115, %v303
    %v305 = vpop.f32.mrb[0].mxu0
    %v306 = vadd.f32 %v119, %v305
    %v307 = vpop.f32.mrb[0].mxu0
    %v308 = vadd.f32 %v115, %v307
    %v309 = vpop.f32.mrb[0].mxu0
    %v310 = vadd.f32 %v119, %v309
    %311 = vdwg.mxu0
    %v312 = vpack.c.bf16 %v218, %v218
    %v313 = vpack.c.bf16 %v220, %v220
    %v314 = vpack.c.bf16 %v261, %v261
    %v315 = vpack.c.bf16 %v263, %v263
    %v316 = vpack.c.bf16 %v304, %v304
    %v317 = vpack.c.bf16 %v306, %v306
    %v318 = vlaneseq
    %v319 = vshrl.u32 %v318, 7
    %v320 = vsub.s32 0, %v319
    %v321 = vrot.slane %v78, %v320
    %vm322 = vcmask 130048
    %v324 = vsel %vm322, %v312, 0
    %v327 = vsel %vm322, %v313, 0
    %329 = vmatprep.subr.bf16.mxu0 0
    %330 = vmatpush1.bf16.xpose.msra.mxu0 %v327
    %331 = vmatprep.subr.bf16.mxu0 0
    %332 = vmatpush1.bf16.xpose.msra.mxu0 0
    %333 = vmatprep.subr.bf16.mxu0 0
    %334 = vmatpush1.bf16.xpose.msra.mxu0 0
    %335 = vmatprep.subr.bf16.mxu0 0
    %336 = vmatpush1.bf16.xpose.msra.mxu0 0
    %337 = vmatprep.subr.bf16.mxu0 0
    %338 = vmatpush1.bf16.xpose.msra.mxu0 0
    %339 = vmatprep.subr.bf16.mxu0 0
    %340 = vmatpush1.bf16.xpose.msra.mxu0 0
    %341 = vmatprep.subr.bf16.mxu0 0
    %342 = vmatpush1.bf16.xpose.msra.mxu0 0
    %343 = vmatprep.subr.bf16.mxu0 0
    %344 = vmatpush1.bf16.xpose.msra.mxu0 0
    %345 = vmatprep.subr.bf16.mxu0 0
    %346 = vmatpush1.bf16.xpose.msra.mxu0 0
    %347 = vmatprep.subr.bf16.mxu0 0
    %348 = vmatpush1.bf16.xpose.msra.mxu0 0
    %349 = vmatprep.subr.bf16.mxu0 0
    %350 = vmatpush1.bf16.xpose.msra.mxu0 0
    %351 = vmatprep.subr.bf16.mxu0 0
    %352 = vmatpush1.bf16.xpose.msra.mxu0 0
    %353 = vmatprep.subr.bf16.mxu0 0
    %354 = vmatpush1.bf16.xpose.msra.mxu0 0
    %355 = vmatprep.subr.bf16.mxu0 0
    %356 = vmatpush1.bf16.xpose.msra.mxu0 0
    %357 = vmatprep.subr.bf16.mxu0 0
    %358 = vmatpush1.bf16.xpose.msra.mxu0 0
    %359 = vmatprep.subr.bf16.mxu0 0
    %360 = vmatpush1.bf16.xpose.msra.mxu0 0
    %361 = vmatprep.mubr.bf16.mxu0 0
    %362 = vmatmul.mubr.bf16.gmra.mrb[0].mxu0 %v324
    %v363 = vpop.f32.mrb[0].mxu0
    %v364 = vadd.f32 %v321, %v363
    %v365 = vpop.f32.mrb[0].mxu0
    %v366 = vpop.f32.mrb[0].mxu0
    %v367 = vpop.f32.mrb[0].mxu0
    %368 = vdwg.mxu0
    %vm369 = vcmask 64512
    %v370 = vsel %vm369, %v364, -inf
    %371 = vmax.xlane.f32.xlu0 %v370
    %v372 = vpop.xlane.xlu0 %371
    %v373 = vsub.f32 %v364, %v372
    %v374 = vmul.f32 %v373, 1.442695
    %v375 = vpow.pop %v374
    %v376 = vsel %vm369, %v375, 0.0
    %377 = vadd.xlane.f32.xlu0 %v376
    %v378 = vpop.xlane.xlu0 %377
    %v379 = vrcp.pop %v378
    %v380 = vmul.f32 %v375, %v379
    %v381 = vpack.c.bf16 %v380, %v380
    %v383 = vsel %vm369, %v381, 0
    %vm385 = vcmask 1043456
    %v387 = vsel %vm385, %v314, 0
    %389 = vmatprep.subr.bf16.mxu0 0
    %390 = vmatpush1.bf16.msra.mxu0 %v387
    %391 = vmatprep.subr.bf16.mxu0 0
    %392 = vmatpush1.bf16.msra.mxu0 0
    %393 = vmatprep.subr.bf16.mxu0 0
    %394 = vmatpush1.bf16.msra.mxu0 0
    %395 = vmatprep.subr.bf16.mxu0 0
    %396 = vmatpush1.bf16.msra.mxu0 0
    %397 = vmatprep.subr.bf16.mxu0 0
    %398 = vmatpush1.bf16.msra.mxu0 0
    %399 = vmatprep.subr.bf16.mxu0 0
    %400 = vmatpush1.bf16.msra.mxu0 0
    %401 = vmatprep.subr.bf16.mxu0 0
    %402 = vmatpush1.bf16.msra.mxu0 0
    %403 = vmatprep.subr.bf16.mxu0 0
    %404 = vmatpush1.bf16.msra.mxu0 0
    %405 = vmatprep.subr.bf16.mxu0 0
    %406 = vmatpush1.bf16.msra.mxu0 0
    %407 = vmatprep.subr.bf16.mxu0 0
    %408 = vmatpush1.bf16.msra.mxu0 0
    %409 = vmatprep.subr.bf16.mxu0 0
    %410 = vmatpush1.bf16.msra.mxu0 0
    %411 = vmatprep.subr.bf16.mxu0 0
    %412 = vmatpush1.bf16.msra.mxu0 0
    %413 = vmatprep.subr.bf16.mxu0 0
    %414 = vmatpush1.bf16.msra.mxu0 0
    %415 = vmatprep.subr.bf16.mxu0 0
    %416 = vmatpush1.bf16.msra.mxu0 0
    %417 = vmatprep.subr.bf16.mxu0 0
    %418 = vmatpush1.bf16.msra.mxu0 0
    %419 = vmatprep.subr.bf16.mxu0 0
    %420 = vmatpush1.bf16.msra.mxu0 0
    %421 = vmatprep.mubr.bf16.mxu0 0
    %422 = vmatmul.mubr.bf16.gmra.mrb[0].mxu0 %v383
    %v423 = vpop.f32.mrb[0].mxu0
    %v424 = vadd.f32 0.0, %v423
    %v425 = vpop.f32.mrb[0].mxu0
    %v426 = vpop.f32.mrb[0].mxu0
    %v427 = vpop.f32.mrb[0].mxu0
    %428 = vdwg.mxu0
    %429 = vst.msk [vmem:[#allocation2] sm:$0xff] %vm322, %v424
    %v431 = vsel %vm322, %v315, 0
    %v434 = vsel %vm322, %v316, 0
    %436 = vmatprep.subr.bf16.mxu0 0
    %437 = vmatpush1.bf16.xpose.msra.mxu0 %v434
    %438 = vmatprep.subr.bf16.mxu0 0
    %439 = vmatpush1.bf16.xpose.msra.mxu0 0
    %440 = vmatprep.subr.bf16.mxu0 0
    %441 = vmatpush1.bf16.xpose.msra.mxu0 0
    %442 = vmatprep.subr.bf16.mxu0 0
    %443 = vmatpush1.bf16.xpose.msra.mxu0 0
    %444 = vmatprep.subr.bf16.mxu0 0
    %445 = vmatpush1.bf16.xpose.msra.mxu0 0
    %446 = vmatprep.subr.bf16.mxu0 0
    %447 = vmatpush1.bf16.xpose.msra.mxu0 0
    %448 = vmatprep.subr.bf16.mxu0 0
    %449 = vmatpush1.bf16.xpose.msra.mxu0 0
    %450 = vmatprep.subr.bf16.mxu0 0
    %451 = vmatpush1.bf16.xpose.msra.mxu0 0
    %452 = vmatprep.subr.bf16.mxu0 0
    %453 = vmatpush1.bf16.xpose.msra.mxu0 0
    %454 = vmatprep.subr.bf16.mxu0 0
    %455 = vmatpush1.bf16.xpose.msra.mxu0 0
    %456 = vmatprep.subr.bf16.mxu0 0
    %457 = vmatpush1.bf16.xpose.msra.mxu0 0
    %458 = vmatprep.subr.bf16.mxu0 0
    %459 = vmatpush1.bf16.xpose.msra.mxu0 0
    %460 = vmatprep.subr.bf16.mxu0 0
    %461 = vmatpush1.bf16.xpose.msra.mxu0 0
    %462 = vmatprep.subr.bf16.mxu0 0
    %463 = vmatpush1.bf16.xpose.msra.mxu0 0
    %464 = vmatprep.subr.bf16.mxu0 0
    %465 = vmatpush1.bf16.xpose.msra.mxu0 0
    %466 = vmatprep.subr.bf16.mxu0 0
    %467 = vmatpush1.bf16.xpose.msra.mxu0 0
    %468 = vmatprep.mubr.bf16.mxu0 0
    %469 = vmatmul.mubr.bf16.gmra.mrb[0].mxu0 %v431
    %v470 = vpop.f32.mrb[0].mxu0
    %v471 = vadd.f32 %v321, %v470
    %v472 = vpop.f32.mrb[0].mxu0
    %v473 = vpop.f32.mrb[0].mxu0
    %v474 = vpop.f32.mrb[0].mxu0
    %475 = vdwg.mxu0
    %v476 = vsel %vm369, %v471, -inf
    %477 = vmax.xlane.f32.xlu0 %v476
    %v478 = vpop.xlane.xlu0 %477
    %v479 = vsub.f32 %v471, %v478
    %v480 = vmul.f32 %v479, 1.442695
    %v481 = vpow.pop %v480
    %v482 = vsel %vm369, %v481, 0.0
    %483 = vadd.xlane.f32.xlu0 %v482
    %v484 = vpop.xlane.xlu0 %483
    %v485 = vrcp.pop %v484
    %v486 = vmul.f32 %v481, %v485
    %v487 = vpack.c.bf16 %v486, %v486
    %v489 = vsel %vm369, %v487, 0
    %v492 = vsel %vm385, %v317, 0
    %494 = vmatprep.subr.bf16.mxu0 0
    %495 = vmatpush1.bf16.msra.mxu0 %v492
    %496 = vmatprep.subr.bf16.mxu0 0
    %497 = vmatpush1.bf16.msra.mxu0 0
    %498 = vmatprep.subr.bf16.mxu0 0
    %499 = vmatpush1.bf16.msra.mxu0 0
    %500 = vmatprep.subr.bf16.mxu0 0
    %501 = vmatpush1.bf16.msra.mxu0 0
    %502 = vmatprep.subr.bf16.mxu0 0
    %503 = vmatpush1.bf16.msra.mxu0 0
    %504 = vmatprep.subr.bf16.mxu0 0
    %505 = vmatpush1.bf16.msra.mxu0 0
    %506 = vmatprep.subr.bf16.mxu0 0
    %507 = vmatpush1.bf16.msra.mxu0 0
    %508 = vmatprep.subr.bf16.mxu0 0
    %509 = vmatpush1.bf16.msra.mxu0 0
    %510 = vmatprep.subr.bf16.mxu0 0
    %511 = vmatpush1.bf16.msra.mxu0 0
    %512 = vmatprep.subr.bf16.mxu0 0
    %513 = vmatpush1.bf16.msra.mxu0 0
    %514 = vmatprep.subr.bf16.mxu0 0
    %515 = vmatpush1.bf16.msra.mxu0 0
    %516 = vmatprep.subr.bf16.mxu0 0
    %517 = vmatpush1.bf16.msra.mxu0 0
    %518 = vmatprep.subr.bf16.mxu0 0
    %519 = vmatpush1.bf16.msra.mxu0 0
    %520 = vmatprep.subr.bf16.mxu0 0
    %521 = vmatpush1.bf16.msra.mxu0 0
    %522 = vmatprep.subr.bf16.mxu0 0
    %523 = vmatpush1.bf16.msra.mxu0 0
    %524 = vmatprep.subr.bf16.mxu0 0
    %525 = vmatpush1.bf16.msra.mxu0 0
    %526 = vmatprep.mubr.bf16.mxu0 0
    %527 = vmatmul.mubr.bf16.gmra.mrb[0].mxu0 %v489
    %v528 = vpop.f32.mrb[0].mxu0
    %v529 = vadd.f32 0.0, %v528
    %v530 = vpop.f32.mrb[0].mxu0
    %v531 = vpop.f32.mrb[0].mxu0
    %v532 = vpop.f32.mrb[0].mxu0
    %533 = vdwg.mxu0
    %534 = vst.msk [vmem:[#allocation2 + $0x8] sm:$0xff] %vm322, %v529
    %v535 = vpack.c.bf16 %v222, %v222
    %v536 = vpack.c.bf16 %v224, %v224
    %v537 = vpack.c.bf16 %v265, %v265
    %v538 = vpack.c.bf16 %v267, %v267
    %v539 = vpack.c.bf16 %v308, %v308
    %v540 = vpack.c.bf16 %v310, %v310
    %v541 = vlaneseq
    %v542 = vshrl.u32 %v541, 7
    %v543 = vsub.s32 1, %v542
    %v544 = vrot.slane %v78, %v543
    %v546 = vsel %vm322, %v535, 0
    %v549 = vsel %vm322, %v536, 0
    %551 = vmatprep.subr.bf16.mxu0 0
    %552 = vmatpush1.bf16.xpose.msra.mxu0 %v549
    %553 = vmatprep.subr.bf16.mxu0 0
    %554 = vmatpush1.bf16.xpose.msra.mxu0 0
    %555 = vmatprep.subr.bf16.mxu0 0
    %556 = vmatpush1.bf16.xpose.msra.mxu0 0
    %557 = vmatprep.subr.bf16.mxu0 0
    %558 = vmatpush1.bf16.xpose.msra.mxu0 0
    %559 = vmatprep.subr.bf16.mxu0 0
    %560 = vmatpush1.bf16.xpose.msra.mxu0 0
    %561 = vmatprep.subr.bf16.mxu0 0
    %562 = vmatpush1.bf16.xpose.msra.mxu0 0
    %563 = vmatprep.subr.bf16.mxu0 0
    %564 = vmatpush1.bf16.xpose.msra.mxu0 0
    %565 = vmatprep.subr.bf16.mxu0 0
    %566 = vmatpush1.bf16.xpose.msra.mxu0 0
    %567 = vmatprep.subr.bf16.mxu0 0
    %568 = vmatpush1.bf16.xpose.msra.mxu0 0
    %569 = vmatprep.subr.bf16.mxu0 0
    %570 = vmatpush1.bf16.xpose.msra.mxu0 0
    %571 = vmatprep.subr.bf16.mxu0 0
    %572 = vmatpush1.bf16.xpose.msra.mxu0 0
    %573 = vmatprep.subr.bf16.mxu0 0
    %574 = vmatpush1.bf16.xpose.msra.mxu0 0
    %575 = vmatprep.subr.bf16.mxu0 0
    %576 = vmatpush1.bf16.xpose.msra.mxu0 0
    %577 = vmatprep.subr.bf16.mxu0 0
    %578 = vmatpush1.bf16.xpose.msra.mxu0 0
    %579 = vmatprep.subr.bf16.mxu0 0
    %580 = vmatpush1.bf16.xpose.msra.mxu0 0
    %581 = vmatprep.subr.bf16.mxu0 0
    %582 = vmatpush1.bf16.xpose.msra.mxu0 0
    %583 = vmatprep.mubr.bf16.mxu0 0
    %584 = vmatmul.mubr.bf16.gmra.mrb[0].mxu0 %v546
    %v585 = vpop.f32.mrb[0].mxu0
    %v586 = vadd.f32 %v544, %v585
    %v587 = vpop.f32.mrb[0].mxu0
    %v588 = vpop.f32.mrb[0].mxu0
    %v589 = vpop.f32.mrb[0].mxu0
    %590 = vdwg.mxu0
    %v591 = vsel %vm369, %v586, -inf
    %592 = vmax.xlane.f32.xlu0 %v591
    %v593 = vpop.xlane.xlu0 %592
    %v594 = vsub.f32 %v586, %v593
    %v595 = vmul.f32 %v594, 1.442695
    %v596 = vpow.pop %v595
    %v597 = vsel %vm369, %v596, 0.0
    %598 = vadd.xlane.f32.xlu0 %v597
    %v599 = vpop.xlane.xlu0 %598
    %v600 = vrcp.pop %v599
    %v601 = vmul.f32 %v596, %v600
    %v602 = vpack.c.bf16 %v601, %v601
    %v604 = vsel %vm369, %v602, 0
    %v607 = vsel %vm385, %v537, 0
    %609 = vmatprep.subr.bf16.mxu0 0
    %610 = vmatpush1.bf16.msra.mxu0 %v607
    %611 = vmatprep.subr.bf16.mxu0 0
    %612 = vmatpush1.bf16.msra.mxu0 0
    %613 = vmatprep.subr.bf16.mxu0 0
    %614 = vmatpush1.bf16.msra.mxu0 0
    %615 = vmatprep.subr.bf16.mxu0 0
    %616 = vmatpush1.bf16.msra.mxu0 0
    %617 = vmatprep.subr.bf16.mxu0 0
    %618 = vmatpush1.bf16.msra.mxu0 0
    %619 = vmatprep.subr.bf16.mxu0 0
    %620 = vmatpush1.bf16.msra.mxu0 0
    %621 = vmatprep.subr.bf16.mxu0 0
    %622 = vmatpush1.bf16.msra.mxu0 0
    %623 = vmatprep.subr.bf16.mxu0 0
    %624 = vmatpush1.bf16.msra.mxu0 0
    %625 = vmatprep.subr.bf16.mxu0 0
    %626 = vmatpush1.bf16.msra.mxu0 0
    %627 = vmatprep.subr.bf16.mxu0 0
    %628 = vmatpush1.bf16.msra.mxu0 0
    %629 = vmatprep.subr.bf16.mxu0 0
    %630 = vmatpush1.bf16.msra.mxu0 0
    %631 = vmatprep.subr.bf16.mxu0 0
    %632 = vmatpush1.bf16.msra.mxu0 0
    %633 = vmatprep.subr.bf16.mxu0 0
    %634 = vmatpush1.bf16.msra.mxu0 0
    %635 = vmatprep.subr.bf16.mxu0 0
    %636 = vmatpush1.bf16.msra.mxu0 0
    %637 = vmatprep.subr.bf16.mxu0 0
    %638 = vmatpush1.bf16.msra.mxu0 0
    %639 = vmatprep.subr.bf16.mxu0 0
    %640 = vmatpush1.bf16.msra.mxu0 0
    %641 = vmatprep.mubr.bf16.mxu0 0
    %642 = vmatmul.mubr.bf16.gmra.mrb[0].mxu0 %v604
    %v643 = vpop.f32.mrb[0].mxu0
    %v644 = vadd.f32 0.0, %v643
    %v645 = vpop.f32.mrb[0].mxu0
    %v646 = vpop.f32.mrb[0].mxu0
    %v647 = vpop.f32.mrb[0].mxu0
    %648 = vdwg.mxu0
    %649 = vst.msk [vmem:[#allocation2 + $0x10] sm:$0xff] %vm322, %v644
    %v651 = vsel %vm322, %v538, 0
    %v654 = vsel %vm322, %v539, 0
    %656 = vmatprep.subr.bf16.mxu0 0
    %657 = vmatpush1.bf16.xpose.msra.mxu0 %v654
    %658 = vmatprep.subr.bf16.mxu0 0
    %659 = vmatpush1.bf16.xpose.msra.mxu0 0
    %660 = vmatprep.subr.bf16.mxu0 0
    %661 = vmatpush1.bf16.xpose.msra.mxu0 0
    %662 = vmatprep.subr.bf16.mxu0 0
    %663 = vmatpush1.bf16.xpose.msra.mxu0 0
    %664 = vmatprep.subr.bf16.mxu0 0
    %665 = vmatpush1.bf16.xpose.msra.mxu0 0
    %666 = vmatprep.subr.bf16.mxu0 0
    %667 = vmatpush1.bf16.xpose.msra.mxu0 0
    %668 = vmatprep.subr.bf16.mxu0 0
    %669 = vmatpush1.bf16.xpose.msra.mxu0 0
    %670 = vmatprep.subr.bf16.mxu0 0
    %671 = vmatpush1.bf16.xpose.msra.mxu0 0
    %672 = vmatprep.subr.bf16.mxu0 0
    %673 = vmatpush1.bf16.xpose.msra.mxu0 0
    %674 = vmatprep.subr.bf16.mxu0 0
    %675 = vmatpush1.bf16.xpose.msra.mxu0 0
    %676 = vmatprep.subr.bf16.mxu0 0
    %677 = vmatpush1.bf16.xpose.msra.mxu0 0
    %678 = vmatprep.subr.bf16.mxu0 0
    %679 = vmatpush1.bf16.xpose.msra.mxu0 0
    %680 = vmatprep.subr.bf16.mxu0 0
    %681 = vmatpush1.bf16.xpose.msra.mxu0 0
    %682 = vmatprep.subr.bf16.mxu0 0
    %683 = vmatpush1.bf16.xpose.msra.mxu0 0
    %684 = vmatprep.subr.bf16.mxu0 0
    %685 = vmatpush1.bf16.xpose.msra.mxu0 0
    %686 = vmatprep.subr.bf16.mxu0 0
    %687 = vmatpush1.bf16.xpose.msra.mxu0 0
    %688 = vmatprep.mubr.bf16.mxu0 0
    %689 = vmatmul.mubr.bf16.gmra.mrb[0].mxu0 %v651
    %v690 = vpop.f32.mrb[0].mxu0
    %v691 = vadd.f32 %v544, %v690
    %v692 = vpop.f32.mrb[0].mxu0
    %v693 = vpop.f32.mrb[0].mxu0
    %v694 = vpop.f32.mrb[0].mxu0
    %695 = vdwg.mxu0
    %v696 = vsel %vm369, %v691, -inf
    %697 = vmax.xlane.f32.xlu0 %v696
    %v698 = vpop.xlane.xlu0 %697
    %v699 = vsub.f32 %v691, %v698
    %v700 = vmul.f32 %v699, 1.442695
    %v701 = vpow.pop %v700
    %v702 = vsel %vm369, %v701, 0.0
    %703 = vadd.xlane.f32.xlu0 %v702
    %v704 = vpop.xlane.xlu0 %703
    %v705 = vrcp.pop %v704
    %v706 = vmul.f32 %v701, %v705
    %v707 = vpack.c.bf16 %v706, %v706
    %v709 = vsel %vm369, %v707, 0
    %v712 = vsel %vm385, %v540, 0
    %714 = vmatprep.subr.bf16.mxu0 0
    %715 = vmatpush1.bf16.msra.mxu0 %v712
    %716 = vmatprep.subr.bf16.mxu0 0
    %717 = vmatpush1.bf16.msra.mxu0 0
    %718 = vmatprep.subr.bf16.mxu0 0
    %719 = vmatpush1.bf16.msra.mxu0 0
    %720 = vmatprep.subr.bf16.mxu0 0
    %721 = vmatpush1.bf16.msra.mxu0 0
    %722 = vmatprep.subr.bf16.mxu0 0
    %723 = vmatpush1.bf16.msra.mxu0 0
    %724 = vmatprep.subr.bf16.mxu0 0
    %725 = vmatpush1.bf16.msra.mxu0 0
    %726 = vmatprep.subr.bf16.mxu0 0
    %727 = vmatpush1.bf16.msra.mxu0 0
    %728 = vmatprep.subr.bf16.mxu0 0
    %729 = vmatpush1.bf16.msra.mxu0 0
    %730 = vmatprep.subr.bf16.mxu0 0
    %731 = vmatpush1.bf16.msra.mxu0 0
    %732 = vmatprep.subr.bf16.mxu0 0
    %733 = vmatpush1.bf16.msra.mxu0 0
    %734 = vmatprep.subr.bf16.mxu0 0
    %735 = vmatpush1.bf16.msra.mxu0 0
    %736 = vmatprep.subr.bf16.mxu0 0
    %737 = vmatpush1.bf16.msra.mxu0 0
    %738 = vmatprep.subr.bf16.mxu0 0
    %739 = vmatpush1.bf16.msra.mxu0 0
    %740 = vmatprep.subr.bf16.mxu0 0
    %741 = vmatpush1.bf16.msra.mxu0 0
    %742 = vmatprep.subr.bf16.mxu0 0
    %743 = vmatpush1.bf16.msra.mxu0 0
    %744 = vmatprep.subr.bf16.mxu0 0
    %745 = vmatpush1.bf16.msra.mxu0 0
    %746 = vmatprep.mubr.bf16.mxu0 0
    %747 = vmatmul.mubr.bf16.gmra.mrb[0].mxu0 %v709
    %v748 = vpop.f32.mrb[0].mxu0
    %v749 = vadd.f32 0.0, %v748
    %v750 = vpop.f32.mrb[0].mxu0
    %v751 = vpop.f32.mrb[0].mxu0
    %v752 = vpop.f32.mrb[0].mxu0
    %753 = vdwg.mxu0
    %754 = vst.msk [vmem:[#allocation2 + $0x18] sm:$0xff] %vm322, %v749
    %v755 = vld [vmem:[#allocation2] sm:$0xff]
    %v756 = vld [vmem:[#allocation2 + $0x8] sm:$0xff]
    %v757 = vld [vmem:[#allocation2 + $0x10] sm:$0xff]
    %v758 = vld [vmem:[#allocation2 + $0x18] sm:$0xff]
    %v759 = vld [vmem:[%s3] sm:$0xf]
    %v760 = vld [vmem:[%s3 + $0x4] sm:$0xf]
    %v761 = vld [vmem:[%s3 + $0x8] sm:$0xf]
    %v762 = vld [vmem:[%s3 + $0xc] sm:$0xf]
    %v763 = vld [vmem:[%s3 + $0x10] sm:$0xf]
    %v764 = vld [vmem:[%s3 + $0x14] sm:$0xf]
    %v765 = vld [vmem:[%s3 + $0x18] sm:$0xf]
    %v766 = vld [vmem:[%s3 + $0x1c] sm:$0xf]
    %v767 = vld [vmem:[%s3 + $0x20] sm:$0xf]
    %v768 = vld [vmem:[%s3 + $0x24] sm:$0xf]
    %v769 = vld [vmem:[%s3 + $0x28] sm:$0xf]
    %v770 = vld [vmem:[%s3 + $0x2c] sm:$0xf]
    %v771 = vld [vmem:[%s3 + $0x30] sm:$0xf]
    %v772 = vld [vmem:[%s3 + $0x34] sm:$0xf]
    %v773 = vld [vmem:[%s3 + $0x38] sm:$0xf]
    %v774 = vld [vmem:[%s3 + $0x3c] sm:$0xf]
    %v775 = vld [vmem:[%s3 + $0x40] sm:$0xf]
    %v776 = vld [vmem:[%s3 + $0x44] sm:$0xf]
    %v777 = vld [vmem:[%s3 + $0x48] sm:$0xf]
    %v778 = vld [vmem:[%s3 + $0x4c] sm:$0xf]
    %v779 = vld [vmem:[%s3 + $0x50] sm:$0xf]
    %v780 = vld [vmem:[%s3 + $0x54] sm:$0xf]
    %v781 = vld [vmem:[%s3 + $0x58] sm:$0xf]
    %v782 = vld [vmem:[%s3 + $0x5c] sm:$0xf]
    %v783 = vld [vmem:[%s3 + $0x60] sm:$0xf]
    %v784 = vld [vmem:[%s3 + $0x64] sm:$0xf]
    %v785 = vld [vmem:[%s3 + $0x68] sm:$0xf]
    %v786 = vld [vmem:[%s3 + $0x6c] sm:$0xf]
    %v787 = vld [vmem:[%s3 + $0x70] sm:$0xf]
    %v788 = vld [vmem:[%s3 + $0x74] sm:$0xf]
    %v789 = vld [vmem:[%s3 + $0x78] sm:$0xf]
    %v790 = vld [vmem:[%s3 + $0x7c] sm:$0xf]
    %v791 = vpack.c.bf16 %v757, %v755
    %v792 = vpack.c.bf16 %v758, %v756
    %v793 = vlaneseq
    %v794 = vshrl.u32 %v793, 7
    %v795 = vsub.s32 4, %v794
    %v796 = vrot.slane %v28, %v795
    %v829 = vunpack.c.l.b16 %v759
    %v830 = vunpack.c.l.b16 %v760
    %v831 = vunpack.c.l.b16 %v761
    %v832 = vunpack.c.l.b16 %v762
    %v833 = vunpack.c.l.b16 %v763
    %v834 = vunpack.c.l.b16 %v764
    %v835 = vunpack.c.l.b16 %v765
    %v836 = vunpack.c.l.b16 %v766
    %v837 = vunpack.c.l.b16 %v767
    %v838 = vunpack.c.l.b16 %v768
    %v839 = vunpack.c.l.b16 %v769
    %v840 = vunpack.c.l.b16 %v770
    %v841 = vunpack.c.l.b16 %v771
    %v842 = vunpack.c.l.b16 %v772
    %v843 = vunpack.c.l.b16 %v773
    %v844 = vunpack.c.l.b16 %v774
    %v845 = vunpack.c.l.b16 %v775
    %v846 = vunpack.c.l.b16 %v776
    %v847 = vunpack.c.l.b16 %v777
    %v848 = vunpack.c.l.b16 %v778
    %v849 = vunpack.c.l.b16 %v779
    %v850 = vunpack.c.l.b16 %v780
    %v851 = vunpack.c.l.b16 %v781
    %v852 = vunpack.c.l.b16 %v782
    %v853 = vunpack.c.l.b16 %v783
    %v854 = vunpack.c.l.b16 %v784
    %v855 = vunpack.c.l.b16 %v785
    %v856 = vunpack.c.l.b16 %v786
    %v857 = vunpack.c.l.b16 %v787
    %v858 = vunpack.c.l.b16 %v788
    %v859 = vunpack.c.l.b16 %v789
    %v860 = vunpack.c.l.b16 %v790
    %v861 = vpack.c.b16 %v830, %v829
    %v862 = vpack.c.b16 %v832, %v831
    %v863 = vpack.c.b16 %v834, %v833
    %v864 = vpack.c.b16 %v836, %v835
    %v865 = vpack.c.b16 %v838, %v837
    %v866 = vpack.c.b16 %v840, %v839
    %v867 = vpack.c.b16 %v842, %v841
    %v868 = vpack.c.b16 %v844, %v843
    %v869 = vpack.c.b16 %v846, %v845
    %v870 = vpack.c.b16 %v848, %v847
    %v871 = vpack.c.b16 %v850, %v849
    %v872 = vpack.c.b16 %v852, %v851
    %v873 = vpack.c.b16 %v854, %v853
    %v874 = vpack.c.b16 %v856, %v855
    %v875 = vpack.c.b16 %v858, %v857
    %v876 = vpack.c.b16 %v860, %v859
    %893 = vmatprep.subr.bf16.mxu0 0
    %894 = vmatpush1.bf16.msra.mxu0 %v861
    %895 = vmatprep.subr.bf16.mxu0 0
    %896 = vmatpush1.bf16.msra.mxu0 %v862
    %897 = vmatprep.subr.bf16.mxu0 0
    %898 = vmatpush1.bf16.msra.mxu0 %v863
    %899 = vmatprep.subr.bf16.mxu0 0
    %900 = vmatpush1.bf16.msra.mxu0 %v864
    %901 = vmatprep.subr.bf16.mxu0 0
    %902 = vmatpush1.bf16.msra.mxu0 %v865
    %903 = vmatprep.subr.bf16.mxu0 0
    %904 = vmatpush1.bf16.msra.mxu0 %v866
    %905 = vmatprep.subr.bf16.mxu0 0
    %906 = vmatpush1.bf16.msra.mxu0 %v867
    %907 = vmatprep.subr.bf16.mxu0 0
    %908 = vmatpush1.bf16.msra.mxu0 %v868
    %909 = vmatprep.subr.bf16.mxu0 0
    %910 = vmatpush1.bf16.msra.mxu0 %v869
    %911 = vmatprep.subr.bf16.mxu0 0
    %912 = vmatpush1.bf16.msra.mxu0 %v870
    %913 = vmatprep.subr.bf16.mxu0 0
    %914 = vmatpush1.bf16.msra.mxu0 %v871
    %915 = vmatprep.subr.bf16.mxu0 0
    %916 = vmatpush1.bf16.msra.mxu0 %v872
    %917 = vmatprep.subr.bf16.mxu0 0
    %918 = vmatpush1.bf16.msra.mxu0 %v873
    %919 = vmatprep.subr.bf16.mxu0 0
    %920 = vmatpush1.bf16.msra.mxu0 %v874
    %921 = vmatprep.subr.bf16.mxu0 0
    %922 = vmatpush1.bf16.msra.mxu0 %v875
    %923 = vmatprep.subr.bf16.mxu0 0
    %924 = vmatpush1.bf16.msra.mxu0 %v876
    %925 = vmatprep.mubr.bf16.mxu0 %v792
    %926 = vmatmul.mubr.bf16.gmra.mrb[0].mxu0 %v791
    %v927 = vpop.f32.mrb[0].mxu0
    %v928 = vadd.f32 %v796, %v927
    %v929 = vpop.f32.mrb[0].mxu0
    %v930 = vpop.f32.mrb[0].mxu0
    %v931 = vadd.f32 %v796, %v930
    %v932 = vpop.f32.mrb[0].mxu0
    %933 = vdwg.mxu0
    %v934 = vadd.f32 %v928, %v76
    %v935 = vadd.f32 %v931, %v77
    %v936 = vsel %vm38, %v934, 0.0
    %937 = vadd.xlane.f32.xlu0 %v936
    %v938 = vpop.xlane.xlu0 %937
    %v939 = vsel %vm38, %v935, 0.0
    %940 = vadd.xlane.f32.xlu0 %v939
    %v941 = vpop.xlane.xlu0 %940
    %v942 = vmul.f32 %v938, %v45
    %v943 = vmul.f32 %v941, %v45
    %v944 = vsub.f32 %v934, %v942
    %v945 = vsub.f32 %v935, %v943
    %v946 = vmul.f32 %v944, %v944
    %v947 = vmul.f32 %v945, %v945
    %v948 = vsel %vm38, %v946, 0.0
    %949 = vadd.xlane.f32.xlu0 %v948
    %v950 = vpop.xlane.xlu0 %949
    %v951 = vsel %vm38, %v947, 0.0
    %952 = vadd.xlane.f32.xlu0 %v951
    %v953 = vpop.xlane.xlu0 %952
    %v954 = vmul.f32 %v950, %v45
    %v955 = vmul.f32 %v953, %v45
    %v956 = vadd.f32 %v954, 1e-12
    %v957 = vadd.f32 %v955, 1e-12
    %v958 = vrsqrt.pop %v956
    %v959 = vrsqrt.pop %v957
    %v960 = vmul.f32 %v944, %v958
    %v961 = vmul.f32 %v945, %v959
    %v962 = vlaneseq
    %v963 = vshrl.u32 %v962, 7
    %v964 = vsub.s32 5, %v963
    %v965 = vrot.slane %v28, %v964
    %v966 = vmul.f32 %v960, %v965
    %v967 = vmul.f32 %v961, %v965
    %v968 = vlaneseq
    %v969 = vshrl.u32 %v968, 7
    %v970 = vsub.s32 6, %v969
    %v971 = vrot.slane %v28, %v970
    %v972 = vadd.f32 %v966, %v971
    %v973 = vadd.f32 %v967, %v971
    %v974 = vld [vmem:[%s4] sm:$0xff]
    %v975 = vld [vmem:[%s4 + $0x8] sm:$0xff]
    %v976 = vld [vmem:[%s4 + $0x10] sm:$0xff]
    %v977 = vld [vmem:[%s4 + $0x18] sm:$0xff]
    %v978 = vld [vmem:[%s4 + $0x20] sm:$0xff]
    %v979 = vld [vmem:[%s4 + $0x28] sm:$0xff]
    %v980 = vld [vmem:[%s4 + $0x30] sm:$0xff]
    %v981 = vld [vmem:[%s4 + $0x38] sm:$0xff]
    %v982 = vpack.c.bf16 %v973, %v972
    %v983 = vlaneseq
    %v984 = vshrl.u32 %v983, 7
    %v985 = vsub.s32 7, %v984
    %v986 = vrot.slane %v28, %v985
    %v991 = vunpack.c.l.b16 %v974
    %v992 = vunpack.c.l.b16 %v975
    %v993 = vunpack.c.l.b16 %v976
    %v994 = vunpack.c.l.b16 %v977
    %v995 = vpack.c.b16 %v992, %v991
    %v996 = vpack.c.b16 %v994, %v993
    %v1000 = vsel %vm38, %v982, 0
    %1002 = vmatprep.subr.bf16.mxu0 0
    %1003 = vmatpush1.bf16.msra.mxu0 %v995
    %1004 = vmatprep.subr.bf16.mxu0 0
    %1005 = vmatpush1.bf16.msra.mxu0 %v996
    %1006 = vmatprep.subr.bf16.mxu0 0
    %1007 = vmatpush1.bf16.msra.mxu0 0
    %1008 = vmatprep.subr.bf16.mxu0 0
    %1009 = vmatpush1.bf16.msra.mxu0 0
    %1010 = vmatprep.subr.bf16.mxu0 0
    %1011 = vmatpush1.bf16.msra.mxu0 0
    %1012 = vmatprep.subr.bf16.mxu0 0
    %1013 = vmatpush1.bf16.msra.mxu0 0
    %1014 = vmatprep.subr.bf16.mxu0 0
    %1015 = vmatpush1.bf16.msra.mxu0 0
    %1016 = vmatprep.subr.bf16.mxu0 0
    %1017 = vmatpush1.bf16.msra.mxu0 0
    %1018 = vmatprep.subr.bf16.mxu0 0
    %1019 = vmatpush1.bf16.msra.mxu0 0
    %1020 = vmatprep.subr.bf16.mxu0 0
    %1021 = vmatpush1.bf16.msra.mxu0 0
    %1022 = vmatprep.subr.bf16.mxu0 0
    %1023 = vmatpush1.bf16.msra.mxu0 0
    %1024 = vmatprep.subr.bf16.mxu0 0
    %1025 = vmatpush1.bf16.msra.mxu0 0
    %1026 = vmatprep.subr.bf16.mxu0 0
    %1027 = vmatpush1.bf16.msra.mxu0 0
    %1028 = vmatprep.subr.bf16.mxu0 0
    %1029 = vmatpush1.bf16.msra.mxu0 0
    %1030 = vmatprep.subr.bf16.mxu0 0
    %1031 = vmatpush1.bf16.msra.mxu0 0
    %1032 = vmatprep.subr.bf16.mxu0 0
    %1033 = vmatpush1.bf16.msra.mxu0 0
    %1034 = vmatprep.mubr.bf16.mxu0 0
    %1035 = vmatmul.mubr.bf16.gmra.mrb[0].mxu0 %v1000
    %v1036 = vpop.f32.mrb[0].mxu0
    %v1037 = vadd.f32 %v986, %v1036
    %v1038 = vpop.f32.mrb[0].mxu0
    %v1039 = vpop.f32.mrb[0].mxu0
    %v1040 = vadd.f32 %v986, %v1039
    %v1041 = vpop.f32.mrb[0].mxu0
    %1042 = vdwg.mxu0
    %v1043 = vmul.f32 %v1037, 0.5
    %v1044 = vmul.f32 %v1040, 0.5
    %v1045 = vmul.f32 %v1037, 0.044715
    %v1046 = vmul.f32 %v1040, 0.044715
    %v1047 = vmul.f32 %v1045, %v1037
    %v1048 = vmul.f32 %v1046, %v1040
    %v1049 = vmul.f32 %v1047, %v1037
    %v1050 = vmul.f32 %v1048, %v1040
    %v1051 = vadd.f32 %v1037, %v1049
    %v1052 = vadd.f32 %v1040, %v1050
    %v1053 = vmul.f32 %v1051, 0.7978846
    %v1054 = vmul.f32 %v1052, 0.7978846
    %v1055 = vtanh.pop %v1053
    %v1056 = vtanh.pop %v1054
    %v1057 = vadd.f32 %v1055, 1.0
    %v1058 = vadd.f32 %v1056, 1.0
    %v1059 = vmul.f32 %v1043, %v1057
    %v1060 = vmul.f32 %v1044, %v1058
    %v1061 = vpack.c.bf16 %v1060, %v1059
    %v1062 = vlaneseq
    %v1063 = vshrl.u32 %v1062, 7
    %v1064 = vsub.s32 0, %v1063
    %v1065 = vrot.slane %v34, %v1064
    %v1070 = vunpack.c.h.b16 %v974
    %v1071 = vunpack.c.h.b16 %v975
    %v1072 = vunpack.c.h.b16 %v976
    %v1073 = vunpack.c.h.b16 %v977
    %v1074 = vunpack.c.h.b16 %v978
    %v1075 = vunpack.c.h.b16 %v979
    %v1076 = vunpack.c.h.b16 %v980
    %v1077 = vunpack.c.h.b16 %v981
    %v1078 = vpack.c.b16 %v1071, %v1070
    %v1079 = vpack.c.b16 %v1073, %v1072
    %v1080 = vpack.c.b16 %v1075, %v1074
    %v1081 = vpack.c.b16 %v1077, %v1076
    %vm1086 = vcmask 523264
    %v1088 = vsel %vm1086, %v1061, 0
    %1090 = vmatprep.subr.bf16.mxu0 0
    %1091 = vmatpush1.bf16.msra.mxu0 %v1078
    %1092 = vmatprep.subr.bf16.mxu0 0
    %1093 = vmatpush1.bf16.msra.mxu0 %v1079
    %1094 = vmatprep.subr.bf16.mxu0 0
    %1095 = vmatpush1.bf16.msra.mxu0 %v1080
    %1096 = vmatprep.subr.bf16.mxu0 0
    %1097 = vmatpush1.bf16.msra.mxu0 %v1081
    %1098 = vmatprep.subr.bf16.mxu0 0
    %1099 = vmatpush1.bf16.msra.mxu0 0
    %1100 = vmatprep.subr.bf16.mxu0 0
    %1101 = vmatpush1.bf16.msra.mxu0 0
    %1102 = vmatprep.subr.bf16.mxu0 0
    %1103 = vmatpush1.bf16.msra.mxu0 0
    %1104 = vmatprep.subr.bf16.mxu0 0
    %1105 = vmatpush1.bf16.msra.mxu0 0
    %1106 = vmatprep.subr.bf16.mxu0 0
    %1107 = vmatpush1.bf16.msra.mxu0 0
    %1108 = vmatprep.subr.bf16.mxu0 0
    %1109 = vmatpush1.bf16.msra.mxu0 0
    %1110 = vmatprep.subr.bf16.mxu0 0
    %1111 = vmatpush1.bf16.msra.mxu0 0
    %1112 = vmatprep.subr.bf16.mxu0 0
    %1113 = vmatpush1.bf16.msra.mxu0 0
    %1114 = vmatprep.subr.bf16.mxu0 0
    %1115 = vmatpush1.bf16.msra.mxu0 0
    %1116 = vmatprep.subr.bf16.mxu0 0
    %1117 = vmatpush1.bf16.msra.mxu0 0
    %1118 = vmatprep.subr.bf16.mxu0 0
    %1119 = vmatpush1.bf16.msra.mxu0 0
    %1120 = vmatprep.subr.bf16.mxu0 0
    %1121 = vmatpush1.bf16.msra.mxu0 0
    %1122 = vmatprep.mubr.bf16.mxu0 0
    %1123 = vmatmul.mubr.bf16.gmra.mrb[0].mxu0 %v1088
    %v1124 = vpop.f32.mrb[0].mxu0
    %v1125 = vadd.f32 %v1065, %v1124
    %v1126 = vpop.f32.mrb[0].mxu0
    %v1127 = vpop.f32.mrb[0].mxu0
    %v1128 = vadd.f32 %v1065, %v1127
    %v1129 = vpop.f32.mrb[0].mxu0
    %1130 = vdwg.mxu0
    %v1131 = vadd.f32 %v1125, %v972
    %v1132 = vadd.f32 %v1128, %v973
    %v1133 = vsel %vm38, %v1131, 0.0
    %1134 = vadd.xlane.f32.xlu0 %v1133
    %v1135 = vpop.xlane.xlu0 %1134
    %v1136 = vsel %vm38, %v1132, 0.0
    %1137 = vadd.xlane.f32.xlu0 %v1136
    %v1138 = vpop.xlane.xlu0 %1137
    %v1139 = vmul.f32 %v1135, %v45
    %v1140 = vmul.f32 %v1138, %v45
    %v1141 = vsub.f32 %v1131, %v1139
    %v1142 = vsub.f32 %v1132, %v1140
    %v1143 = vmul.f32 %v1141, %v1141
    %v1144 = vmul.f32 %v1142, %v1142
    %v1145 = vsel %vm38, %v1143, 0.0
    %1146 = vadd.xlane.f32.xlu0 %v1145
    %v1147 = vpop.xlane.xlu0 %1146
    %v1148 = vsel %vm38, %v1144, 0.0
    %1149 = vadd.xlane.f32.xlu0 %v1148
    %v1150 = vpop.xlane.xlu0 %1149
    %v1151 = vmul.f32 %v1147, %v45
    %v1152 = vmul.f32 %v1150, %v45
    %v1153 = vadd.f32 %v1151, 1e-12
    %v1154 = vadd.f32 %v1152, 1e-12
    %v1155 = vrsqrt.pop %v1153
    %v1156 = vrsqrt.pop %v1154
    %v1157 = vmul.f32 %v1141, %v1155
    %v1158 = vmul.f32 %v1142, %v1156
    %v1159 = vlaneseq
    %v1160 = vshrl.u32 %v1159, 7
    %v1161 = vsub.s32 1, %v1160
    %v1162 = vrot.slane %v34, %v1161
    %v1163 = vmul.f32 %v1157, %v1162
    %v1164 = vmul.f32 %v1158, %v1162
    %v1165 = vlaneseq
    %v1166 = vshrl.u32 %v1165, 7
    %v1167 = vsub.s32 2, %v1166
    %v1168 = vrot.slane %v34, %v1167
    %v1169 = vadd.f32 %v1163, %v1168
    %v1170 = vadd.f32 %v1164, %v1168
    %s1171 = scalar_lea.vmem %s2, 96
    %v1172 = vld [vmem:[%s1171] sm:$0xff]
    %v1173 = vld [vmem:[%s1171 + $0x8] sm:$0xff]
    %v1174 = vld [vmem:[%s1171 + $0x10] sm:$0xff]
    %v1175 = vld [vmem:[%s1171 + $0x18] sm:$0xff]
    %v1176 = vld [vmem:[%s1171 + $0x20] sm:$0xff]
    %v1177 = vld [vmem:[%s1171 + $0x28] sm:$0xff]
    %v1178 = vld [vmem:[%s1171 + $0x30] sm:$0xff]
    %v1179 = vld [vmem:[%s1171 + $0x38] sm:$0xff]
    %v1180 = vld [vmem:[%s1171 + $0x40] sm:$0xff]
    %v1181 = vld [vmem:[%s1171 + $0x48] sm:$0xff]
    %v1182 = vld [vmem:[%s1171 + $0x50] sm:$0xff]
    %v1183 = vld [vmem:[%s1171 + $0x58] sm:$0xff]
    %v1184 = vpack.c.bf16 %v1170, %v1169
    %v1185 = vlaneseq
    %v1186 = vshrl.u32 %v1185, 7
    %v1187 = vsub.s32 1, %v1186
    %v1188 = vrot.slane %v28, %v1187
    %v1189 = vlaneseq
    %v1190 = vshrl.u32 %v1189, 7
    %v1191 = vsub.s32 1, %v1190
    %v1192 = vrot.slane %v29, %v1191
    %v1193 = vlaneseq
    %v1194 = vshrl.u32 %v1193, 7
    %v1195 = vsub.s32 1, %v1194
    %v1196 = vrot.slane %v30, %v1195
    %v1197 = vlaneseq
    %v1198 = vshrl.u32 %v1197, 7
    %v1199 = vsub.s32 1, %v1198
    %v1200 = vrot.slane %v31, %v1199
    %v1201 = vlaneseq
    %v1202 = vshrl.u32 %v1201, 7
    %v1203 = vsub.s32 1, %v1202
    %v1204 = vrot.slane %v32, %v1203
    %v1205 = vlaneseq
    %v1206 = vshrl.u32 %v1205, 7
    %v1207 = vsub.s32 1, %v1206
    %v1208 = vrot.slane %v33, %v1207
    %v1221 = vunpack.c.l.b16 %v1172
    %v1222 = vunpack.c.h.b16 %v1172
    %v1223 = vunpack.c.l.b16 %v1173
    %v1224 = vunpack.c.h.b16 %v1173
    %v1225 = vunpack.c.l.b16 %v1174
    %v1226 = vunpack.c.h.b16 %v1174
    %v1227 = vunpack.c.l.b16 %v1175
    %v1228 = vunpack.c.h.b16 %v1175
    %v1229 = vunpack.c.l.b16 %v1176
    %v1230 = vunpack.c.h.b16 %v1176
    %v1231 = vunpack.c.l.b16 %v1177
    %v1232 = vunpack.c.h.b16 %v1177
    %v1233 = vunpack.c.l.b16 %v1178
    %v1234 = vunpack.c.h.b16 %v1178
    %v1235 = vunpack.c.l.b16 %v1179
    %v1236 = vunpack.c.h.b16 %v1179
    %v1237 = vunpack.c.l.b16 %v1180
    %v1238 = vunpack.c.h.b16 %v1180
    %v1239 = vunpack.c.l.b16 %v1181
    %v1240 = vunpack.c.h.b16 %v1181
    %v1241 = vunpack.c.l.b16 %v1182
    %v1242 = vunpack.c.h.b16 %v1182
    %v1243 = vunpack.c.l.b16 %v1183
    %v1244 = vunpack.c.h.b16 %v1183
    %v1245 = vpack.c.b16 %v1227, %v1221
    %v1246 = vpack.c.b16 %v1228, %v1222
    %v1247 = vpack.c.b16 %v1229, %v1223
    %v1248 = vpack.c.b16 %v1230, %v1224
    %v1249 = vpack.c.b16 %v1231, %v1225
    %v1250 = vpack.c.b16 %v1232, %v1226
    %v1251 = vpack.c.b16 %v1239, %v1233
    %v1252 = vpack.c.b16 %v1240, %v1234
    %v1253 = vpack.c.b16 %v1241, %v1235
    %v1254 = vpack.c.b16 %v1242, %v1236
    %v1255 = vpack.c.b16 %v1243, %v1237
    %v1256 = vpack.c.b16 %v1244, %v1238
    %v1270 = vsel %vm38, %v1184, 0
    %1272 = vmatprep.subr.bf16.mxu0 %v1246
    %1273 = vmatpush1.bf16.msra.mxu0 %v1245
    %1274 = vmatprep.subr.bf16.mxu0 %v1252
    %1275 = vmatpush1.bf16.msra.mxu0 %v1251
    %1276 = vmatprep.subr.bf16.mxu0 0
    %1277 = vmatpush1.bf16.msra.mxu0 0
    %1278 = vmatprep.subr.bf16.mxu0 0
    %1279 = vmatpush1.bf16.msra.mxu0 0
    %1280 = vmatprep.subr.bf16.mxu0 0
    %1281 = vmatpush1.bf16.msra.mxu0 0
    %1282 = vmatprep.subr.bf16.mxu0 0
    %1283 = vmatpush1.bf16.msra.mxu0 0
    %1284 = vmatprep.subr.bf16.mxu0 0
    %1285 = vmatpush1.bf16.msra.mxu0 0
    %1286 = vmatprep.subr.bf16.mxu0 0
    %1287 = vmatpush1.bf16.msra.mxu0 0
    %1288 = vmatprep.subr.bf16.mxu0 0
    %1289 = vmatpush1.bf16.msra.mxu0 0
    %1290 = vmatprep.subr.bf16.mxu0 0
    %1291 = vmatpush1.bf16.msra.mxu0 0
    %1292 = vmatprep.subr.bf16.mxu0 0
    %1293 = vmatpush1.bf16.msra.mxu0 0
    %1294 = vmatprep.subr.bf16.mxu0 0
    %1295 = vmatpush1.bf16.msra.mxu0 0
    %1296 = vmatprep.subr.bf16.mxu0 0
    %1297 = vmatpush1.bf16.msra.mxu0 0
    %1298 = vmatprep.subr.bf16.mxu0 0
    %1299 = vmatpush1.bf16.msra.mxu0 0
    %1300 = vmatprep.subr.bf16.mxu0 0
    %1301 = vmatpush1.bf16.msra.mxu0 0
    %1302 = vmatprep.subr.bf16.mxu0 0
    %1303 = vmatpush1.bf16.msra.mxu0 0
    %1304 = vmatprep.mubr.bf16.mxu0 0
    %1305 = vmatmul.mubr.bf16.gmra.mrb[0].mxu0 %v1270
    %v1306 = vpop.f32.mrb[0].mxu0
    %v1307 = vadd.f32 %v1188, %v1306
    %v1308 = vpop.f32.mrb[0].mxu0
    %v1309 = vadd.f32 %v1192, %v1308
    %v1310 = vpop.f32.mrb[0].mxu0
    %v1311 = vadd.f32 %v1188, %v1310
    %v1312 = vpop.f32.mrb[0].mxu0
    %v1313 = vadd.f32 %v1192, %v1312
    %1314 = vdwg.mxu0
    %1315 = vmatprep.subr.bf16.mxu0 %v1248
    %1316 = vmatpush1.bf16.msra.mxu0 %v1247
    %1317 = vmatprep.subr.bf16.mxu0 %v1254
    %1318 = vmatpush1.bf16.msra.mxu0 %v1253
    %1319 = vmatprep.subr.bf16.mxu0 0
    %1320 = vmatpush1.bf16.msra.mxu0 0
    %1321 = vmatprep.subr.bf16.mxu0 0
    %1322 = vmatpush1.bf16.msra.mxu0 0
    %1323 = vmatprep.subr.bf16.mxu0 0
    %1324 = vmatpush1.bf16.msra.mxu0 0
    %1325 = vmatprep.subr.bf16.mxu0 0
    %1326 = vmatpush1.bf16.msra.mxu0 0
    %1327 = vmatprep.subr.bf16.mxu0 0
    %1328 = vmatpush1.bf16.msra.mxu0 0
    %1329 = vmatprep.subr.bf16.mxu0 0
    %1330 = vmatpush1.bf16.msra.mxu0 0
    %1331 = vmatprep.subr.bf16.mxu0 0
    %1332 = vmatpush1.bf16.msra.mxu0 0
    %1333 = vmatprep.subr.bf16.mxu0 0
    %1334 = vmatpush1.bf16.msra.mxu0 0
    %1335 = vmatprep.subr.bf16.mxu0 0
    %1336 = vmatpush1.bf16.msra.mxu0 0
    %1337 = vmatprep.subr.bf16.mxu0 0
    %1338 = vmatpush1.bf16.msra.mxu0 0
    %1339 = vmatprep.subr.bf16.mxu0 0
    %1340 = vmatpush1.bf16.msra.mxu0 0
    %1341 = vmatprep.subr.bf16.mxu0 0
    %1342 = vmatpush1.bf16.msra.mxu0 0
    %1343 = vmatprep.subr.bf16.mxu0 0
    %1344 = vmatpush1.bf16.msra.mxu0 0
    %1345 = vmatprep.subr.bf16.mxu0 0
    %1346 = vmatpush1.bf16.msra.mxu0 0
    %1347 = vmatprep.mubr.bf16.mxu0 0
    %1348 = vmatmul.mubr.bf16.gmra.mrb[0].mxu0 %v1270
    %v1349 = vpop.f32.mrb[0].mxu0
    %v1350 = vadd.f32 %v1196, %v1349
    %v1351 = vpop.f32.mrb[0].mxu0
    %v1352 = vadd.f32 %v1200, %v1351
    %v1353 = vpop.f32.mrb[0].mxu0
    %v1354 = vadd.f32 %v1196, %v1353
    %v1355 = vpop.f32.mrb[0].mxu0
    %v1356 = vadd.f32 %v1200, %v1355
    %1357 = vdwg.mxu0
    %1358 = vmatprep.subr.bf16.mxu0 %v1250
    %1359 = vmatpush1.bf16.msra.mxu0 %v1249
    %1360 = vmatprep.subr.bf16.mxu0 %v1256
    %1361 = vmatpush1.bf16.msra.mxu0 %v1255
    %1362 = vmatprep.subr.bf16.mxu0 0
    %1363 = vmatpush1.bf16.msra.mxu0 0
    %1364 = vmatprep.subr.bf16.mxu0 0
    %1365 = vmatpush1.bf16.msra.mxu0 0
    %1366 = vmatprep.subr.bf16.mxu0 0
    %1367 = vmatpush1.bf16.msra.mxu0 0
    %1368 = vmatprep.subr.bf16.mxu0 0
    %1369 = vmatpush1.bf16.msra.mxu0 0
    %1370 = vmatprep.subr.bf16.mxu0 0
    %1371 = vmatpush1.bf16.msra.mxu0 0
    %1372 = vmatprep.subr.bf16.mxu0 0
    %1373 = vmatpush1.bf16.msra.mxu0 0
    %1374 = vmatprep.subr.bf16.mxu0 0
    %1375 = vmatpush1.bf16.msra.mxu0 0
    %1376 = vmatprep.subr.bf16.mxu0 0
    %1377 = vmatpush1.bf16.msra.mxu0 0
    %1378 = vmatprep.subr.bf16.mxu0 0
    %1379 = vmatpush1.bf16.msra.mxu0 0
    %1380 = vmatprep.subr.bf16.mxu0 0
    %1381 = vmatpush1.bf16.msra.mxu0 0
    %1382 = vmatprep.subr.bf16.mxu0 0
    %1383 = vmatpush1.bf16.msra.mxu0 0
    %1384 = vmatprep.subr.bf16.mxu0 0
    %1385 = vmatpush1.bf16.msra.mxu0 0
    %1386 = vmatprep.subr.bf16.mxu0 0
    %1387 = vmatpush1.bf16.msra.mxu0 0
    %1388 = vmatprep.subr.bf16.mxu0 0
    %1389 = vmatpush1.bf16.msra.mxu0 0
    %1390 = vmatprep.mubr.bf16.mxu0 0
    %1391 = vmatmul.mubr.bf16.gmra.mrb[0].mxu0 %v1270
    %v1392 = vpop.f32.mrb[0].mxu0
    %v1393 = vadd.f32 %v1204, %v1392
    %v1394 = vpop.f32.mrb[0].mxu0
    %v1395 = vadd.f32 %v1208, %v1394
    %v1396 = vpop.f32.mrb[0].mxu0
    %v1397 = vadd.f32 %v1204, %v1396
    %v1398 = vpop.f32.mrb[0].mxu0
    %v1399 = vadd.f32 %v1208, %v1398
    %1400 = vdwg.mxu0
    %v1401 = vpack.c.bf16 %v1307, %v1307
    %v1402 = vpack.c.bf16 %v1309, %v1309
    %v1403 = vpack.c.bf16 %v1350, %v1350
    %v1404 = vpack.c.bf16 %v1352, %v1352
    %v1405 = vpack.c.bf16 %v1393, %v1393
    %v1406 = vpack.c.bf16 %v1395, %v1395
    %v1408 = vsel %vm322, %v1401, 0
    %v1411 = vsel %vm322, %v1402, 0
    %1413 = vmatprep.subr.bf16.mxu0 0
    %1414 = vmatpush1.bf16.xpose.msra.mxu0 %v1411
    %1415 = vmatprep.subr.bf16.mxu0 0
    %1416 = vmatpush1.bf16.xpose.msra.mxu0 0
    %1417 = vmatprep.subr.bf16.mxu0 0
    %1418 = vmatpush1.bf16.xpose.msra.mxu0 0
    %1419 = vmatprep.subr.bf16.mxu0 0
    %1420 = vmatpush1.bf16.xpose.msra.mxu0 0
    %1421 = vmatprep.subr.bf16.mxu0 0
    %1422 = vmatpush1.bf16.xpose.msra.mxu0 0
    %1423 = vmatprep.subr.bf16.mxu0 0
    %1424 = vmatpush1.bf16.xpose.msra.mxu0 0
    %1425 = vmatprep.subr.bf16.mxu0 0
    %1426 = vmatpush1.bf16.xpose.msra.mxu0 0
    %1427 = vmatprep.subr.bf16.mxu0 0
    %1428 = vmatpush1.bf16.xpose.msra.mxu0 0
    %1429 = vmatprep.subr.bf16.mxu0 0
    %1430 = vmatpush1.bf16.xpose.msra.mxu0 0
    %1431 = vmatprep.subr.bf16.mxu0 0
    %1432 = vmatpush1.bf16.xpose.msra.mxu0 0
    %1433 = vmatprep.subr.bf16.mxu0 0
    %1434 = vmatpush1.bf16.xpose.msra.mxu0 0
    %1435 = vmatprep.subr.bf16.mxu0 0
    %1436 = vmatpush1.bf16.xpose.msra.mxu0 0
    %1437 = vmatprep.subr.bf16.mxu0 0
    %1438 = vmatpush1.bf16.xpose.msra.mxu0 0
    %1439 = vmatprep.subr.bf16.mxu0 0
    %1440 = vmatpush1.bf16.xpose.msra.mxu0 0
    %1441 = vmatprep.subr.bf16.mxu0 0
    %1442 = vmatpush1.bf16.xpose.msra.mxu0 0
    %1443 = vmatprep.subr.bf16.mxu0 0
    %1444 = vmatpush1.bf16.xpose.msra.mxu0 0
    %1445 = vmatprep.mubr.bf16.mxu0 0
    %1446 = vmatmul.mubr.bf16.gmra.mrb[0].mxu0 %v1408
    %v1447 = vpop.f32.mrb[0].mxu0
    %v1448 = vadd.f32 %v321, %v1447
    %v1449 = vpop.f32.mrb[0].mxu0
    %v1450 = vpop.f32.mrb[0].mxu0
    %v1451 = vpop.f32.mrb[0].mxu0
    %1452 = vdwg.mxu0
    %v1453 = vsel %vm369, %v1448, -inf
    %1454 = vmax.xlane.f32.xlu0 %v1453
    %v1455 = vpop.xlane.xlu0 %1454
    %v1456 = vsub.f32 %v1448, %v1455
    %v1457 = vmul.f32 %v1456, 1.442695
    %v1458 = vpow.pop %v1457
    %v1459 = vsel %vm369, %v1458, 0.0
    %1460 = vadd.xlane.f32.xlu0 %v1459
    %v1461 = vpop.xlane.xlu0 %1460
    %v1462 = vrcp.pop %v1461
    %v1463 = vmul.f32 %v1458, %v1462
    %v1464 = vpack.c.bf16 %v1463, %v1463
    %v1466 = vsel %vm369, %v1464, 0
    %v1469 = vsel %vm385, %v1403, 0
    %1471 = vmatprep.subr.bf16.mxu0 0
    %1472 = vmatpush1.bf16.msra.mxu0 %v1469
    %1473 = vmatprep.subr.bf16.mxu0 0
    %1474 = vmatpush1.bf16.msra.mxu0 0
    %1475 = vmatprep.subr.bf16.mxu0 0
    %1476 = vmatpush1.bf16.msra.mxu0 0
    %1477 = vmatprep.subr.bf16.mxu0 0
    %1478 = vmatpush1.bf16.msra.mxu0 0
    %1479 = vmatprep.subr.bf16.mxu0 0
    %1480 = vmatpush1.bf16.msra.mxu0 0
    %1481 = vmatprep.subr.bf16.mxu0 0
    %1482 = vmatpush1.bf16.msra.mxu0 0
    %1483 = vmatprep.subr.bf16.mxu0 0
    %1484 = vmatpush1.bf16.msra.mxu0 0
    %1485 = vmatprep.subr.bf16.mxu0 0
    %1486 = vmatpush1.bf16.msra.mxu0 0
    %1487 = vmatprep.subr.bf16.mxu0 0
    %1488 = vmatpush1.bf16.msra.mxu0 0
    %1489 = vmatprep.subr.bf16.mxu0 0
    %1490 = vmatpush1.bf16.msra.mxu0 0
    %1491 = vmatprep.subr.bf16.mxu0 0
    %1492 = vmatpush1.bf16.msra.mxu0 0
    %1493 = vmatprep.subr.bf16.mxu0 0
    %1494 = vmatpush1.bf16.msra.mxu0 0
    %1495 = vmatprep.subr.bf16.mxu0 0
    %1496 = vmatpush1.bf16.msra.mxu0 0
    %1497 = vmatprep.subr.bf16.mxu0 0
    %1498 = vmatpush1.bf16.msra.mxu0 0
    %1499 = vmatprep.subr.bf16.mxu0 0
    %1500 = vmatpush1.bf16.msra.mxu0 0
    %1501 = vmatprep.subr.bf16.mxu0 0
    %1502 = vmatpush1.bf16.msra.mxu0 0
    %1503 = vmatprep.mubr.bf16.mxu0 0
    %1504 = vmatmul.mubr.bf16.gmra.mrb[0].mxu0 %v1466
    %v1505 = vpop.f32.mrb[0].mxu0
    %v1506 = vadd.f32 0.0, %v1505
    %v1507 = vpop.f32.mrb[0].mxu0
    %v1508 = vpop.f32.mrb[0].mxu0
    %v1509 = vpop.f32.mrb[0].mxu0
    %1510 = vdwg.mxu0
    %1511 = vst.msk [vmem:[#allocation2] sm:$0xff] %vm322, %v1506
    %v1513 = vsel %vm322, %v1404, 0
    %v1516 = vsel %vm322, %v1405, 0
    %1518 = vmatprep.subr.bf16.mxu0 0
    %1519 = vmatpush1.bf16.xpose.msra.mxu0 %v1516
    %1520 = vmatprep.subr.bf16.mxu0 0
    %1521 = vmatpush1.bf16.xpose.msra.mxu0 0
    %1522 = vmatprep.subr.bf16.mxu0 0
    %1523 = vmatpush1.bf16.xpose.msra.mxu0 0
    %1524 = vmatprep.subr.bf16.mxu0 0
    %1525 = vmatpush1.bf16.xpose.msra.mxu0 0
    %1526 = vmatprep.subr.bf16.mxu0 0
    %1527 = vmatpush1.bf16.xpose.msra.mxu0 0
    %1528 = vmatprep.subr.bf16.mxu0 0
    %1529 = vmatpush1.bf16.xpose.msra.mxu0 0
    %1530 = vmatprep.subr.bf16.mxu0 0
    %1531 = vmatpush1.bf16.xpose.msra.mxu0 0
    %1532 = vmatprep.subr.bf16.mxu0 0
    %1533 = vmatpush1.bf16.xpose.msra.mxu0 0
    %1534 = vmatprep.subr.bf16.mxu0 0
    %1535 = vmatpush1.bf16.xpose.msra.mxu0 0
    %1536 = vmatprep.subr.bf16.mxu0 0
    %1537 = vmatpush1.bf16.xpose.msra.mxu0 0
    %1538 = vmatprep.subr.bf16.mxu0 0
    %1539 = vmatpush1.bf16.xpose.msra.mxu0 0
    %1540 = vmatprep.subr.bf16.mxu0 0
    %1541 = vmatpush1.bf16.xpose.msra.mxu0 0
    %1542 = vmatprep.subr.bf16.mxu0 0
    %1543 = vmatpush1.bf16.xpose.msra.mxu0 0
    %1544 = vmatprep.subr.bf16.mxu0 0
    %1545 = vmatpush1.bf16.xpose.msra.mxu0 0
    %1546 = vmatprep.subr.bf16.mxu0 0
    %1547 = vmatpush1.bf16.xpose.msra.mxu0 0
    %1548 = vmatprep.subr.bf16.mxu0 0
    %1549 = vmatpush1.bf16.xpose.msra.mxu0 0
    %1550 = vmatprep.mubr.bf16.mxu0 0
    %1551 = vmatmul.mubr.bf16.gmra.mrb[0].mxu0 %v1513
    %v1552 = vpop.f32.mrb[0].mxu0
    %v1553 = vadd.f32 %v321, %v1552
    %v1554 = vpop.f32.mrb[0].mxu0
    %v1555 = vpop.f32.mrb[0].mxu0
    %v1556 = vpop.f32.mrb[0].mxu0
    %1557 = vdwg.mxu0
    %v1558 = vsel %vm369, %v1553, -inf
    %1559 = vmax.xlane.f32.xlu0 %v1558
    %v1560 = vpop.xlane.xlu0 %1559
    %v1561 = vsub.f32 %v1553, %v1560
    %v1562 = vmul.f32 %v1561, 1.442695
    %v1563 = vpow.pop %v1562
    %v1564 = vsel %vm369, %v1563, 0.0
    %1565 = vadd.xlane.f32.xlu0 %v1564
    %v1566 = vpop.xlane.xlu0 %1565
    %v1567 = vrcp.pop %v1566
    %v1568 = vmul.f32 %v1563, %v1567
    %v1569 = vpack.c.bf16 %v1568, %v1568
    %v1571 = vsel %vm369, %v1569, 0
    %v1574 = vsel %vm385, %v1406, 0
    %1576 = vmatprep.subr.bf16.mxu0 0
    %1577 = vmatpush1.bf16.msra.mxu0 %v1574
    %1578 = vmatprep.subr.bf16.mxu0 0
    %1579 = vmatpush1.bf16.msra.mxu0 0
    %1580 = vmatprep.subr.bf16.mxu0 0
    %1581 = vmatpush1.bf16.msra.mxu0 0
    %1582 = vmatprep.subr.bf16.mxu0 0
    %1583 = vmatpush1.bf16.msra.mxu0 0
    %1584 = vmatprep.subr.bf16.mxu0 0
    %1585 = vmatpush1.bf16.msra.mxu0 0
    %1586 = vmatprep.subr.bf16.mxu0 0
    %1587 = vmatpush1.bf16.msra.mxu0 0
    %1588 = vmatprep.subr.bf16.mxu0 0
    %1589 = vmatpush1.bf16.msra.mxu0 0
    %1590 = vmatprep.subr.bf16.mxu0 0
    %1591 = vmatpush1.bf16.msra.mxu0 0
    %1592 = vmatprep.subr.bf16.mxu0 0
    %1593 = vmatpush1.bf16.msra.mxu0 0
    %1594 = vmatprep.subr.bf16.mxu0 0
    %1595 = vmatpush1.bf16.msra.mxu0 0
    %1596 = vmatprep.subr.bf16.mxu0 0
    %1597 = vmatpush1.bf16.msra.mxu0 0
    %1598 = vmatprep.subr.bf16.mxu0 0
    %1599 = vmatpush1.bf16.msra.mxu0 0
    %1600 = vmatprep.subr.bf16.mxu0 0
    %1601 = vmatpush1.bf16.msra.mxu0 0
    %1602 = vmatprep.subr.bf16.mxu0 0
    %1603 = vmatpush1.bf16.msra.mxu0 0
    %1604 = vmatprep.subr.bf16.mxu0 0
    %1605 = vmatpush1.bf16.msra.mxu0 0
    %1606 = vmatprep.subr.bf16.mxu0 0
    %1607 = vmatpush1.bf16.msra.mxu0 0
    %1608 = vmatprep.mubr.bf16.mxu0 0
    %1609 = vmatmul.mubr.bf16.gmra.mrb[0].mxu0 %v1571
    %v1610 = vpop.f32.mrb[0].mxu0
    %v1611 = vadd.f32 0.0, %v1610
    %v1612 = vpop.f32.mrb[0].mxu0
    %v1613 = vpop.f32.mrb[0].mxu0
    %v1614 = vpop.f32.mrb[0].mxu0
    %1615 = vdwg.mxu0
    %1616 = vst.msk [vmem:[#allocation2 + $0x8] sm:$0xff] %vm322, %v1611
    %v1617 = vpack.c.bf16 %v1311, %v1311
    %v1618 = vpack.c.bf16 %v1313, %v1313
    %v1619 = vpack.c.bf16 %v1354, %v1354
    %v1620 = vpack.c.bf16 %v1356, %v1356
    %v1621 = vpack.c.bf16 %v1397, %v1397
    %v1622 = vpack.c.bf16 %v1399, %v1399
    %v1624 = vsel %vm322, %v1617, 0
    %v1627 = vsel %vm322, %v1618, 0
    %1629 = vmatprep.subr.bf16.mxu0 0
    %1630 = vmatpush1.bf16.xpose.msra.mxu0 %v1627
    %1631 = vmatprep.subr.bf16.mxu0 0
    %1632 = vmatpush1.bf16.xpose.msra.mxu0 0
    %1633 = vmatprep.subr.bf16.mxu0 0
    %1634 = vmatpush1.bf16.xpose.msra.mxu0 0
    %1635 = vmatprep.subr.bf16.mxu0 0
    %1636 = vmatpush1.bf16.xpose.msra.mxu0 0
    %1637 = vmatprep.subr.bf16.mxu0 0
    %1638 = vmatpush1.bf16.xpose.msra.mxu0 0
    %1639 = vmatprep.subr.bf16.mxu0 0
    %1640 = vmatpush1.bf16.xpose.msra.mxu0 0
    %1641 = vmatprep.subr.bf16.mxu0 0
    %1642 = vmatpush1.bf16.xpose.msra.mxu0 0
    %1643 = vmatprep.subr.bf16.mxu0 0
    %1644 = vmatpush1.bf16.xpose.msra.mxu0 0
    %1645 = vmatprep.subr.bf16.mxu0 0
    %1646 = vmatpush1.bf16.xpose.msra.mxu0 0
    %1647 = vmatprep.subr.bf16.mxu0 0
    %1648 = vmatpush1.bf16.xpose.msra.mxu0 0
    %1649 = vmatprep.subr.bf16.mxu0 0
    %1650 = vmatpush1.bf16.xpose.msra.mxu0 0
    %1651 = vmatprep.subr.bf16.mxu0 0
    %1652 = vmatpush1.bf16.xpose.msra.mxu0 0
    %1653 = vmatprep.subr.bf16.mxu0 0
    %1654 = vmatpush1.bf16.xpose.msra.mxu0 0
    %1655 = vmatprep.subr.bf16.mxu0 0
    %1656 = vmatpush1.bf16.xpose.msra.mxu0 0
    %1657 = vmatprep.subr.bf16.mxu0 0
    %1658 = vmatpush1.bf16.xpose.msra.mxu0 0
    %1659 = vmatprep.subr.bf16.mxu0 0
    %1660 = vmatpush1.bf16.xpose.msra.mxu0 0
    %1661 = vmatprep.mubr.bf16.mxu0 0
    %1662 = vmatmul.mubr.bf16.gmra.mrb[0].mxu0 %v1624
    %v1663 = vpop.f32.mrb[0].mxu0
    %v1664 = vadd.f32 %v544, %v1663
    %v1665 = vpop.f32.mrb[0].mxu0
    %v1666 = vpop.f32.mrb[0].mxu0
    %v1667 = vpop.f32.mrb[0].mxu0
    %1668 = vdwg.mxu0
    %v1669 = vsel %vm369, %v1664, -inf
    %1670 = vmax.xlane.f32.xlu0 %v1669
    %v1671 = vpop.xlane.xlu0 %1670
    %v1672 = vsub.f32 %v1664, %v1671
    %v1673 = vmul.f32 %v1672, 1.442695
    %v1674 = vpow.pop %v1673
    %v1675 = vsel %vm369, %v1674, 0.0
    %1676 = vadd.xlane.f32.xlu0 %v1675
    %v1677 = vpop.xlane.xlu0 %1676
    %v1678 = vrcp.pop %v1677
    %v1679 = vmul.f32 %v1674, %v1678
    %v1680 = vpack.c.bf16 %v1679, %v1679
    %v1682 = vsel %vm369, %v1680, 0
    %v1685 = vsel %vm385, %v1619, 0
    %1687 = vmatprep.subr.bf16.mxu0 0
    %1688 = vmatpush1.bf16.msra.mxu0 %v1685
    %1689 = vmatprep.subr.bf16.mxu0 0
    %1690 = vmatpush1.bf16.msra.mxu0 0
    %1691 = vmatprep.subr.bf16.mxu0 0
    %1692 = vmatpush1.bf16.msra.mxu0 0
    %1693 = vmatprep.subr.bf16.mxu0 0
    %1694 = vmatpush1.bf16.msra.mxu0 0
    %1695 = vmatprep.subr.bf16.mxu0 0
    %1696 = vmatpush1.bf16.msra.mxu0 0
    %1697 = vmatprep.subr.bf16.mxu0 0
    %1698 = vmatpush1.bf16.msra.mxu0 0
    %1699 = vmatprep.subr.bf16.mxu0 0
    %1700 = vmatpush1.bf16.msra.mxu0 0
    %1701 = vmatprep.subr.bf16.mxu0 0
    %1702 = vmatpush1.bf16.msra.mxu0 0
    %1703 = vmatprep.subr.bf16.mxu0 0
    %1704 = vmatpush1.bf16.msra.mxu0 0
    %1705 = vmatprep.subr.bf16.mxu0 0
    %1706 = vmatpush1.bf16.msra.mxu0 0
    %1707 = vmatprep.subr.bf16.mxu0 0
    %1708 = vmatpush1.bf16.msra.mxu0 0
    %1709 = vmatprep.subr.bf16.mxu0 0
    %1710 = vmatpush1.bf16.msra.mxu0 0
    %1711 = vmatprep.subr.bf16.mxu0 0
    %1712 = vmatpush1.bf16.msra.mxu0 0
    %1713 = vmatprep.subr.bf16.mxu0 0
    %1714 = vmatpush1.bf16.msra.mxu0 0
    %1715 = vmatprep.subr.bf16.mxu0 0
    %1716 = vmatpush1.bf16.msra.mxu0 0
    %1717 = vmatprep.subr.bf16.mxu0 0
    %1718 = vmatpush1.bf16.msra.mxu0 0
    %1719 = vmatprep.mubr.bf16.mxu0 0
    %1720 = vmatmul.mubr.bf16.gmra.mrb[0].mxu0 %v1682
    %v1721 = vpop.f32.mrb[0].mxu0
    %v1722 = vadd.f32 0.0, %v1721
    %v1723 = vpop.f32.mrb[0].mxu0
    %v1724 = vpop.f32.mrb[0].mxu0
    %v1725 = vpop.f32.mrb[0].mxu0
    %1726 = vdwg.mxu0
    %1727 = vst.msk [vmem:[#allocation2 + $0x10] sm:$0xff] %vm322, %v1722
    %v1729 = vsel %vm322, %v1620, 0
    %v1732 = vsel %vm322, %v1621, 0
    %1734 = vmatprep.subr.bf16.mxu0 0
    %1735 = vmatpush1.bf16.xpose.msra.mxu0 %v1732
    %1736 = vmatprep.subr.bf16.mxu0 0
    %1737 = vmatpush1.bf16.xpose.msra.mxu0 0
    %1738 = vmatprep.subr.bf16.mxu0 0
    %1739 = vmatpush1.bf16.xpose.msra.mxu0 0
    %1740 = vmatprep.subr.bf16.mxu0 0
    %1741 = vmatpush1.bf16.xpose.msra.mxu0 0
    %1742 = vmatprep.subr.bf16.mxu0 0
    %1743 = vmatpush1.bf16.xpose.msra.mxu0 0
    %1744 = vmatprep.subr.bf16.mxu0 0
    %1745 = vmatpush1.bf16.xpose.msra.mxu0 0
    %1746 = vmatprep.subr.bf16.mxu0 0
    %1747 = vmatpush1.bf16.xpose.msra.mxu0 0
    %1748 = vmatprep.subr.bf16.mxu0 0
    %1749 = vmatpush1.bf16.xpose.msra.mxu0 0
    %1750 = vmatprep.subr.bf16.mxu0 0
    %1751 = vmatpush1.bf16.xpose.msra.mxu0 0
    %1752 = vmatprep.subr.bf16.mxu0 0
    %1753 = vmatpush1.bf16.xpose.msra.mxu0 0
    %1754 = vmatprep.subr.bf16.mxu0 0
    %1755 = vmatpush1.bf16.xpose.msra.mxu0 0
    %1756 = vmatprep.subr.bf16.mxu0 0
    %1757 = vmatpush1.bf16.xpose.msra.mxu0 0
    %1758 = vmatprep.subr.bf16.mxu0 0
    %1759 = vmatpush1.bf16.xpose.msra.mxu0 0
    %1760 = vmatprep.subr.bf16.mxu0 0
    %1761 = vmatpush1.bf16.xpose.msra.mxu0 0
    %1762 = vmatprep.subr.bf16.mxu0 0
    %1763 = vmatpush1.bf16.xpose.msra.mxu0 0
    %1764 = vmatprep.subr.bf16.mxu0 0
    %1765 = vmatpush1.bf16.xpose.msra.mxu0 0
    %1766 = vmatprep.mubr.bf16.mxu0 0
    %1767 = vmatmul.mubr.bf16.gmra.mrb[0].mxu0 %v1729
    %v1768 = vpop.f32.mrb[0].mxu0
    %v1769 = vadd.f32 %v544, %v1768
    %v1770 = vpop.f32.mrb[0].mxu0
    %v1771 = vpop.f32.mrb[0].mxu0
    %v1772 = vpop.f32.mrb[0].mxu0
    %1773 = vdwg.mxu0
    %v1774 = vsel %vm369, %v1769, -inf
    %1775 = vmax.xlane.f32.xlu0 %v1774
    %v1776 = vpop.xlane.xlu0 %1775
    %v1777 = vsub.f32 %v1769, %v1776
    %v1778 = vmul.f32 %v1777, 1.442695
    %v1779 = vpow.pop %v1778
    %v1780 = vsel %vm369, %v1779, 0.0
    %1781 = vadd.xlane.f32.xlu0 %v1780
    %v1782 = vpop.xlane.xlu0 %1781
    %v1783 = vrcp.pop %v1782
    %v1784 = vmul.f32 %v1779, %v1783
    %v1785 = vpack.c.bf16 %v1784, %v1784
    %v1787 = vsel %vm369, %v1785, 0
    %v1790 = vsel %vm385, %v1622, 0
    %1792 = vmatprep.subr.bf16.mxu0 0
    %1793 = vmatpush1.bf16.msra.mxu0 %v1790
    %1794 = vmatprep.subr.bf16.mxu0 0
    %1795 = vmatpush1.bf16.msra.mxu0 0
    %1796 = vmatprep.subr.bf16.mxu0 0
    %1797 = vmatpush1.bf16.msra.mxu0 0
    %1798 = vmatprep.subr.bf16.mxu0 0
    %1799 = vmatpush1.bf16.msra.mxu0 0
    %1800 = vmatprep.subr.bf16.mxu0 0
    %1801 = vmatpush1.bf16.msra.mxu0 0
    %1802 = vmatprep.subr.bf16.mxu0 0
    %1803 = vmatpush1.bf16.msra.mxu0 0
    %1804 = vmatprep.subr.bf16.mxu0 0
    %1805 = vmatpush1.bf16.msra.mxu0 0
    %1806 = vmatprep.subr.bf16.mxu0 0
    %1807 = vmatpush1.bf16.msra.mxu0 0
    %1808 = vmatprep.subr.bf16.mxu0 0
    %1809 = vmatpush1.bf16.msra.mxu0 0
    %1810 = vmatprep.subr.bf16.mxu0 0
    %1811 = vmatpush1.bf16.msra.mxu0 0
    %1812 = vmatprep.subr.bf16.mxu0 0
    %1813 = vmatpush1.bf16.msra.mxu0 0
    %1814 = vmatprep.subr.bf16.mxu0 0
    %1815 = vmatpush1.bf16.msra.mxu0 0
    %1816 = vmatprep.subr.bf16.mxu0 0
    %1817 = vmatpush1.bf16.msra.mxu0 0
    %1818 = vmatprep.subr.bf16.mxu0 0
    %1819 = vmatpush1.bf16.msra.mxu0 0
    %1820 = vmatprep.subr.bf16.mxu0 0
    %1821 = vmatpush1.bf16.msra.mxu0 0
    %1822 = vmatprep.subr.bf16.mxu0 0
    %1823 = vmatpush1.bf16.msra.mxu0 0
    %1824 = vmatprep.mubr.bf16.mxu0 0
    %1825 = vmatmul.mubr.bf16.gmra.mrb[0].mxu0 %v1787
    %v1826 = vpop.f32.mrb[0].mxu0
    %v1827 = vadd.f32 0.0, %v1826
    %v1828 = vpop.f32.mrb[0].mxu0
    %v1829 = vpop.f32.mrb[0].mxu0
    %v1830 = vpop.f32.mrb[0].mxu0
    %1831 = vdwg.mxu0
    %1832 = vst.msk [vmem:[#allocation2 + $0x18] sm:$0xff] %vm322, %v1827
    %v1833 = vld [vmem:[#allocation2] sm:$0xff]
    %v1834 = vld [vmem:[#allocation2 + $0x8] sm:$0xff]
    %v1835 = vld [vmem:[#allocation2 + $0x10] sm:$0xff]
    %v1836 = vld [vmem:[#allocation2 + $0x18] sm:$0xff]
    %s1837 = scalar_lea.vmem %s3, 128
    %v1838 = vld [vmem:[%s1837] sm:$0xf]
    %v1839 = vld [vmem:[%s1837 + $0x4] sm:$0xf]
    %v1840 = vld [vmem:[%s1837 + $0x8] sm:$0xf]
    %v1841 = vld [vmem:[%s1837 + $0xc] sm:$0xf]
    %v1842 = vld [vmem:[%s1837 + $0x10] sm:$0xf]
    %v1843 = vld [vmem:[%s1837 + $0x14] sm:$0xf]
    %v1844 = vld [vmem:[%s1837 + $0x18] sm:$0xf]
    %v1845 = vld [vmem:[%s1837 + $0x1c] sm:$0xf]
    %v1846 = vld [vmem:[%s1837 + $0x20] sm:$0xf]
    %v1847 = vld [vmem:[%s1837 + $0x24] sm:$0xf]
    %v1848 = vld [vmem:[%s1837 + $0x28] sm:$0xf]
    %v1849 = vld [vmem:[%s1837 + $0x2c] sm:$0xf]
    %v1850 = vld [vmem:[%s1837 + $0x30] sm:$0xf]
    %v1851 = vld [vmem:[%s1837 + $0x34] sm:$0xf]
    %v1852 = vld [vmem:[%s1837 + $0x38] sm:$0xf]
    %v1853 = vld [vmem:[%s1837 + $0x3c] sm:$0xf]
    %v1854 = vld [vmem:[%s1837 + $0x40] sm:$0xf]
    %v1855 = vld [vmem:[%s1837 + $0x44] sm:$0xf]
    %v1856 = vld [vmem:[%s1837 + $0x48] sm:$0xf]
    %v1857 = vld [vmem:[%s1837 + $0x4c] sm:$0xf]
    %v1858 = vld [vmem:[%s1837 + $0x50] sm:$0xf]
    %v1859 = vld [vmem:[%s1837 + $0x54] sm:$0xf]
    %v1860 = vld [vmem:[%s1837 + $0x58] sm:$0xf]
    %v1861 = vld [vmem:[%s1837 + $0x5c] sm:$0xf]
    %v1862 = vld [vmem:[%s1837 + $0x60] sm:$0xf]
    %v1863 = vld [vmem:[%s1837 + $0x64] sm:$0xf]
    %v1864 = vld [vmem:[%s1837 + $0x68] sm:$0xf]
    %v1865 = vld [vmem:[%s1837 + $0x6c] sm:$0xf]
    %v1866 = vld [vmem:[%s1837 + $0x70] sm:$0xf]
    %v1867 = vld [vmem:[%s1837 + $0x74] sm:$0xf]
    %v1868 = vld [vmem:[%s1837 + $0x78] sm:$0xf]
    %v1869 = vld [vmem:[%s1837 + $0x7c] sm:$0xf]
    %v1870 = vpack.c.bf16 %v1835, %v1833
    %v1871 = vpack.c.bf16 %v1836, %v1834
    %v1872 = vlaneseq
    %v1873 = vshrl.u32 %v1872, 7
    %v1874 = vsub.s32 3, %v1873
    %v1875 = vrot.slane %v34, %v1874
    %v1908 = vunpack.c.l.b16 %v1838
    %v1909 = vunpack.c.l.b16 %v1839
    %v1910 = vunpack.c.l.b16 %v1840
    %v1911 = vunpack.c.l.b16 %v1841
    %v1912 = vunpack.c.l.b16 %v1842
    %v1913 = vunpack.c.l.b16 %v1843
    %v1914 = vunpack.c.l.b16 %v1844
    %v1915 = vunpack.c.l.b16 %v1845
    %v1916 = vunpack.c.l.b16 %v1846
    %v1917 = vunpack.c.l.b16 %v1847
    %v1918 = vunpack.c.l.b16 %v1848
    %v1919 = vunpack.c.l.b16 %v1849
    %v1920 = vunpack.c.l.b16 %v1850
    %v1921 = vunpack.c.l.b16 %v1851
    %v1922 = vunpack.c.l.b16 %v1852
    %v1923 = vunpack.c.l.b16 %v1853
    %v1924 = vunpack.c.l.b16 %v1854
    %v1925 = vunpack.c.l.b16 %v1855
    %v1926 = vunpack.c.l.b16 %v1856
    %v1927 = vunpack.c.l.b16 %v1857
    %v1928 = vunpack.c.l.b16 %v1858
    %v1929 = vunpack.c.l.b16 %v1859
    %v1930 = vunpack.c.l.b16 %v1860
    %v1931 = vunpack.c.l.b16 %v1861
    %v1932 = vunpack.c.l.b16 %v1862
    %v1933 = vunpack.c.l.b16 %v1863
    %v1934 = vunpack.c.l.b16 %v1864
    %v1935 = vunpack.c.l.b16 %v1865
    %v1936 = vunpack.c.l.b16 %v1866
    %v1937 = vunpack.c.l.b16 %v1867
    %v1938 = vunpack.c.l.b16 %v1868
    %v1939 = vunpack.c.l.b16 %v1869
    %v1940 = vpack.c.b16 %v1909, %v1908
    %v1941 = vpack.c.b16 %v1911, %v1910
    %v1942 = vpack.c.b16 %v1913, %v1912
    %v1943 = vpack.c.b16 %v1915, %v1914
    %v1944 = vpack.c.b16 %v1917, %v1916
    %v1945 = vpack.c.b16 %v1919, %v1918
    %v1946 = vpack.c.b16 %v1921, %v1920
    %v1947 = vpack.c.b16 %v1923, %v1922
    %v1948 = vpack.c.b16 %v1925, %v1924
    %v1949 = vpack.c.b16 %v1927, %v1926
    %v1950 = vpack.c.b16 %v1929, %v1928
    %v1951 = vpack.c.b16 %v1931, %v1930
    %v1952 = vpack.c.b16 %v1933, %v1932
    %v1953 = vpack.c.b16 %v1935, %v1934
    %v1954 = vpack.c.b16 %v1937, %v1936
    %v1955 = vpack.c.b16 %v1939, %v1938
    %1972 = vmatprep.subr.bf16.mxu0 0
    %1973 = vmatpush1.bf16.msra.mxu0 %v1940
    %1974 = vmatprep.subr.bf16.mxu0 0
    %1975 = vmatpush1.bf16.msra.mxu0 %v1941
    %1976 = vmatprep.subr.bf16.mxu0 0
    %1977 = vmatpush1.bf16.msra.mxu0 %v1942
    %1978 = vmatprep.subr.bf16.mxu0 0
    %1979 = vmatpush1.bf16.msra.mxu0 %v1943
    %1980 = vmatprep.subr.bf16.mxu0 0
    %1981 = vmatpush1.bf16.msra.mxu0 %v1944
    %1982 = vmatprep.subr.bf16.mxu0 0
    %1983 = vmatpush1.bf16.msra.mxu0 %v1945
    %1984 = vmatprep.subr.bf16.mxu0 0
    %1985 = vmatpush1.bf16.msra.mxu0 %v1946
    %1986 = vmatprep.subr.bf16.mxu0 0
    %1987 = vmatpush1.bf16.msra.mxu0 %v1947
    %1988 = vmatprep.subr.bf16.mxu0 0
    %1989 = vmatpush1.bf16.msra.mxu0 %v1948
    %1990 = vmatprep.subr.bf16.mxu0 0
    %1991 = vmatpush1.bf16.msra.mxu0 %v1949
    %1992 = vmatprep.subr.bf16.mxu0 0
    %1993 = vmatpush1.bf16.msra.mxu0 %v1950
    %1994 = vmatprep.subr.bf16.mxu0 0
    %1995 = vmatpush1.bf16.msra.mxu0 %v1951
    %1996 = vmatprep.subr.bf16.mxu0 0
    %1997 = vmatpush1.bf16.msra.mxu0 %v1952
    %1998 = vmatprep.subr.bf16.mxu0 0
    %1999 = vmatpush1.bf16.msra.mxu0 %v1953
    %2000 = vmatprep.subr.bf16.mxu0 0
    %2001 = vmatpush1.bf16.msra.mxu0 %v1954
    %2002 = vmatprep.subr.bf16.mxu0 0
    %2003 = vmatpush1.bf16.msra.mxu0 %v1955
    %2004 = vmatprep.mubr.bf16.mxu0 %v1871
    %2005 = vmatmul.mubr.bf16.gmra.mrb[0].mxu0 %v1870
    %v2006 = vpop.f32.mrb[0].mxu0
    %v2007 = vadd.f32 %v1875, %v2006
    %v2008 = vpop.f32.mrb[0].mxu0
    %v2009 = vpop.f32.mrb[0].mxu0
    %v2010 = vadd.f32 %v1875, %v2009
    %v2011 = vpop.f32.mrb[0].mxu0
    %2012 = vdwg.mxu0
    %v2013 = vadd.f32 %v2007, %v1169
    %v2014 = vadd.f32 %v2010, %v1170
    %v2015 = vsel %vm38, %v2013, 0.0
    %2016 = vadd.xlane.f32.xlu0 %v2015
    %v2017 = vpop.xlane.xlu0 %2016
    %v2018 = vsel %vm38, %v2014, 0.0
    %2019 = vadd.xlane.f32.xlu0 %v2018
    %v2020 = vpop.xlane.xlu0 %2019
    %v2021 = vmul.f32 %v2017, %v45
    %v2022 = vmul.f32 %v2020, %v45
    %v2023 = vsub.f32 %v2013, %v2021
    %v2024 = vsub.f32 %v2014, %v2022
    %v2025 = vmul.f32 %v2023, %v2023
    %v2026 = vmul.f32 %v2024, %v2024
    %v2027 = vsel %vm38, %v2025, 0.0
    %2028 = vadd.xlane.f32.xlu0 %v2027
    %v2029 = vpop.xlane.xlu0 %2028
    %v2030 = vsel %vm38, %v2026, 0.0
    %2031 = vadd.xlane.f32.xlu0 %v2030
    %v2032 = vpop.xlane.xlu0 %2031
    %v2033 = vmul.f32 %v2029, %v45
    %v2034 = vmul.f32 %v2032, %v45
    %v2035 = vadd.f32 %v2033, 1e-12
    %v2036 = vadd.f32 %v2034, 1e-12
    %v2037 = vrsqrt.pop %v2035
    %v2038 = vrsqrt.pop %v2036
    %v2039 = vmul.f32 %v2023, %v2037
    %v2040 = vmul.f32 %v2024, %v2038
    %v2041 = vlaneseq
    %v2042 = vshrl.u32 %v2041, 7
    %v2043 = vsub.s32 4, %v2042
    %v2044 = vrot.slane %v34, %v2043
    %v2045 = vmul.f32 %v2039, %v2044
    %v2046 = vmul.f32 %v2040, %v2044
    %v2047 = vlaneseq
    %v2048 = vshrl.u32 %v2047, 7
    %v2049 = vsub.s32 5, %v2048
    %v2050 = vrot.slane %v34, %v2049
    %v2051 = vadd.f32 %v2045, %v2050
    %v2052 = vadd.f32 %v2046, %v2050
    %s2053 = scalar_lea.vmem %s4, 64
    %v2054 = vld [vmem:[%s2053] sm:$0xff]
    %v2055 = vld [vmem:[%s2053 + $0x8] sm:$0xff]
    %v2056 = vld [vmem:[%s2053 + $0x10] sm:$0xff]
    %v2057 = vld [vmem:[%s2053 + $0x18] sm:$0xff]
    %v2058 = vld [vmem:[%s2053 + $0x20] sm:$0xff]
    %v2059 = vld [vmem:[%s2053 + $0x28] sm:$0xff]
    %v2060 = vld [vmem:[%s2053 + $0x30] sm:$0xff]
    %v2061 = vld [vmem:[%s2053 + $0x38] sm:$0xff]
    %v2062 = vpack.c.bf16 %v2052, %v2051
    %v2063 = vlaneseq
    %v2064 = vshrl.u32 %v2063, 7
    %v2065 = vsub.s32 6, %v2064
    %v2066 = vrot.slane %v34, %v2065
    %v2071 = vunpack.c.l.b16 %v2054
    %v2072 = vunpack.c.l.b16 %v2055
    %v2073 = vunpack.c.l.b16 %v2056
    %v2074 = vunpack.c.l.b16 %v2057
    %v2075 = vpack.c.b16 %v2072, %v2071
    %v2076 = vpack.c.b16 %v2074, %v2073
    %v2080 = vsel %vm38, %v2062, 0
    %2082 = vmatprep.subr.bf16.mxu0 0
    %2083 = vmatpush1.bf16.msra.mxu0 %v2075
    %2084 = vmatprep.subr.bf16.mxu0 0
    %2085 = vmatpush1.bf16.msra.mxu0 %v2076
    %2086 = vmatprep.subr.bf16.mxu0 0
    %2087 = vmatpush1.bf16.msra.mxu0 0
    %2088 = vmatprep.subr.bf16.mxu0 0
    %2089 = vmatpush1.bf16.msra.mxu0 0
    %2090 = vmatprep.subr.bf16.mxu0 0
    %2091 = vmatpush1.bf16.msra.mxu0 0
    %2092 = vmatprep.subr.bf16.mxu0 0
    %2093 = vmatpush1.bf16.msra.mxu0 0
    %2094 = vmatprep.subr.bf16.mxu0 0
    %2095 = vmatpush1.bf16.msra.mxu0 0
    %2096 = vmatprep.subr.bf16.mxu0 0
    %2097 = vmatpush1.bf16.msra.mxu0 0
    %2098 = vmatprep.subr.bf16.mxu0 0
    %2099 = vmatpush1.bf16.msra.mxu0 0
    %2100 = vmatprep.subr.bf16.mxu0 0
    %2101 = vmatpush1.bf16.msra.mxu0 0
    %2102 = vmatprep.subr.bf16.mxu0 0
    %2103 = vmatpush1.bf16.msra.mxu0 0
    %2104 = vmatprep.subr.bf16.mxu0 0
    %2105 = vmatpush1.bf16.msra.mxu0 0
    %2106 = vmatprep.subr.bf16.mxu0 0
    %2107 = vmatpush1.bf16.msra.mxu0 0
    %2108 = vmatprep.subr.bf16.mxu0 0
    %2109 = vmatpush1.bf16.msra.mxu0 0
    %2110 = vmatprep.subr.bf16.mxu0 0
    %2111 = vmatpush1.bf16.msra.mxu0 0
    %2112 = vmatprep.subr.bf16.mxu0 0
    %2113 = vmatpush1.bf16.msra.mxu0 0
    %2114 = vmatprep.mubr.bf16.mxu0 0
    %2115 = vmatmul.mubr.bf16.gmra.mrb[0].mxu0 %v2080
    %v2116 = vpop.f32.mrb[0].mxu0
    %v2117 = vadd.f32 %v2066, %v2116
    %v2118 = vpop.f32.mrb[0].mxu0
    %v2119 = vpop.f32.mrb[0].mxu0
    %v2120 = vadd.f32 %v2066, %v2119
    %v2121 = vpop.f32.mrb[0].mxu0
    %2122 = vdwg.mxu0
    %v2123 = vmul.f32 %v2117, 0.5
    %v2124 = vmul.f32 %v2120, 0.5
    %v2125 = vmul.f32 %v2117, 0.044715
    %v2126 = vmul.f32 %v2120, 0.044715
    %v2127 = vmul.f32 %v2125, %v2117
    %v2128 = vmul.f32 %v2126, %v2120
    %v2129 = vmul.f32 %v2127, %v2117
    %v2130 = vmul.f32 %v2128, %v2120
    %v2131 = vadd.f32 %v2117, %v2129
    %v2132 = vadd.f32 %v2120, %v2130
    %v2133 = vmul.f32 %v2131, 0.7978846
    %v2134 = vmul.f32 %v2132, 0.7978846
    %v2135 = vtanh.pop %v2133
    %v2136 = vtanh.pop %v2134
    %v2137 = vadd.f32 %v2135, 1.0
    %v2138 = vadd.f32 %v2136, 1.0
    %v2139 = vmul.f32 %v2123, %v2137
    %v2140 = vmul.f32 %v2124, %v2138
    %v2141 = vpack.c.bf16 %v2140, %v2139
    %v2142 = vlaneseq
    %v2143 = vshrl.u32 %v2142, 7
    %v2144 = vsub.s32 7, %v2143
    %v2145 = vrot.slane %v34, %v2144
    %v2150 = vunpack.c.h.b16 %v2054
    %v2151 = vunpack.c.h.b16 %v2055
    %v2152 = vunpack.c.h.b16 %v2056
    %v2153 = vunpack.c.h.b16 %v2057
    %v2154 = vunpack.c.h.b16 %v2058
    %v2155 = vunpack.c.h.b16 %v2059
    %v2156 = vunpack.c.h.b16 %v2060
    %v2157 = vunpack.c.h.b16 %v2061
    %v2158 = vpack.c.b16 %v2151, %v2150
    %v2159 = vpack.c.b16 %v2153, %v2152
    %v2160 = vpack.c.b16 %v2155, %v2154
    %v2161 = vpack.c.b16 %v2157, %v2156
    %v2167 = vsel %vm1086, %v2141, 0
    %2169 = vmatprep.subr.bf16.mxu0 0
    %2170 = vmatpush1.bf16.msra.mxu0 %v2158
    %2171 = vmatprep.subr.bf16.mxu0 0
    %2172 = vmatpush1.bf16.msra.mxu0 %v2159
    %2173 = vmatprep.subr.bf16.mxu0 0
    %2174 = vmatpush1.bf16.msra.mxu0 %v2160
    %2175 = vmatprep.subr.bf16.mxu0 0
    %2176 = vmatpush1.bf16.msra.mxu0 %v2161
    %2177 = vmatprep.subr.bf16.mxu0 0
    %2178 = vmatpush1.bf16.msra.mxu0 0
    %2179 = vmatprep.subr.bf16.mxu0 0
    %2180 = vmatpush1.bf16.msra.mxu0 0
    %2181 = vmatprep.subr.bf16.mxu0 0
    %2182 = vmatpush1.bf16.msra.mxu0 0
    %2183 = vmatprep.subr.bf16.mxu0 0
    %2184 = vmatpush1.bf16.msra.mxu0 0
    %2185 = vmatprep.subr.bf16.mxu0 0
    %2186 = vmatpush1.bf16.msra.mxu0 0
    %2187 = vmatprep.subr.bf16.mxu0 0
    %2188 = vmatpush1.bf16.msra.mxu0 0
    %2189 = vmatprep.subr.bf16.mxu0 0
    %2190 = vmatpush1.bf16.msra.mxu0 0
    %2191 = vmatprep.subr.bf16.mxu0 0
    %2192 = vmatpush1.bf16.msra.mxu0 0
    %2193 = vmatprep.subr.bf16.mxu0 0
    %2194 = vmatpush1.bf16.msra.mxu0 0
    %2195 = vmatprep.subr.bf16.mxu0 0
    %2196 = vmatpush1.bf16.msra.mxu0 0
    %2197 = vmatprep.subr.bf16.mxu0 0
    %2198 = vmatpush1.bf16.msra.mxu0 0
    %2199 = vmatprep.subr.bf16.mxu0 0
    %2200 = vmatpush1.bf16.msra.mxu0 0
    %2201 = vmatprep.mubr.bf16.mxu0 0
    %2202 = vmatmul.mubr.bf16.gmra.mrb[0].mxu0 %v2167
    %v2203 = vpop.f32.mrb[0].mxu0
    %v2204 = vadd.f32 %v2145, %v2203
    %v2205 = vpop.f32.mrb[0].mxu0
    %v2206 = vpop.f32.mrb[0].mxu0
    %v2207 = vadd.f32 %v2145, %v2206
    %v2208 = vpop.f32.mrb[0].mxu0
    %2209 = vdwg.mxu0
    %v2210 = vadd.f32 %v2204, %v2051
    %v2211 = vadd.f32 %v2207, %v2052
    %v2212 = vsel %vm38, %v2210, 0.0
    %2213 = vadd.xlane.f32.xlu0 %v2212
    %v2214 = vpop.xlane.xlu0 %2213
    %v2215 = vsel %vm38, %v2211, 0.0
    %2216 = vadd.xlane.f32.xlu0 %v2215
    %v2217 = vpop.xlane.xlu0 %2216
    %v2218 = vmul.f32 %v2214, %v45
    %v2219 = vmul.f32 %v2217, %v45
    %v2220 = vsub.f32 %v2210, %v2218
    %v2221 = vsub.f32 %v2211, %v2219
    %v2222 = vmul.f32 %v2220, %v2220
    %v2223 = vmul.f32 %v2221, %v2221
    %v2224 = vsel %vm38, %v2222, 0.0
    %2225 = vadd.xlane.f32.xlu0 %v2224
    %v2226 = vpop.xlane.xlu0 %2225
    %v2227 = vsel %vm38, %v2223, 0.0
    %2228 = vadd.xlane.f32.xlu0 %v2227
    %v2229 = vpop.xlane.xlu0 %2228
    %v2230 = vmul.f32 %v2226, %v45
    %v2231 = vmul.f32 %v2229, %v45
    %v2232 = vadd.f32 %v2230, 1e-12
    %v2233 = vadd.f32 %v2231, 1e-12
    %v2234 = vrsqrt.pop %v2232
    %v2235 = vrsqrt.pop %v2233
    %v2236 = vmul.f32 %v2220, %v2234
    %v2237 = vmul.f32 %v2221, %v2235
    %v2238 = vlaneseq
    %v2239 = vshrl.u32 %v2238, 7
    %v2240 = vsub.s32 0, %v2239
    %v2241 = vrot.slane %v35, %v2240
    %v2242 = vmul.f32 %v2236, %v2241
    %v2243 = vmul.f32 %v2237, %v2241
    %v2244 = vlaneseq
    %v2245 = vshrl.u32 %v2244, 7
    %v2246 = vsub.s32 1, %v2245
    %v2247 = vrot.slane %v35, %v2246
    %v2248 = vadd.f32 %v2242, %v2247
    %v2249 = vadd.f32 %v2243, %v2247
    %v2250 = vld [vmem:[%s5] sm:$0xff]
    %v2251 = vld [vmem:[%s5 + $0x8] sm:$0xff]
    %v2252 = vld [vmem:[%s5 + $0x10] sm:$0xff]
    %v2253 = vld [vmem:[%s5 + $0x18] sm:$0xff]
    %v2254 = vpack.c.bf16 %v2248, %v2248
    %v2255 = vpack.c.bf16 %v2249, %v2249
    %v2256 = vlaneseq
    %v2257 = vshrl.u32 %v2256, 7
    %v2258 = vsub.s32 2, %v2257
    %v2259 = vrot.slane %v35, %v2258
    %v2262 = vunpack.c.l.b16 %v2254
    %v2263 = vunpack.c.l.b16 %v2255
    %v2264 = vrot.slane %v2263, 7
    %vm2265 = vcmask 1041409
    %v2266 = vsel %vm2265, %v2264, %v2262
    %v2267 = vpack.c.b16 %v2266, %v2266
    %v2272 = vunpack.c.l.b16 %v2250
    %v2273 = vunpack.c.l.b16 %v2251
    %v2274 = vunpack.c.l.b16 %v2252
    %v2275 = vunpack.c.l.b16 %v2253
    %v2276 = vpack.c.b16 %v2273, %v2272
    %v2277 = vpack.c.b16 %v2275, %v2274
    %v2281 = vsel %vm38, %v2267, 0
    %2283 = vmatprep.subr.bf16.mxu0 0
    %2284 = vmatpush1.bf16.msra.mxu0 %v2276
    %2285 = vmatprep.subr.bf16.mxu0 0
    %2286 = vmatpush1.bf16.msra.mxu0 %v2277
    %2287 = vmatprep.subr.bf16.mxu0 0
    %2288 = vmatpush1.bf16.msra.mxu0 0
    %2289 = vmatprep.subr.bf16.mxu0 0
    %2290 = vmatpush1.bf16.msra.mxu0 0
    %2291 = vmatprep.subr.bf16.mxu0 0
    %2292 = vmatpush1.bf16.msra.mxu0 0
    %2293 = vmatprep.subr.bf16.mxu0 0
    %2294 = vmatpush1.bf16.msra.mxu0 0
    %2295 = vmatprep.subr.bf16.mxu0 0
    %2296 = vmatpush1.bf16.msra.mxu0 0
    %2297 = vmatprep.subr.bf16.mxu0 0
    %2298 = vmatpush1.bf16.msra.mxu0 0
    %2299 = vmatprep.subr.bf16.mxu0 0
    %2300 = vmatpush1.bf16.msra.mxu0 0
    %2301 = vmatprep.subr.bf16.mxu0 0
    %2302 = vmatpush1.bf16.msra.mxu0 0
    %2303 = vmatprep.subr.bf16.mxu0 0
    %2304 = vmatpush1.bf16.msra.mxu0 0
    %2305 = vmatprep.subr.bf16.mxu0 0
    %2306 = vmatpush1.bf16.msra.mxu0 0
    %2307 = vmatprep.subr.bf16.mxu0 0
    %2308 = vmatpush1.bf16.msra.mxu0 0
    %2309 = vmatprep.subr.bf16.mxu0 0
    %2310 = vmatpush1.bf16.msra.mxu0 0
    %2311 = vmatprep.subr.bf16.mxu0 0
    %2312 = vmatpush1.bf16.msra.mxu0 0
    %2313 = vmatprep.subr.bf16.mxu0 0
    %2314 = vmatpush1.bf16.msra.mxu0 0
    %2315 = vmatprep.mubr.bf16.mxu0 0
    %2316 = vmatmul.mubr.bf16.gmra.mrb[0].mxu0 %v2281
    %v2317 = vpop.f32.mrb[0].mxu0
    %v2318 = vadd.f32 %v2259, %v2317
    %v2319 = vpop.f32.mrb[0].mxu0
    %v2320 = vpop.f32.mrb[0].mxu0
    %v2321 = vpop.f32.mrb[0].mxu0
    %2322 = vdwg.mxu0
    %v2323 = vtanh.pop %v2318
    %v2324 = vpack.c.bf16 %v2323, %v2323
    %v2325 = vlaneseq
    %v2326 = vshrl.u32 %v2325, 7
    %v2327 = vsub.s32 3, %v2326
    %v2328 = vrot.slane %v35, %v2327
    %v2329 = vunpack.c.h.b16 %v2250
    %v2330 = vunpack.c.h.b16 %v2251
    %v2331 = vunpack.c.h.b16 %v2252
    %v2332 = vunpack.c.h.b16 %v2253
    %v2333 = vpack.c.b16 %v2330, %v2329
    %v2334 = vpack.c.b16 %v2332, %v2331
    %v2338 = vsel %vm38, %v2324, 0
    %2340 = vmatprep.subr.bf16.mxu0 0
    %2341 = vmatpush1.bf16.msra.mxu0 %v2333
    %2342 = vmatprep.subr.bf16.mxu0 0
    %2343 = vmatpush1.bf16.msra.mxu0 %v2334
    %2344 = vmatprep.subr.bf16.mxu0 0
    %2345 = vmatpush1.bf16.msra.mxu0 0
    %2346 = vmatprep.subr.bf16.mxu0 0
    %2347 = vmatpush1.bf16.msra.mxu0 0
    %2348 = vmatprep.subr.bf16.mxu0 0
    %2349 = vmatpush1.bf16.msra.mxu0 0
    %2350 = vmatprep.subr.bf16.mxu0 0
    %2351 = vmatpush1.bf16.msra.mxu0 0
    %2352 = vmatprep.subr.bf16.mxu0 0
    %2353 = vmatpush1.bf16.msra.mxu0 0
    %2354 = vmatprep.subr.bf16.mxu0 0
    %2355 = vmatpush1.bf16.msra.mxu0 0
    %2356 = vmatprep.subr.bf16.mxu0 0
    %2357 = vmatpush1.bf16.msra.mxu0 0
    %2358 = vmatprep.subr.bf16.mxu0 0
    %2359 = vmatpush1.bf16.msra.mxu0 0
    %2360 = vmatprep.subr.bf16.mxu0 0
    %2361 = vmatpush1.bf16.msra.mxu0 0
    %2362 = vmatprep.subr.bf16.mxu0 0
    %2363 = vmatpush1.bf16.msra.mxu0 0
    %2364 = vmatprep.subr.bf16.mxu0 0
    %2365 = vmatpush1.bf16.msra.mxu0 0
    %2366 = vmatprep.subr.bf16.mxu0 0
    %2367 = vmatpush1.bf16.msra.mxu0 0
    %2368 = vmatprep.subr.bf16.mxu0 0
    %2369 = vmatpush1.bf16.msra.mxu0 0
    %2370 = vmatprep.subr.bf16.mxu0 0
    %2371 = vmatpush1.bf16.msra.mxu0 0
    %2372 = vmatprep.mubr.bf16.mxu0 0
    %2373 = vmatmul.mubr.bf16.gmra.mrb[0].mxu0 %v2338
    %v2374 = vpop.f32.mrb[0].mxu0
    %v2375 = vadd.f32 %v2328, %v2374
    %v2376 = vpop.f32.mrb[0].mxu0
    %v2377 = vpop.f32.mrb[0].mxu0
    %v2378 = vpop.f32.mrb[0].mxu0
    %2379 = vdwg.mxu0
    %2380 = vst [vmem:[#allocation3] sm:$0x3] %v2375
    // Predicated region
    $region30: #{bert_classifier_forward.1} parent=1 // pred_check
      _
    $region31: #{bert_classifier_forward.1} parent=1 // pred_check_branch
      %2382 = sbr.rel (0) target = $region33
    $region32: #{bert_classifier_forward.1} parent=1 // pred_region
      %s2384 = ssub.s32 32, 32
      %2385 = vsyncadd [#allocation4], %s2384
      %s2387 = sshll.u32 [#allocation3], 4
      %s2388 = int_to_ptr.vmem [resolvable:$true] %s2387
      %2390 = dma.vmem_to_hbm [thread:$0]  %s2388, 32, %s7, [#allocation4]
    $region33: #{bert_classifier_forward.1} parent=1 // pred_fallthru
      _
    // Predicated region
    $region34: #{bert_classifier_forward.1} parent=1 // pred_check
      _
    $region35: #{bert_classifier_forward.1} parent=1 // pred_check_branch
      %2392 = sbr.rel (0) target = $region37
    $region36: #{bert_classifier_forward.1} parent=1 // pred_region
      %2393 = dma.done [#allocation4], 32
    $region37: #{bert_classifier_forward.1} parent=1 // pred_fallthru
      _
    %2394 = vsyncpa [#allocation4], 1

</llo_original>
